<compile_context>
chip_gen: v5e
topology: v5e:2x2
jax: 0.10.0
libtpu: 0.0.40
codegen_flags: <defaults>
</compile_context>

<pallas_src>
import jax
import jax.numpy as jnp
from jax.experimental import pallas as pl
from jax.experimental.pallas import tpu as pltpu

LATENT = 128
H1 = 256
H2 = 512
OUT = 784
OUT_PAD = 896  # 7 * 128, lane-dense output width
TM = 128       # batch tile (rows per grid step)


def _leaky_relu(x, slope=0.2):
    return jnp.where(x > 0, x, slope * x)


def generator_kernel(x_ref, w1_ref, b1_ref, w2_ref, b2_ref, w3_ref, b3_ref, o_ref):
    # fc1: (tm,128)bf16 @ (128,256)bf16 -> f32, bias + leaky_relu in f32
    h = jnp.dot(x_ref[...], w1_ref[...], preferred_element_type=jnp.float32)
    h = _leaky_relu(h + b1_ref[...])
    # fc2: (tm,256)bf16 @ (256,512)bf16 -> f32
    h = jnp.dot(h.astype(jnp.bfloat16), w2_ref[...], preferred_element_type=jnp.float32)
    h = _leaky_relu(h + b2_ref[...])
    # fc3: (tm,512)bf16 @ (512,896)bf16 -> f32, tanh in f32
    h = jnp.dot(h.astype(jnp.bfloat16), w3_ref[...], preferred_element_type=jnp.float32)
    o_ref[...] = jnp.tanh(h + b3_ref[...])


def generator_forward(x, params, tm=TM):
    """x: (B, 128) f32/bf16. params: bf16 weights (w3 padded to 896) + f32 biases."""
    w1, b1, w2, b2, w3, b3 = params
    B = x.shape[0]
    Bp = pl.cdiv(B, tm) * tm

    xb = x.astype(jnp.bfloat16)
    if Bp != B:
        xb = jnp.pad(xb, ((0, Bp - B), (0, 0)))

    grid = (Bp // tm,)
    resident = lambda a: pl.BlockSpec(a.shape, lambda i: (0,) * a.ndim)

    flops = 2 * Bp * (LATENT * H1 + H1 * H2 + H2 * OUT_PAD)
    bytes_accessed = (
        2 * (LATENT * H1 + H1 * H2 + H2 * OUT_PAD)   # bf16 weights
        + 4 * (H1 + H2 + OUT_PAD)                    # f32 biases
        + 2 * Bp * LATENT                            # bf16 x
        + 4 * Bp * OUT_PAD                           # f32 out
    )

    out = pl.pallas_call(
        generator_kernel,
        out_shape=jax.ShapeDtypeStruct((Bp, OUT_PAD), jnp.float32),
        grid=grid,
        in_specs=[
            pl.BlockSpec((tm, LATENT), lambda i: (i, 0)),
            resident(w1), resident(b1),
            resident(w2), resident(b2),
            resident(w3), resident(b3),
        ],
        out_specs=pl.BlockSpec((tm, OUT_PAD), lambda i: (i, 0)),
        compiler_params=pltpu.CompilerParams(
            dimension_semantics=("parallel",),
            vmem_limit_bytes=16 << 20,
        ),
        cost_estimate=pl.CostEstimate(
            flops=flops,
            transcendentals=Bp * OUT_PAD,
            bytes_accessed=bytes_accessed,
        ),
    )(xb, w1, b1, w2, b2, w3, b3)

    return out[:B, :OUT]


def init_params(key):
    """PyTorch-style uniform(-1/sqrt(fan_in), 1/sqrt(fan_in)) init.
    Weights stored transposed (in, out) and cast to bf16; fc3 zero-padded to 896."""
    dims = [(LATENT, H1), (H1, H2), (H2, OUT)]
    params = []
    for fan_in, fan_out in dims:
        kw, kb, key = jax.random.split(key, 3)
        bound = 1.0 / (fan_in ** 0.5)
        w = jax.random.uniform(kw, (fan_in, fan_out), jnp.float32, -bound, bound)
        b = jax.random.uniform(kb, (1, fan_out), jnp.float32, -bound, bound)
        if fan_out == OUT:  # pad fc3 to lane-dense 896; extra cols are zero
            w = jnp.pad(w, ((0, 0), (0, OUT_PAD - OUT)))
            b = jnp.pad(b, ((0, 0), (0, OUT_PAD - OUT)))
        params += [w.astype(jnp.bfloat16), b]
    return params


def reference_forward(x, params):
    """Pure-JAX reference mirroring the kernel's dtypes (bf16 matmuls, f32 rest)."""
    w1, b1, w2, b2, w3, b3 = params
    h = _leaky_relu(jnp.dot(x.astype(jnp.bfloat16), w1,
                            preferred_element_type=jnp.float32) + b1)
    h = _leaky_relu(jnp.dot(h.astype(jnp.bfloat16), w2,
                            preferred_element_type=jnp.float32) + b2)
    h = jnp.dot(h.astype(jnp.bfloat16), w3,
                preferred_element_type=jnp.float32) + b3
    return jnp.tanh(h)[:, :OUT]


if __name__ == "__main__":
    key = jax.random.PRNGKey(0)
    kx, kp = jax.random.split(key)

    B = 256  # exercises two grid steps at tm=128; latent dim fixed at 128
    x = jax.random.normal(kx, (B, LATENT), dtype=jnp.float32)
    params = init_params(kp)

    out = generator_forward(x, params)
    out = jax.block_until_ready(out)

    ref = reference_forward(x, params)
    assert out.shape == (B, OUT)
    assert jnp.allclose(out, ref, atol=1e-2, rtol=1e-2), "mismatch vs JAX reference"

    print("KERNEL_OK")
</pallas_src>

<mosaic_0001>
module attributes {stable_mosaic.version = 11 : i64} {
  func.func @generator_kernel(%arg0: i32, %arg1: memref<128x128xbf16, #tpu.memory_space<vmem>>, %arg2: memref<128x256xbf16, #tpu.memory_space<vmem>>, %arg3: memref<1x256xf32, #tpu.memory_space<vmem>>, %arg4: memref<256x512xbf16, #tpu.memory_space<vmem>>, %arg5: memref<1x512xf32, #tpu.memory_space<vmem>>, %arg6: memref<512x896xbf16, #tpu.memory_space<vmem>>, %arg7: memref<1x896xf32, #tpu.memory_space<vmem>>, %arg8: memref<128x896xf32, #tpu.memory_space<vmem>>) attributes {dimension_semantics = [#tpu.dimension_semantics<parallel>], iteration_bounds = array<i64: 2>, scalar_prefetch = 0 : i64, scratch_operands = 0 : i64, tpu.core_type = #tpu.core_type<tc>, window_params = [{transform_indices = @transform_0, window_bounds = array<i64: 128, 128>}, {pipeline_mode = #tpu.pipeline_mode<synchronous>, transform_indices = @transform_1, window_bounds = array<i64: 128, 256>}, {pipeline_mode = #tpu.pipeline_mode<synchronous>, transform_indices = @transform_2, window_bounds = array<i64: 1, 256>}, {pipeline_mode = #tpu.pipeline_mode<synchronous>, transform_indices = @transform_3, window_bounds = array<i64: 256, 512>}, {pipeline_mode = #tpu.pipeline_mode<synchronous>, transform_indices = @transform_4, window_bounds = array<i64: 1, 512>}, {pipeline_mode = #tpu.pipeline_mode<synchronous>, transform_indices = @transform_5, window_bounds = array<i64: 512, 896>}, {pipeline_mode = #tpu.pipeline_mode<synchronous>, transform_indices = @transform_6, window_bounds = array<i64: 1, 896>}, {transform_indices = @transform_7, window_bounds = array<i64: 128, 896>}]} {
    %c0 = arith.constant 0 : index
    %c0_0 = arith.constant 0 : index
    %0 = vector.load %arg1[%c0, %c0_0] : memref<128x128xbf16, #tpu.memory_space<vmem>>, vector<128x128xbf16>
    %c0_1 = arith.constant 0 : index
    %c0_2 = arith.constant 0 : index
    %1 = vector.load %arg2[%c0_1, %c0_2] : memref<128x256xbf16, #tpu.memory_space<vmem>>, vector<128x256xbf16>
    %cst = arith.constant dense<0.000000e+00> : vector<128x256xf32>
    %2 = tpu.matmul %0, %1, %cst {dimension_numbers = #tpu.dot_dimension_numbers<[1], [0], [0], [1], [0, 0, 1, 1], [], []>} : vector<128x128xbf16>, vector<128x256xbf16>, vector<128x256xf32> -> vector<128x256xf32>
    %c0_3 = arith.constant 0 : index
    %c0_4 = arith.constant 0 : index
    %3 = vector.load %arg3[%c0_3, %c0_4] : memref<1x256xf32, #tpu.memory_space<vmem>>, vector<1x256xf32>
    %4 = vector.broadcast %3 : vector<1x256xf32> to vector<128x256xf32>
    %5 = arith.addf %2, %4 : vector<128x256xf32>
    %cst_5 = arith.constant 0.000000e+00 : f32
    %6 = vector.broadcast %cst_5 : f32 to vector<128x256xf32>
    %7 = arith.cmpf ogt, %5, %6 : vector<128x256xf32>
    %cst_6 = arith.constant 2.000000e-01 : f32
    %8 = vector.broadcast %cst_6 : f32 to vector<128x256xf32>
    %9 = arith.mulf %8, %5 : vector<128x256xf32>
    %10 = arith.select %7, %5, %9 : vector<128x256xi1>, vector<128x256xf32>
    %11 = arith.truncf %10 : vector<128x256xf32> to vector<128x256xbf16>
    %c0_7 = arith.constant 0 : index
    %c0_8 = arith.constant 0 : index
    %12 = vector.load %arg4[%c0_7, %c0_8] : memref<256x512xbf16, #tpu.memory_space<vmem>>, vector<256x512xbf16>
    %cst_9 = arith.constant dense<0.000000e+00> : vector<128x512xf32>
    %13 = tpu.matmul %11, %12, %cst_9 {dimension_numbers = #tpu.dot_dimension_numbers<[1], [0], [0], [1], [0, 0, 1, 1], [], []>} : vector<128x256xbf16>, vector<256x512xbf16>, vector<128x512xf32> -> vector<128x512xf32>
    %c0_10 = arith.constant 0 : index
    %c0_11 = arith.constant 0 : index
    %14 = vector.load %arg5[%c0_10, %c0_11] : memref<1x512xf32, #tpu.memory_space<vmem>>, vector<1x512xf32>
    %15 = vector.broadcast %14 : vector<1x512xf32> to vector<128x512xf32>
    %16 = arith.addf %13, %15 : vector<128x512xf32>
    %cst_12 = arith.constant 0.000000e+00 : f32
    %17 = vector.broadcast %cst_12 : f32 to vector<128x512xf32>
    %18 = arith.cmpf ogt, %16, %17 : vector<128x512xf32>
    %cst_13 = arith.constant 2.000000e-01 : f32
    %19 = vector.broadcast %cst_13 : f32 to vector<128x512xf32>
    %20 = arith.mulf %19, %16 : vector<128x512xf32>
    %21 = arith.select %18, %16, %20 : vector<128x512xi1>, vector<128x512xf32>
    %22 = arith.truncf %21 : vector<128x512xf32> to vector<128x512xbf16>
    %c0_14 = arith.constant 0 : index
    %c0_15 = arith.constant 0 : index
    %23 = vector.load %arg6[%c0_14, %c0_15] : memref<512x896xbf16, #tpu.memory_space<vmem>>, vector<512x896xbf16>
    %cst_16 = arith.constant dense<0.000000e+00> : vector<128x896xf32>
    %24 = tpu.matmul %22, %23, %cst_16 {dimension_numbers = #tpu.dot_dimension_numbers<[1], [0], [0], [1], [0, 0, 1, 1], [], []>} : vector<128x512xbf16>, vector<512x896xbf16>, vector<128x896xf32> -> vector<128x896xf32>
    %c0_17 = arith.constant 0 : index
    %c0_18 = arith.constant 0 : index
    %25 = vector.load %arg7[%c0_17, %c0_18] : memref<1x896xf32, #tpu.memory_space<vmem>>, vector<1x896xf32>
    %26 = vector.broadcast %25 : vector<1x896xf32> to vector<128x896xf32>
    %27 = arith.addf %24, %26 : vector<128x896xf32>
    %28 = math.tanh %27 : vector<128x896xf32>
    %c0_19 = arith.constant 0 : index
    %c0_20 = arith.constant 0 : index
    %29 = vector.load %arg8[%c0_19, %c0_20] : memref<128x896xf32, #tpu.memory_space<vmem>>, vector<128x896xf32>
    tpu.vector_store %arg8[%c0_19, %c0_20], %28 {strides = array<i32>} : memref<128x896xf32, #tpu.memory_space<vmem>>, vector<128x896xf32>,
    return
  }
  func.func @transform_0(%arg0: i32) -> (i32, i32) {
    %c0_i32 = arith.constant 0 : i32
    %c0_i32_0 = arith.constant 0 : i32
    return %arg0, %c0_i32 : i32, i32
  }
  func.func @transform_1(%arg0: i32) -> (i32, i32) {
    %c0_i32 = arith.constant 0 : i32
    %c0_i32_0 = arith.constant 0 : i32
    %c0_i32_1 = arith.constant 0 : i32
    return %c0_i32, %c0_i32_0 : i32, i32
  }
  func.func @transform_2(%arg0: i32) -> (i32, i32) {
    %c0_i32 = arith.constant 0 : i32
    %c0_i32_0 = arith.constant 0 : i32
    %c0_i32_1 = arith.constant 0 : i32
    return %c0_i32, %c0_i32_0 : i32, i32
  }
  func.func @transform_3(%arg0: i32) -> (i32, i32) {
    %c0_i32 = arith.constant 0 : i32
    %c0_i32_0 = arith.constant 0 : i32
    %c0_i32_1 = arith.constant 0 : i32
    return %c0_i32, %c0_i32_0 : i32, i32
  }
  func.func @transform_4(%arg0: i32) -> (i32, i32) {
    %c0_i32 = arith.constant 0 : i32
    %c0_i32_0 = arith.constant 0 : i32
    %c0_i32_1 = arith.constant 0 : i32
    return %c0_i32, %c0_i32_0 : i32, i32
  }
  func.func @transform_5(%arg0: i32) -> (i32, i32) {
    %c0_i32 = arith.constant 0 : i32
    %c0_i32_0 = arith.constant 0 : i32
    %c0_i32_1 = arith.constant 0 : i32
    return %c0_i32, %c0_i32_0 : i32, i32
  }
  func.func @transform_6(%arg0: i32) -> (i32, i32) {
    %c0_i32 = arith.constant 0 : i32
    %c0_i32_0 = arith.constant 0 : i32
    %c0_i32_1 = arith.constant 0 : i32
    return %c0_i32, %c0_i32_0 : i32, i32
  }
  func.func @transform_7(%arg0: i32) -> (i32, i32) {
    %c0_i32 = arith.constant 0 : i32
    %c0_i32_0 = arith.constant 0 : i32
    return %arg0, %c0_i32 : i32, i32
  }
}

</mosaic_0001>

<llo_original>
// kernel: tpu_custom_call.1
$region0: #{tpu_custom_call.1}
  #allocation0 [shape = 'u32[]', space=smem, size = 0x4, offset = 0x4, fixed_abs, tag = 'smem constant byte address 0x4 - core index']
  #allocation1 [shape = 'u32[72,128]{1,0:T(1,128)}', space=vmem, size = 0x9000, scoped, tag = 'internal scratch']
  %s0 = inlined_call_operand.hbm [shape: bf16[256,128], index: 0, kind: input, shape index: {}]
  %s1 = inlined_call_operand.hbm [shape: bf16[128,256], index: 1, kind: input, shape index: {}]
  %s2 = inlined_call_operand.hbm [shape: f32[1,256], index: 2, kind: input, shape index: {}]
  %s3 = inlined_call_operand.hbm [shape: bf16[256,512], index: 3, kind: input, shape index: {}]
  %s4 = inlined_call_operand.hbm [shape: f32[1,512], index: 4, kind: input, shape index: {}]
  %s5 = inlined_call_operand.hbm [shape: bf16[512,896], index: 5, kind: input, shape index: {}]
  %s6 = inlined_call_operand.hbm [shape: f32[1,896], index: 6, kind: input, shape index: {}]
  %s7 = inlined_call_operand.hbm [shape: f32[256,896], index: 7, kind: output, shape index: {}]
  %s8 = sld [smem:[#allocation0]]
  $region89: #{tpu_custom_call.1} parent=0
    _
  %s10 = ssub.s32 1, %s8
  %s11 = scalar_select 0, %s10, %s8
  $region1: #{tpu_custom_call.1} parent=0
    #allocation2 [shape = 'u8[65536]{0}', space=vmem, size = 0x10000, scoped, tag = 'input window, operand 0']
    #allocation3 [shape = 's32[2]{0}', space=sflag, size = 0x8, scoped, tag = 'scoped memory for tpu_custom_call.1']
    #allocation4 [shape = 's32[2]{0}', space=sflag, size = 0x8, scoped, tag = 'scoped memory for tpu_custom_call.1']
    #allocation5 [shape = 'u8[65536]{0}', space=vmem, size = 0x10000, scoped, tag = 'input window, operand 1, single buffered']
    #allocation6 [shape = 's32[1]{0}', space=sflag, size = 0x4, scoped, tag = 'scoped memory for tpu_custom_call.1']
    #allocation7 [shape = 'u8[1024]{0}', space=vmem, size = 0x400, scoped, tag = 'input window, operand 2, single buffered']
    #allocation8 [shape = 'u8[262144]{0}', space=vmem, size = 0x40000, scoped, tag = 'input window, operand 3, single buffered']
    #allocation9 [shape = 's32[1]{0}', space=sflag, size = 0x4, scoped, tag = 'scoped memory for tpu_custom_call.1']
    #allocation10 [shape = 'u8[2048]{0}', space=vmem, size = 0x800, scoped, tag = 'input window, operand 4, single buffered']
    #allocation11 [shape = 'u8[917504]{0}', space=vmem, size = 0xe0000, scoped, tag = 'input window, operand 5, single buffered']
    #allocation12 [shape = 's32[1]{0}', space=sflag, size = 0x4, scoped, tag = 'scoped memory for tpu_custom_call.1']
    #allocation13 [shape = 'u8[3584]{0}', space=vmem, size = 0x1000, scoped, tag = 'input window, operand 6, single buffered']
    #allocation14 [shape = 'u8[917504]{0}', space=vmem, size = 0xe0000, scoped, tag = 'output window, operand 0']
    %12 = vsyncpa [#allocation3], 0
    %s13 = scalar_lea.sflag [#allocation3], 1
    %14 = vsyncpa %s13, 0
    %15 = vsyncpa [#allocation6], 0
    %16 = vsyncpa [#allocation9], 0
    %17 = vsyncpa [#allocation12], 0
    %18 = vsyncpa [#allocation4], 0
    %s19 = scalar_lea.sflag [#allocation4], 1
    %20 = vsyncpa %s19, 0
    loop: start=0, step=1, limit=4
    $region2: #{tpu_custom_call.1} parent=1 // loop_pre_header
      _
    $region3: #{tpu_custom_call.1} parent=1 // loop_header
      %s22 = sphi 0, %s26
      %p23 = scmp.ge.s32.totalorder %s22, 4
      %s32 = sphi 0, %s34
      %s35 = sphi 0, %s32
      %s36 = sphi 0, %s35
      %s52 = sphi 0, %s36
      %s56 = sphi 0, %s56
      %s58 = sphi 0, %s56
      %s59 = sphi 0, %s58
      %s73 = sphi 0, %s59
      %s77 = sphi 0, %s77
      %s79 = sphi 0, %s77
      %s80 = sphi 0, %s79
      %s94 = sphi 0, %s80
      %s98 = sphi 0, %s98
      %s100 = sphi 0, %s98
      %s101 = sphi 0, %s100
      %s115 = sphi 0, %s101
      %s119 = sphi 0, %s119
      %s121 = sphi 0, %s119
      %s122 = sphi 0, %s121
      %s136 = sphi 0, %s122
      %s140 = sphi 0, %s140
      %s142 = sphi 0, %s140
      %s143 = sphi 0, %s142
      %s157 = sphi 0, %s143
      %s161 = sphi 0, %s161
      %s163 = sphi 0, %s161
      %s164 = sphi 0, %s163
      %s178 = sphi 0, %s164
      %s184 = sphi 0, %s186
      %s187 = sphi 0, %s184
      %s188 = sphi 0, %s187
      %s204 = sphi 0, %s188
    $region4: #{tpu_custom_call.1} parent=1 // loop_header_branch
      %25 = sbr.rel (%p23) target = $region8
    $region5: #{tpu_custom_call.1} parent=1 // loop_body
      %s27 = ssub.s32 %s22, 1
      %s28 = ssub.s32 %s22, 2
      %s29 = sadd.s32 %s22, 1
      %s30 = ssub.s32 %s22, %s29
      %p31 = scmp.eq.s32.totalorder %s30, 0
      %s33 = sadd.s32 %s32, 1
      %s34 = scalar_select %p31, %s32, %s33
      %p37 = pneg %p31
      %p38 = scmp.eq.s32.totalorder %s22, 1
      %p39 = por %p37, %p38
      %p40 = scmp.ne.s32.totalorder %s32, %s35
      %p41 = scmp.eq.s32.totalorder %s22, 0
      %p42 = por %p40, %p41
      %p43 = scmp.ne.s32.totalorder %s32, %s35
      %p44 = scmp.eq.s32.totalorder %s27, 1
      %p45 = por %p43, %p44
      %p46 = scmp.ne.s32.totalorder %s35, %s36
      %p47 = scmp.eq.s32.totalorder %s27, 0
      %p48 = por %p46, %p47
      %p49 = scmp.ne.s32.totalorder %s35, %s36
      %p50 = scmp.eq.s32.totalorder %s28, 1
      %p51 = por %p49, %p50
      %p53 = scmp.ne.s32.totalorder %s36, %s52
      %p54 = scmp.eq.s32.totalorder %s28, 0
      %p55 = por %p53, %p54
      %s57 = sadd.s32 %s56, 1
      %p60 = scmp.eq.s32.totalorder %s22, 1
      %p61 = scmp.ne.s32.totalorder %s56, %s58
      %p62 = scmp.eq.s32.totalorder %s22, 0
      %p63 = por %p61, %p62
      %p64 = scmp.ne.s32.totalorder %s56, %s58
      %p65 = scmp.eq.s32.totalorder %s27, 1
      %p66 = por %p64, %p65
      %p67 = scmp.ne.s32.totalorder %s58, %s59
      %p68 = scmp.eq.s32.totalorder %s27, 0
      %p69 = por %p67, %p68
      %p70 = scmp.ne.s32.totalorder %s58, %s59
      %p71 = scmp.eq.s32.totalorder %s28, 1
      %p72 = por %p70, %p71
      %p74 = scmp.ne.s32.totalorder %s59, %s73
      %p75 = scmp.eq.s32.totalorder %s28, 0
      %p76 = por %p74, %p75
      %s78 = sadd.s32 %s77, 1
      %p81 = scmp.eq.s32.totalorder %s22, 1
      %p82 = scmp.ne.s32.totalorder %s77, %s79
      %p83 = scmp.eq.s32.totalorder %s22, 0
      %p84 = por %p82, %p83
      %p85 = scmp.ne.s32.totalorder %s77, %s79
      %p86 = scmp.eq.s32.totalorder %s27, 1
      %p87 = por %p85, %p86
      %p88 = scmp.ne.s32.totalorder %s79, %s80
      %p89 = scmp.eq.s32.totalorder %s27, 0
      %p90 = por %p88, %p89
      %p91 = scmp.ne.s32.totalorder %s79, %s80
      %p92 = scmp.eq.s32.totalorder %s28, 1
      %p93 = por %p91, %p92
      %p95 = scmp.ne.s32.totalorder %s80, %s94
      %p96 = scmp.eq.s32.totalorder %s28, 0
      %p97 = por %p95, %p96
      %s99 = sadd.s32 %s98, 1
      %p102 = scmp.eq.s32.totalorder %s22, 1
      %p103 = scmp.ne.s32.totalorder %s98, %s100
      %p104 = scmp.eq.s32.totalorder %s22, 0
      %p105 = por %p103, %p104
      %p106 = scmp.ne.s32.totalorder %s98, %s100
      %p107 = scmp.eq.s32.totalorder %s27, 1
      %p108 = por %p106, %p107
      %p109 = scmp.ne.s32.totalorder %s100, %s101
      %p110 = scmp.eq.s32.totalorder %s27, 0
      %p111 = por %p109, %p110
      %p112 = scmp.ne.s32.totalorder %s100, %s101
      %p113 = scmp.eq.s32.totalorder %s28, 1
      %p114 = por %p112, %p113
      %p116 = scmp.ne.s32.totalorder %s101, %s115
      %p117 = scmp.eq.s32.totalorder %s28, 0
      %p118 = por %p116, %p117
      %s120 = sadd.s32 %s119, 1
      %p123 = scmp.eq.s32.totalorder %s22, 1
      %p124 = scmp.ne.s32.totalorder %s119, %s121
      %p125 = scmp.eq.s32.totalorder %s22, 0
      %p126 = por %p124, %p125
      %p127 = scmp.ne.s32.totalorder %s119, %s121
      %p128 = scmp.eq.s32.totalorder %s27, 1
      %p129 = por %p127, %p128
      %p130 = scmp.ne.s32.totalorder %s121, %s122
      %p131 = scmp.eq.s32.totalorder %s27, 0
      %p132 = por %p130, %p131
      %p133 = scmp.ne.s32.totalorder %s121, %s122
      %p134 = scmp.eq.s32.totalorder %s28, 1
      %p135 = por %p133, %p134
      %p137 = scmp.ne.s32.totalorder %s122, %s136
      %p138 = scmp.eq.s32.totalorder %s28, 0
      %p139 = por %p137, %p138
      %s141 = sadd.s32 %s140, 1
      %p144 = scmp.eq.s32.totalorder %s22, 1
      %p145 = scmp.ne.s32.totalorder %s140, %s142
      %p146 = scmp.eq.s32.totalorder %s22, 0
      %p147 = por %p145, %p146
      %p148 = scmp.ne.s32.totalorder %s140, %s142
      %p149 = scmp.eq.s32.totalorder %s27, 1
      %p150 = por %p148, %p149
      %p151 = scmp.ne.s32.totalorder %s142, %s143
      %p152 = scmp.eq.s32.totalorder %s27, 0
      %p153 = por %p151, %p152
      %p154 = scmp.ne.s32.totalorder %s142, %s143
      %p155 = scmp.eq.s32.totalorder %s28, 1
      %p156 = por %p154, %p155
      %p158 = scmp.ne.s32.totalorder %s143, %s157
      %p159 = scmp.eq.s32.totalorder %s28, 0
      %p160 = por %p158, %p159
      %s162 = sadd.s32 %s161, 1
      %p165 = scmp.eq.s32.totalorder %s22, 1
      %p166 = scmp.ne.s32.totalorder %s161, %s163
      %p167 = scmp.eq.s32.totalorder %s22, 0
      %p168 = por %p166, %p167
      %p169 = scmp.ne.s32.totalorder %s161, %s163
      %p170 = scmp.eq.s32.totalorder %s27, 1
      %p171 = por %p169, %p170
      %p172 = scmp.ne.s32.totalorder %s163, %s164
      %p173 = scmp.eq.s32.totalorder %s27, 0
      %p174 = por %p172, %p173
      %p175 = scmp.ne.s32.totalorder %s163, %s164
      %p176 = scmp.eq.s32.totalorder %s28, 1
      %p177 = por %p175, %p176
      %p179 = scmp.ne.s32.totalorder %s164, %s178
      %p180 = scmp.eq.s32.totalorder %s28, 0
      %p181 = por %p179, %p180
      %s182 = ssub.s32 %s22, %s29
      %p183 = scmp.eq.s32.totalorder %s182, 0
      %s185 = sadd.s32 %s184, 1
      %s186 = scalar_select %p183, %s184, %s185
      %p189 = pneg %p183
      %p190 = scmp.eq.s32.totalorder %s22, 1
      %p191 = por %p189, %p190
      %p192 = scmp.ne.s32.totalorder %s184, %s187
      %p193 = scmp.eq.s32.totalorder %s22, 0
      %p194 = por %p192, %p193
      %p195 = scmp.ne.s32.totalorder %s184, %s187
      %p196 = scmp.eq.s32.totalorder %s27, 1
      %p197 = por %p195, %p196
      %p198 = scmp.ne.s32.totalorder %s187, %s188
      %p199 = scmp.eq.s32.totalorder %s27, 0
      %p200 = por %p198, %p199
      %p201 = scmp.ne.s32.totalorder %s187, %s188
      %p202 = scmp.eq.s32.totalorder %s28, 1
      %p203 = por %p201, %p202
      %p205 = scmp.ne.s32.totalorder %s188, %s204
      %p206 = scmp.eq.s32.totalorder %s28, 0
      %p207 = por %p205, %p206
      %p208 = scmp.le.s32.totalorder 1, %s22
      %p209 = scmp.lt.s32.totalorder %s22, 3
      %p210 = pnand %p208, %p209
      %p211 = pneg %p210
      // Predicated region
      $region9: #{tpu_custom_call.1} parent=5 // pred_check
        _
      $region10: #{tpu_custom_call.1} parent=5 // pred_check_branch
        %213 = sbr.rel (%p210) target = $region12
      $region11: #{tpu_custom_call.1} parent=5 // pred_region
        %s214 = ssub.s32 %s22, 1
        // Predicated region
        $region13: #{tpu_custom_call.1} parent=11 // pred_check
          %p215 = pneg %p69
        $region14: #{tpu_custom_call.1} parent=11 // pred_check_branch
          %217 = sbr.rel (%p215) target = $region16
        $region15: #{tpu_custom_call.1} parent=11 // pred_region
          %219 = vsyncadd [#allocation6], 0
          %s220 = sshll.u32 %s1, 4
          %s221 = int_to_ptr.hbm [resolvable:$true] %s220
          %s222 = sshll.u32 [#allocation5], 4
          %s223 = int_to_ptr.vmem [resolvable:$true] %s222
          %228 = dma.hbm_to_vmem [thread:$0]  %s221, 2048, %s223, [#allocation6], 128, 128, 8
        $region16: #{tpu_custom_call.1} parent=11 // pred_fallthru
          _
        // Predicated region
        $region17: #{tpu_custom_call.1} parent=11 // pred_check
          %p229 = pneg %p90
        $region18: #{tpu_custom_call.1} parent=11 // pred_check_branch
          %231 = sbr.rel (%p229) target = $region20
        $region19: #{tpu_custom_call.1} parent=11 // pred_region
          %233 = vsyncadd [#allocation6], 0
          %s235 = sshll.u32 %s2, 4
          %s236 = int_to_ptr.hbm [resolvable:$true] %s235
          %s237 = sshll.u32 [#allocation7], 4
          %s238 = int_to_ptr.vmem [resolvable:$true] %s237
          %240 = dma.hbm_to_vmem [thread:$0]  %s236, 32, %s238, [#allocation6]
        $region20: #{tpu_custom_call.1} parent=11 // pred_fallthru
          _
        // Predicated region
        $region21: #{tpu_custom_call.1} parent=11 // pred_check
          %p241 = pneg %p111
        $region22: #{tpu_custom_call.1} parent=11 // pred_check_branch
          %243 = sbr.rel (%p241) target = $region24
        $region23: #{tpu_custom_call.1} parent=11 // pred_region
          %245 = vsyncadd [#allocation9], 0
          %s246 = sshll.u32 %s3, 4
          %s247 = int_to_ptr.hbm [resolvable:$true] %s246
          %s248 = sshll.u32 [#allocation8], 4
          %s249 = int_to_ptr.vmem [resolvable:$true] %s248
          %254 = dma.hbm_to_vmem [thread:$0]  %s247, 8192, %s249, [#allocation9], 256, 256, 16
        $region24: #{tpu_custom_call.1} parent=11 // pred_fallthru
          _
        // Predicated region
        $region25: #{tpu_custom_call.1} parent=11 // pred_check
          %p255 = pneg %p132
        $region26: #{tpu_custom_call.1} parent=11 // pred_check_branch
          %257 = sbr.rel (%p255) target = $region28
        $region27: #{tpu_custom_call.1} parent=11 // pred_region
          %259 = vsyncadd [#allocation9], 0
          %s261 = sshll.u32 %s4, 4
          %s262 = int_to_ptr.hbm [resolvable:$true] %s261
          %s263 = sshll.u32 [#allocation10], 4
          %s264 = int_to_ptr.vmem [resolvable:$true] %s263
          %266 = dma.hbm_to_vmem [thread:$0]  %s262, 64, %s264, [#allocation9]
        $region28: #{tpu_custom_call.1} parent=11 // pred_fallthru
          _
        // Predicated region
        $region29: #{tpu_custom_call.1} parent=11 // pred_check
          %p267 = pneg %p153
        $region30: #{tpu_custom_call.1} parent=11 // pred_check_branch
          %269 = sbr.rel (%p267) target = $region32
        $region31: #{tpu_custom_call.1} parent=11 // pred_region
          %271 = vsyncadd [#allocation12], 0
          %s272 = sshll.u32 %s5, 4
          %s273 = int_to_ptr.hbm [resolvable:$true] %s272
          %s274 = sshll.u32 [#allocation11], 4
          %s275 = int_to_ptr.vmem [resolvable:$true] %s274
          %280 = dma.hbm_to_vmem [thread:$0]  %s273, 28672, %s275, [#allocation12], 448, 448, 28
        $region32: #{tpu_custom_call.1} parent=11 // pred_fallthru
          _
        // Predicated region
        $region33: #{tpu_custom_call.1} parent=11 // pred_check
          %p281 = pneg %p174
        $region34: #{tpu_custom_call.1} parent=11 // pred_check_branch
          %283 = sbr.rel (%p281) target = $region36
        $region35: #{tpu_custom_call.1} parent=11 // pred_region
          %285 = vsyncadd [#allocation12], 0
          %s287 = sshll.u32 %s6, 4
          %s288 = int_to_ptr.hbm [resolvable:$true] %s287
          %s289 = sshll.u32 [#allocation13], 4
          %s290 = int_to_ptr.vmem [resolvable:$true] %s289
          %292 = dma.hbm_to_vmem [thread:$0]  %s288, 112, %s290, [#allocation12]
        $region36: #{tpu_custom_call.1} parent=11 // pred_fallthru
          _
      $region12: #{tpu_custom_call.1} parent=5 // pred_fallthru
        _
      %p293 = scmp.lt.s32.totalorder %s22, 2
      // Predicated region
      $region37: #{tpu_custom_call.1} parent=5 // pred_check
        %p294 = pneg %p293
      $region38: #{tpu_custom_call.1} parent=5 // pred_check_branch
        %296 = sbr.rel (%p294) target = $region40
      $region39: #{tpu_custom_call.1} parent=5 // pred_region
        // Predicated region
        $region41: #{tpu_custom_call.1} parent=39 // pred_check
          %p297 = pneg %p42
        $region42: #{tpu_custom_call.1} parent=39 // pred_check_branch
          %299 = sbr.rel (%p297) target = $region44
        $region43: #{tpu_custom_call.1} parent=39 // pred_region
          %s300 = sand.u32 %s32, 1
          %s301 = scalar_lea.sflag [#allocation3], %s300
          %s302 = sand.u32 %s32, 1
          %s303 = smul.addr %s302, 64
          %s304 = scalar_lea.vmem [#allocation2], %s303
          %s305 = smul.u32 16, %s22
          %307 = vsyncadd %s301, 0
          %s308 = smul.addr %s305, 4
          %s309 = scalar_lea.hbm %s0, %s308
          %s310 = sshll.u32 %s309, 4
          %s311 = int_to_ptr.hbm [resolvable:$true] %s310
          %s312 = sshll.u32 %s304, 4
          %s313 = int_to_ptr.vmem [resolvable:$true] %s312
          %318 = dma.hbm_to_vmem [thread:$0]  %s311, 1024, %s313, %s301, 64, 64, 4
        $region44: #{tpu_custom_call.1} parent=39 // pred_fallthru
          _
      $region40: #{tpu_custom_call.1} parent=5 // pred_fallthru
        _
      %p319 = scmp.le.s32.totalorder 1, %s22
      %p320 = scmp.lt.s32.totalorder %s22, 3
      %p321 = pnand %p319, %p320
      %p322 = pneg %p321
      // Predicated region
      $region45: #{tpu_custom_call.1} parent=5 // pred_check
        _
      $region46: #{tpu_custom_call.1} parent=5 // pred_check_branch
        %324 = sbr.rel (%p321) target = $region48
      $region47: #{tpu_custom_call.1} parent=5 // pred_region
        %s325 = ssub.s32 %s22, 1
        %s326 = sand.u32 %s35, 1
        %s327 = scalar_lea.sflag [#allocation3], %s326
        %s328 = sand.u32 %s35, 1
        %s329 = smul.addr %s328, 64
        %s330 = scalar_lea.vmem [#allocation2], %s329
        // Predicated region
        $region49: #{tpu_custom_call.1} parent=47 // pred_check
          %p331 = pneg %p48
        $region50: #{tpu_custom_call.1} parent=47 // pred_check_branch
          %333 = sbr.rel (%p331) target = $region52
        $region51: #{tpu_custom_call.1} parent=47 // pred_region
          %335 = dma.done %s327, 1024
        $region52: #{tpu_custom_call.1} parent=47 // pred_fallthru
          _
        // Predicated region
        $region53: #{tpu_custom_call.1} parent=47 // pred_check
          %p336 = pneg %p69
        $region54: #{tpu_custom_call.1} parent=47 // pred_check_branch
          %338 = sbr.rel (%p336) target = $region56
        $region55: #{tpu_custom_call.1} parent=47 // pred_region
          %340 = dma.done [#allocation6], 2048
        $region56: #{tpu_custom_call.1} parent=47 // pred_fallthru
          _
        // Predicated region
        $region57: #{tpu_custom_call.1} parent=47 // pred_check
          %p341 = pneg %p90
        $region58: #{tpu_custom_call.1} parent=47 // pred_check_branch
          %343 = sbr.rel (%p341) target = $region60
        $region59: #{tpu_custom_call.1} parent=47 // pred_region
          %345 = dma.done [#allocation6], 32
        $region60: #{tpu_custom_call.1} parent=47 // pred_fallthru
          _
        // Predicated region
        $region61: #{tpu_custom_call.1} parent=47 // pred_check
          %p346 = pneg %p111
        $region62: #{tpu_custom_call.1} parent=47 // pred_check_branch
          %348 = sbr.rel (%p346) target = $region64
        $region63: #{tpu_custom_call.1} parent=47 // pred_region
          %350 = dma.done [#allocation9], 8192
        $region64: #{tpu_custom_call.1} parent=47 // pred_fallthru
          _
        // Predicated region
        $region65: #{tpu_custom_call.1} parent=47 // pred_check
          %p351 = pneg %p132
        $region66: #{tpu_custom_call.1} parent=47 // pred_check_branch
          %353 = sbr.rel (%p351) target = $region68
        $region67: #{tpu_custom_call.1} parent=47 // pred_region
          %355 = dma.done [#allocation9], 64
        $region68: #{tpu_custom_call.1} parent=47 // pred_fallthru
          _
        // Predicated region
        $region69: #{tpu_custom_call.1} parent=47 // pred_check
          %p356 = pneg %p153
        $region70: #{tpu_custom_call.1} parent=47 // pred_check_branch
          %358 = sbr.rel (%p356) target = $region72
        $region71: #{tpu_custom_call.1} parent=47 // pred_region
          %360 = dma.done [#allocation12], 28672
        $region72: #{tpu_custom_call.1} parent=47 // pred_fallthru
          _
        // Predicated region
        $region73: #{tpu_custom_call.1} parent=47 // pred_check
          %p361 = pneg %p174
        $region74: #{tpu_custom_call.1} parent=47 // pred_check_branch
          %363 = sbr.rel (%p361) target = $region76
        $region75: #{tpu_custom_call.1} parent=47 // pred_region
          %365 = dma.done [#allocation12], 112
        $region76: #{tpu_custom_call.1} parent=47 // pred_fallthru
          _
        %s366 = sand.u32 %s35, 1
        %s367 = scalar_lea.sflag [#allocation3], %s366
        %s368 = sand.u32 %s35, 1
        %s369 = smul.addr %s368, 64
        %s370 = scalar_lea.vmem [#allocation2], %s369
        %p371 = pneg %p48
        %p372 = pneg %p45
        %p373 = pneg %p69
        %p374 = pneg %p66
        %p375 = pneg %p90
        %p376 = pneg %p87
        %p377 = pneg %p111
        %p378 = pneg %p108
        %p379 = pneg %p132
        %p380 = pneg %p129
        %p381 = pneg %p153
        %p382 = pneg %p150
        %p383 = pneg %p174
        %p384 = pneg %p171
        %p385 = pneg %p200
        %p386 = pneg %p197
        %s387 = sand.u32 %s187, 1
        %s388 = scalar_lea.sflag [#allocation4], %s387
        %s389 = sand.u32 %s187, 1
        %s390 = smul.addr %s389, 896
        %s391 = scalar_lea.vmem [#allocation14], %s390
        %s392 = smul.u32 16, %s27
        %s393 = smul.u32 16, %s27
        %v394 = vld [vmem:[%s330] sm:$0xf]
        %v395 = vld [vmem:[%s330 + $0x4] sm:$0xf]
        %v396 = vld [vmem:[%s330 + $0x8] sm:$0xf]
        %v397 = vld [vmem:[%s330 + $0xc] sm:$0xf]
        %v398 = vld [vmem:[%s330 + $0x10] sm:$0xf]
        %v399 = vld [vmem:[%s330 + $0x14] sm:$0xf]
        %v400 = vld [vmem:[%s330 + $0x18] sm:$0xf]
        %v401 = vld [vmem:[%s330 + $0x1c] sm:$0xf]
        %v402 = vld [vmem:[%s330 + $0x20] sm:$0xf]
        %v403 = vld [vmem:[%s330 + $0x24] sm:$0xf]
        %v404 = vld [vmem:[%s330 + $0x28] sm:$0xf]
        %v405 = vld [vmem:[%s330 + $0x2c] sm:$0xf]
        %v406 = vld [vmem:[%s330 + $0x30] sm:$0xf]
        %v407 = vld [vmem:[%s330 + $0x34] sm:$0xf]
        %v408 = vld [vmem:[%s330 + $0x38] sm:$0xf]
        %v409 = vld [vmem:[%s330 + $0x3c] sm:$0xf]
        %v410 = vld [vmem:[#allocation5] sm:$0xff]
        %v411 = vld [vmem:[#allocation5 + $0x8] sm:$0xff]
        %v412 = vld [vmem:[#allocation5 + $0x10] sm:$0xff]
        %v413 = vld [vmem:[#allocation5 + $0x18] sm:$0xff]
        %v414 = vld [vmem:[#allocation5 + $0x20] sm:$0xff]
        %v415 = vld [vmem:[#allocation5 + $0x28] sm:$0xff]
        %v416 = vld [vmem:[#allocation5 + $0x30] sm:$0xff]
        %v417 = vld [vmem:[#allocation5 + $0x38] sm:$0xff]
        %v418 = vld [vmem:[#allocation5 + $0x40] sm:$0xff]
        %v419 = vld [vmem:[#allocation5 + $0x48] sm:$0xff]
        %v420 = vld [vmem:[#allocation5 + $0x50] sm:$0xff]
        %v421 = vld [vmem:[#allocation5 + $0x58] sm:$0xff]
        %v422 = vld [vmem:[#allocation5 + $0x60] sm:$0xff]
        %v423 = vld [vmem:[#allocation5 + $0x68] sm:$0xff]
        %v424 = vld [vmem:[#allocation5 + $0x70] sm:$0xff]
        %v425 = vld [vmem:[#allocation5 + $0x78] sm:$0xff]
        %v426 = vld [vmem:[#allocation7] sm:$0x3]
        %v428 = vperm.slane %v426, 0
        %v429 = vperm.slane %v426, 1
        %v448 = vunpack.c.l.b16 %v394
        %v449 = vunpack.c.l.b16 %v395
        %v450 = vunpack.c.l.b16 %v396
        %v451 = vunpack.c.l.b16 %v397
        %v452 = vunpack.c.l.b16 %v398
        %v453 = vunpack.c.l.b16 %v399
        %v454 = vunpack.c.l.b16 %v400
        %v455 = vunpack.c.l.b16 %v401
        %v456 = vunpack.c.l.b16 %v402
        %v457 = vunpack.c.l.b16 %v403
        %v458 = vunpack.c.l.b16 %v404
        %v459 = vunpack.c.l.b16 %v405
        %v460 = vunpack.c.l.b16 %v406
        %v461 = vunpack.c.l.b16 %v407
        %v462 = vunpack.c.l.b16 %v408
        %v463 = vunpack.c.l.b16 %v409
        %v464 = vpack.c.b16 %v449, %v448
        %v465 = vpack.c.b16 %v451, %v450
        %v466 = vpack.c.b16 %v453, %v452
        %v467 = vpack.c.b16 %v455, %v454
        %v468 = vpack.c.b16 %v457, %v456
        %v469 = vpack.c.b16 %v459, %v458
        %v470 = vpack.c.b16 %v461, %v460
        %v471 = vpack.c.b16 %v463, %v462
        %v496 = vunpack.c.l.b16 %v410
        %v497 = vunpack.c.h.b16 %v410
        %v498 = vunpack.c.l.b16 %v411
        %v499 = vunpack.c.h.b16 %v411
        %v500 = vunpack.c.l.b16 %v412
        %v501 = vunpack.c.h.b16 %v412
        %v502 = vunpack.c.l.b16 %v413
        %v503 = vunpack.c.h.b16 %v413
        %v504 = vunpack.c.l.b16 %v414
        %v505 = vunpack.c.h.b16 %v414
        %v506 = vunpack.c.l.b16 %v415
        %v507 = vunpack.c.h.b16 %v415
        %v508 = vunpack.c.l.b16 %v416
        %v509 = vunpack.c.h.b16 %v416
        %v510 = vunpack.c.l.b16 %v417
        %v511 = vunpack.c.h.b16 %v417
        %v512 = vunpack.c.l.b16 %v418
        %v513 = vunpack.c.h.b16 %v418
        %v514 = vunpack.c.l.b16 %v419
        %v515 = vunpack.c.h.b16 %v419
        %v516 = vunpack.c.l.b16 %v420
        %v517 = vunpack.c.h.b16 %v420
        %v518 = vunpack.c.l.b16 %v421
        %v519 = vunpack.c.h.b16 %v421
        %v520 = vunpack.c.l.b16 %v422
        %v521 = vunpack.c.h.b16 %v422
        %v522 = vunpack.c.l.b16 %v423
        %v523 = vunpack.c.h.b16 %v423
        %v524 = vunpack.c.l.b16 %v424
        %v525 = vunpack.c.h.b16 %v424
        %v526 = vunpack.c.l.b16 %v425
        %v527 = vunpack.c.h.b16 %v425
        %v528 = vpack.c.b16 %v498, %v496
        %v529 = vpack.c.b16 %v499, %v497
        %v530 = vpack.c.b16 %v502, %v500
        %v531 = vpack.c.b16 %v503, %v501
        %v532 = vpack.c.b16 %v506, %v504
        %v533 = vpack.c.b16 %v507, %v505
        %v534 = vpack.c.b16 %v510, %v508
        %v535 = vpack.c.b16 %v511, %v509
        %v536 = vpack.c.b16 %v514, %v512
        %v537 = vpack.c.b16 %v515, %v513
        %v538 = vpack.c.b16 %v518, %v516
        %v539 = vpack.c.b16 %v519, %v517
        %v540 = vpack.c.b16 %v522, %v520
        %v541 = vpack.c.b16 %v523, %v521
        %v542 = vpack.c.b16 %v526, %v524
        %v543 = vpack.c.b16 %v527, %v525
        %560 = vmatpush.bf16.msra.mxu0 %v542
        %561 = vmatpush.bf16.msra.mxu0 %v540
        %562 = vmatpush.bf16.msra.mxu0 %v538
        %563 = vmatpush.bf16.msra.mxu0 %v536
        %564 = vmatpush.bf16.msra.mxu0 %v534
        %565 = vmatpush.bf16.msra.mxu0 %v532
        %566 = vmatpush.bf16.msra.mxu0 %v530
        %567 = vmatpush.bf16.msra.mxu0 %v528
        %568 = vmatmul.bf16.gmra.mxu0 %v464
        %v569 = vpop.f32.mrf.mxu0
        %v570 = vadd.f32 %v428, %v569
        %v571 = vpop.f32.mrf.mxu0
        %v572 = vadd.f32 %v428, %v571
        %573 = vmatmul.bf16.gmra.mxu0 %v465
        %v574 = vpop.f32.mrf.mxu0
        %v575 = vadd.f32 %v428, %v574
        %v576 = vpop.f32.mrf.mxu0
        %v577 = vadd.f32 %v428, %v576
        %578 = vmatmul.bf16.gmra.mxu0 %v466
        %v579 = vpop.f32.mrf.mxu0
        %v580 = vadd.f32 %v428, %v579
        %v581 = vpop.f32.mrf.mxu0
        %v582 = vadd.f32 %v428, %v581
        %583 = vmatmul.bf16.gmra.mxu0 %v467
        %v584 = vpop.f32.mrf.mxu0
        %v585 = vadd.f32 %v428, %v584
        %v586 = vpop.f32.mrf.mxu0
        %v587 = vadd.f32 %v428, %v586
        %588 = vmatmul.bf16.gmra.mxu0 %v468
        %v589 = vpop.f32.mrf.mxu0
        %v590 = vadd.f32 %v428, %v589
        %v591 = vpop.f32.mrf.mxu0
        %v592 = vadd.f32 %v428, %v591
        %593 = vmatmul.bf16.gmra.mxu0 %v469
        %v594 = vpop.f32.mrf.mxu0
        %v595 = vadd.f32 %v428, %v594
        %v596 = vpop.f32.mrf.mxu0
        %v597 = vadd.f32 %v428, %v596
        %598 = vmatmul.bf16.gmra.mxu0 %v470
        %v599 = vpop.f32.mrf.mxu0
        %v600 = vadd.f32 %v428, %v599
        %v601 = vpop.f32.mrf.mxu0
        %v602 = vadd.f32 %v428, %v601
        %603 = vmatmul.bf16.gmra.mxu0 %v471
        %v604 = vpop.f32.mrf.mxu0
        %v605 = vadd.f32 %v428, %v604
        %v606 = vpop.f32.mrf.mxu0
        %v607 = vadd.f32 %v428, %v606
        %608 = vdwg.mxu0
        %609 = vmatpush.bf16.msra.mxu0 %v543
        %610 = vmatpush.bf16.msra.mxu0 %v541
        %611 = vmatpush.bf16.msra.mxu0 %v539
        %612 = vmatpush.bf16.msra.mxu0 %v537
        %613 = vmatpush.bf16.msra.mxu0 %v535
        %614 = vmatpush.bf16.msra.mxu0 %v533
        %615 = vmatpush.bf16.msra.mxu0 %v531
        %616 = vmatpush.bf16.msra.mxu0 %v529
        %617 = vmatmul.bf16.gmra.mxu0 %v464
        %v618 = vpop.f32.mrf.mxu0
        %v619 = vadd.f32 %v429, %v618
        %v620 = vpop.f32.mrf.mxu0
        %v621 = vadd.f32 %v429, %v620
        %622 = vmatmul.bf16.gmra.mxu0 %v465
        %v623 = vpop.f32.mrf.mxu0
        %v624 = vadd.f32 %v429, %v623
        %v625 = vpop.f32.mrf.mxu0
        %v626 = vadd.f32 %v429, %v625
        %627 = vmatmul.bf16.gmra.mxu0 %v466
        %v628 = vpop.f32.mrf.mxu0
        %v629 = vadd.f32 %v429, %v628
        %v630 = vpop.f32.mrf.mxu0
        %v631 = vadd.f32 %v429, %v630
        %632 = vmatmul.bf16.gmra.mxu0 %v467
        %v633 = vpop.f32.mrf.mxu0
        %v634 = vadd.f32 %v429, %v633
        %v635 = vpop.f32.mrf.mxu0
        %v636 = vadd.f32 %v429, %v635
        %637 = vmatmul.bf16.gmra.mxu0 %v468
        %v638 = vpop.f32.mrf.mxu0
        %v639 = vadd.f32 %v429, %v638
        %v640 = vpop.f32.mrf.mxu0
        %v641 = vadd.f32 %v429, %v640
        %642 = vmatmul.bf16.gmra.mxu0 %v469
        %v643 = vpop.f32.mrf.mxu0
        %v644 = vadd.f32 %v429, %v643
        %v645 = vpop.f32.mrf.mxu0
        %v646 = vadd.f32 %v429, %v645
        %647 = vmatmul.bf16.gmra.mxu0 %v470
        %v648 = vpop.f32.mrf.mxu0
        %v649 = vadd.f32 %v429, %v648
        %v650 = vpop.f32.mrf.mxu0
        %v651 = vadd.f32 %v429, %v650
        %652 = vmatmul.bf16.gmra.mxu0 %v471
        %v653 = vpop.f32.mrf.mxu0
        %v654 = vadd.f32 %v429, %v653
        %v655 = vpop.f32.mrf.mxu0
        %v656 = vadd.f32 %v429, %v655
        %657 = vdwg.mxu0
        %vm658 = vcmp.gt.f32.partialorder %v570, 0.0
        %vm659 = vcmp.gt.f32.partialorder %v619, 0.0
        %vm660 = vcmp.gt.f32.partialorder %v572, 0.0
        %vm661 = vcmp.gt.f32.partialorder %v621, 0.0
        %vm662 = vcmp.gt.f32.partialorder %v575, 0.0
        %vm663 = vcmp.gt.f32.partialorder %v624, 0.0
        %vm664 = vcmp.gt.f32.partialorder %v577, 0.0
        %vm665 = vcmp.gt.f32.partialorder %v626, 0.0
        %vm666 = vcmp.gt.f32.partialorder %v580, 0.0
        %vm667 = vcmp.gt.f32.partialorder %v629, 0.0
        %vm668 = vcmp.gt.f32.partialorder %v582, 0.0
        %vm669 = vcmp.gt.f32.partialorder %v631, 0.0
        %vm670 = vcmp.gt.f32.partialorder %v585, 0.0
        %vm671 = vcmp.gt.f32.partialorder %v634, 0.0
        %vm672 = vcmp.gt.f32.partialorder %v587, 0.0
        %vm673 = vcmp.gt.f32.partialorder %v636, 0.0
        %vm674 = vcmp.gt.f32.partialorder %v590, 0.0
        %vm675 = vcmp.gt.f32.partialorder %v639, 0.0
        %vm676 = vcmp.gt.f32.partialorder %v592, 0.0
        %vm677 = vcmp.gt.f32.partialorder %v641, 0.0
        %vm678 = vcmp.gt.f32.partialorder %v595, 0.0
        %vm679 = vcmp.gt.f32.partialorder %v644, 0.0
        %vm680 = vcmp.gt.f32.partialorder %v597, 0.0
        %vm681 = vcmp.gt.f32.partialorder %v646, 0.0
        %vm682 = vcmp.gt.f32.partialorder %v600, 0.0
        %vm683 = vcmp.gt.f32.partialorder %v649, 0.0
        %vm684 = vcmp.gt.f32.partialorder %v602, 0.0
        %vm685 = vcmp.gt.f32.partialorder %v651, 0.0
        %vm686 = vcmp.gt.f32.partialorder %v605, 0.0
        %vm687 = vcmp.gt.f32.partialorder %v654, 0.0
        %vm688 = vcmp.gt.f32.partialorder %v607, 0.0
        %vm689 = vcmp.gt.f32.partialorder %v656, 0.0
        %v690 = vmul.f32 %v570, 0.2
        %v691 = vmul.f32 %v619, 0.2
        %v692 = vmul.f32 %v572, 0.2
        %v693 = vmul.f32 %v621, 0.2
        %v694 = vmul.f32 %v575, 0.2
        %v695 = vmul.f32 %v624, 0.2
        %v696 = vmul.f32 %v577, 0.2
        %v697 = vmul.f32 %v626, 0.2
        %v698 = vmul.f32 %v580, 0.2
        %v699 = vmul.f32 %v629, 0.2
        %v700 = vmul.f32 %v582, 0.2
        %v701 = vmul.f32 %v631, 0.2
        %v702 = vmul.f32 %v585, 0.2
        %v703 = vmul.f32 %v634, 0.2
        %v704 = vmul.f32 %v587, 0.2
        %v705 = vmul.f32 %v636, 0.2
        %v706 = vmul.f32 %v590, 0.2
        %v707 = vmul.f32 %v639, 0.2
        %v708 = vmul.f32 %v592, 0.2
        %v709 = vmul.f32 %v641, 0.2
        %v710 = vmul.f32 %v595, 0.2
        %v711 = vmul.f32 %v644, 0.2
        %v712 = vmul.f32 %v597, 0.2
        %v713 = vmul.f32 %v646, 0.2
        %v714 = vmul.f32 %v600, 0.2
        %v715 = vmul.f32 %v649, 0.2
        %v716 = vmul.f32 %v602, 0.2
        %v717 = vmul.f32 %v651, 0.2
        %v718 = vmul.f32 %v605, 0.2
        %v719 = vmul.f32 %v654, 0.2
        %v720 = vmul.f32 %v607, 0.2
        %v721 = vmul.f32 %v656, 0.2
        %v722 = vsel %vm658, %v570, %v690
        %v723 = vsel %vm659, %v619, %v691
        %v724 = vsel %vm660, %v572, %v692
        %v725 = vsel %vm661, %v621, %v693
        %v726 = vsel %vm662, %v575, %v694
        %v727 = vsel %vm663, %v624, %v695
        %v728 = vsel %vm664, %v577, %v696
        %v729 = vsel %vm665, %v626, %v697
        %v730 = vsel %vm666, %v580, %v698
        %v731 = vsel %vm667, %v629, %v699
        %v732 = vsel %vm668, %v582, %v700
        %v733 = vsel %vm669, %v631, %v701
        %v734 = vsel %vm670, %v585, %v702
        %v735 = vsel %vm671, %v634, %v703
        %v736 = vsel %vm672, %v587, %v704
        %v737 = vsel %vm673, %v636, %v705
        %v738 = vsel %vm674, %v590, %v706
        %v739 = vsel %vm675, %v639, %v707
        %v740 = vsel %vm676, %v592, %v708
        %v741 = vsel %vm677, %v641, %v709
        %v742 = vsel %vm678, %v595, %v710
        %v743 = vsel %vm679, %v644, %v711
        %v744 = vsel %vm680, %v597, %v712
        %v745 = vsel %vm681, %v646, %v713
        %v746 = vsel %vm682, %v600, %v714
        %v747 = vsel %vm683, %v649, %v715
        %v748 = vsel %vm684, %v602, %v716
        %v749 = vsel %vm685, %v651, %v717
        %v750 = vsel %vm686, %v605, %v718
        %v751 = vsel %vm687, %v654, %v719
        %v752 = vsel %vm688, %v607, %v720
        %v753 = vsel %vm689, %v656, %v721
        %v754 = vpack.c.bf16 %v724, %v722
        %v755 = vpack.c.bf16 %v725, %v723
        %v756 = vpack.c.bf16 %v728, %v726
        %v757 = vpack.c.bf16 %v729, %v727
        %v758 = vpack.c.bf16 %v732, %v730
        %v759 = vpack.c.bf16 %v733, %v731
        %v760 = vpack.c.bf16 %v736, %v734
        %v761 = vpack.c.bf16 %v737, %v735
        %v762 = vpack.c.bf16 %v740, %v738
        %v763 = vpack.c.bf16 %v741, %v739
        %v764 = vpack.c.bf16 %v744, %v742
        %v765 = vpack.c.bf16 %v745, %v743
        %v766 = vpack.c.bf16 %v748, %v746
        %v767 = vpack.c.bf16 %v749, %v747
        %v768 = vpack.c.bf16 %v752, %v750
        %v769 = vpack.c.bf16 %v753, %v751
        %v770 = vld [vmem:[#allocation8] sm:$0xff]
        %v771 = vld [vmem:[#allocation8 + $0x8] sm:$0xff]
        %v772 = vld [vmem:[#allocation8 + $0x10] sm:$0xff]
        %v773 = vld [vmem:[#allocation8 + $0x18] sm:$0xff]
        %v774 = vld [vmem:[#allocation8 + $0x20] sm:$0xff]
        %v775 = vld [vmem:[#allocation8 + $0x28] sm:$0xff]
        %v776 = vld [vmem:[#allocation8 + $0x30] sm:$0xff]
        %v777 = vld [vmem:[#allocation8 + $0x38] sm:$0xff]
        %v778 = vld [vmem:[#allocation8 + $0x40] sm:$0xff]
        %v779 = vld [vmem:[#allocation8 + $0x48] sm:$0xff]
        %v780 = vld [vmem:[#allocation8 + $0x50] sm:$0xff]
        %v781 = vld [vmem:[#allocation8 + $0x58] sm:$0xff]
        %v782 = vld [vmem:[#allocation8 + $0x60] sm:$0xff]
        %v783 = vld [vmem:[#allocation8 + $0x68] sm:$0xff]
        %v784 = vld [vmem:[#allocation8 + $0x70] sm:$0xff]
        %v785 = vld [vmem:[#allocation8 + $0x78] sm:$0xff]
        %v786 = vld [vmem:[#allocation8 + $0x80] sm:$0xff]
        %v787 = vld [vmem:[#allocation8 + $0x88] sm:$0xff]
        %v788 = vld [vmem:[#allocation8 + $0x90] sm:$0xff]
        %v789 = vld [vmem:[#allocation8 + $0x98] sm:$0xff]
        %v790 = vld [vmem:[#allocation8 + $0xa0] sm:$0xff]
        %v791 = vld [vmem:[#allocation8 + $0xa8] sm:$0xff]
        %v792 = vld [vmem:[#allocation8 + $0xb0] sm:$0xff]
        %v793 = vld [vmem:[#allocation8 + $0xb8] sm:$0xff]
        %v794 = vld [vmem:[#allocation8 + $0xc0] sm:$0xff]
        %v795 = vld [vmem:[#allocation8 + $0xc8] sm:$0xff]
        %v796 = vld [vmem:[#allocation8 + $0xd0] sm:$0xff]
        %v797 = vld [vmem:[#allocation8 + $0xd8] sm:$0xff]
        %v798 = vld [vmem:[#allocation8 + $0xe0] sm:$0xff]
        %v799 = vld [vmem:[#allocation8 + $0xe8] sm:$0xff]
        %v800 = vld [vmem:[#allocation8 + $0xf0] sm:$0xff]
        %v801 = vld [vmem:[#allocation8 + $0xf8] sm:$0xff]
        %v802 = vld [vmem:[#allocation8 + $0x100] sm:$0xff]
        %v803 = vld [vmem:[#allocation8 + $0x108] sm:$0xff]
        %v804 = vld [vmem:[#allocation8 + $0x110] sm:$0xff]
        %v805 = vld [vmem:[#allocation8 + $0x118] sm:$0xff]
        %v806 = vld [vmem:[#allocation8 + $0x120] sm:$0xff]
        %v807 = vld [vmem:[#allocation8 + $0x128] sm:$0xff]
        %v808 = vld [vmem:[#allocation8 + $0x130] sm:$0xff]
        %v809 = vld [vmem:[#allocation8 + $0x138] sm:$0xff]
        %v810 = vld [vmem:[#allocation8 + $0x140] sm:$0xff]
        %v811 = vld [vmem:[#allocation8 + $0x148] sm:$0xff]
        %v812 = vld [vmem:[#allocation8 + $0x150] sm:$0xff]
        %v813 = vld [vmem:[#allocation8 + $0x158] sm:$0xff]
        %v814 = vld [vmem:[#allocation8 + $0x160] sm:$0xff]
        %v815 = vld [vmem:[#allocation8 + $0x168] sm:$0xff]
        %v816 = vld [vmem:[#allocation8 + $0x170] sm:$0xff]
        %v817 = vld [vmem:[#allocation8 + $0x178] sm:$0xff]
        %v818 = vld [vmem:[#allocation8 + $0x180] sm:$0xff]
        %v819 = vld [vmem:[#allocation8 + $0x188] sm:$0xff]
        %v820 = vld [vmem:[#allocation8 + $0x190] sm:$0xff]
        %v821 = vld [vmem:[#allocation8 + $0x198] sm:$0xff]
        %v822 = vld [vmem:[#allocation8 + $0x1a0] sm:$0xff]
        %v823 = vld [vmem:[#allocation8 + $0x1a8] sm:$0xff]
        %v824 = vld [vmem:[#allocation8 + $0x1b0] sm:$0xff]
        %v825 = vld [vmem:[#allocation8 + $0x1b8] sm:$0xff]
        %v826 = vld [vmem:[#allocation8 + $0x1c0] sm:$0xff]
        %v827 = vld [vmem:[#allocation8 + $0x1c8] sm:$0xff]
        %v828 = vld [vmem:[#allocation8 + $0x1d0] sm:$0xff]
        %v829 = vld [vmem:[#allocation8 + $0x1d8] sm:$0xff]
        %v830 = vld [vmem:[#allocation8 + $0x1e0] sm:$0xff]
        %v831 = vld [vmem:[#allocation8 + $0x1e8] sm:$0xff]
        %v832 = vld [vmem:[#allocation8 + $0x1f0] sm:$0xff]
        %v833 = vld [vmem:[#allocation8 + $0x1f8] sm:$0xff]
        %v834 = vld [vmem:[#allocation10] sm:$0xf]
        %v836 = vperm.slane %v834, 0
        %v837 = vperm.slane %v834, 1
        %v838 = vperm.slane %v834, 2
        %v839 = vperm.slane %v834, 3
        %v908 = vunpack.c.l.b16 %v770
        %v909 = vunpack.c.h.b16 %v770
        %v910 = vunpack.c.l.b16 %v771
        %v911 = vunpack.c.h.b16 %v771
        %v912 = vunpack.c.l.b16 %v772
        %v913 = vunpack.c.h.b16 %v772
        %v914 = vunpack.c.l.b16 %v773
        %v915 = vunpack.c.h.b16 %v773
        %v916 = vunpack.c.l.b16 %v774
        %v917 = vunpack.c.h.b16 %v774
        %v918 = vunpack.c.l.b16 %v775
        %v919 = vunpack.c.h.b16 %v775
        %v920 = vunpack.c.l.b16 %v776
        %v921 = vunpack.c.h.b16 %v776
        %v922 = vunpack.c.l.b16 %v777
        %v923 = vunpack.c.h.b16 %v777
        %v924 = vunpack.c.l.b16 %v778
        %v925 = vunpack.c.h.b16 %v778
        %v926 = vunpack.c.l.b16 %v779
        %v927 = vunpack.c.h.b16 %v779
        %v928 = vunpack.c.l.b16 %v780
        %v929 = vunpack.c.h.b16 %v780
        %v930 = vunpack.c.l.b16 %v781
        %v931 = vunpack.c.h.b16 %v781
        %v932 = vunpack.c.l.b16 %v782
        %v933 = vunpack.c.h.b16 %v782
        %v934 = vunpack.c.l.b16 %v783
        %v935 = vunpack.c.h.b16 %v783
        %v936 = vunpack.c.l.b16 %v784
        %v937 = vunpack.c.h.b16 %v784
        %v938 = vunpack.c.l.b16 %v785
        %v939 = vunpack.c.h.b16 %v785
        %v940 = vunpack.c.l.b16 %v786
        %v941 = vunpack.c.h.b16 %v786
        %v942 = vunpack.c.l.b16 %v787
        %v943 = vunpack.c.h.b16 %v787
        %v944 = vunpack.c.l.b16 %v788
        %v945 = vunpack.c.h.b16 %v788
        %v946 = vunpack.c.l.b16 %v789
        %v947 = vunpack.c.h.b16 %v789
        %v948 = vunpack.c.l.b16 %v790
        %v949 = vunpack.c.h.b16 %v790
        %v950 = vunpack.c.l.b16 %v791
        %v951 = vunpack.c.h.b16 %v791
        %v952 = vunpack.c.l.b16 %v792
        %v953 = vunpack.c.h.b16 %v792
        %v954 = vunpack.c.l.b16 %v793
        %v955 = vunpack.c.h.b16 %v793
        %v956 = vunpack.c.l.b16 %v794
        %v957 = vunpack.c.h.b16 %v794
        %v958 = vunpack.c.l.b16 %v795
        %v959 = vunpack.c.h.b16 %v795
        %v960 = vunpack.c.l.b16 %v796
        %v961 = vunpack.c.h.b16 %v796
        %v962 = vunpack.c.l.b16 %v797
        %v963 = vunpack.c.h.b16 %v797
        %v964 = vunpack.c.l.b16 %v798
        %v965 = vunpack.c.h.b16 %v798
        %v966 = vunpack.c.l.b16 %v799
        %v967 = vunpack.c.h.b16 %v799
        %v968 = vunpack.c.l.b16 %v800
        %v969 = vunpack.c.h.b16 %v800
        %v970 = vunpack.c.l.b16 %v801
        %v971 = vunpack.c.h.b16 %v801
        %v972 = vunpack.c.l.b16 %v802
        %v973 = vunpack.c.h.b16 %v802
        %v974 = vunpack.c.l.b16 %v803
        %v975 = vunpack.c.h.b16 %v803
        %v976 = vunpack.c.l.b16 %v804
        %v977 = vunpack.c.h.b16 %v804
        %v978 = vunpack.c.l.b16 %v805
        %v979 = vunpack.c.h.b16 %v805
        %v980 = vunpack.c.l.b16 %v806
        %v981 = vunpack.c.h.b16 %v806
        %v982 = vunpack.c.l.b16 %v807
        %v983 = vunpack.c.h.b16 %v807
        %v984 = vunpack.c.l.b16 %v808
        %v985 = vunpack.c.h.b16 %v808
        %v986 = vunpack.c.l.b16 %v809
        %v987 = vunpack.c.h.b16 %v809
        %v988 = vunpack.c.l.b16 %v810
        %v989 = vunpack.c.h.b16 %v810
        %v990 = vunpack.c.l.b16 %v811
        %v991 = vunpack.c.h.b16 %v811
        %v992 = vunpack.c.l.b16 %v812
        %v993 = vunpack.c.h.b16 %v812
        %v994 = vunpack.c.l.b16 %v813
        %v995 = vunpack.c.h.b16 %v813
        %v996 = vunpack.c.l.b16 %v814
        %v997 = vunpack.c.h.b16 %v814
        %v998 = vunpack.c.l.b16 %v815
        %v999 = vunpack.c.h.b16 %v815
        %v1000 = vunpack.c.l.b16 %v816
        %v1001 = vunpack.c.h.b16 %v816
        %v1002 = vunpack.c.l.b16 %v817
        %v1003 = vunpack.c.h.b16 %v817
        %v1004 = vunpack.c.l.b16 %v818
        %v1005 = vunpack.c.h.b16 %v818
        %v1006 = vunpack.c.l.b16 %v819
        %v1007 = vunpack.c.h.b16 %v819
        %v1008 = vunpack.c.l.b16 %v820
        %v1009 = vunpack.c.h.b16 %v820
        %v1010 = vunpack.c.l.b16 %v821
        %v1011 = vunpack.c.h.b16 %v821
        %v1012 = vunpack.c.l.b16 %v822
        %v1013 = vunpack.c.h.b16 %v822
        %v1014 = vunpack.c.l.b16 %v823
        %v1015 = vunpack.c.h.b16 %v823
        %v1016 = vunpack.c.l.b16 %v824
        %v1017 = vunpack.c.h.b16 %v824
        %v1018 = vunpack.c.l.b16 %v825
        %v1019 = vunpack.c.h.b16 %v825
        %v1020 = vunpack.c.l.b16 %v826
        %v1021 = vunpack.c.h.b16 %v826
        %v1022 = vunpack.c.l.b16 %v827
        %v1023 = vunpack.c.h.b16 %v827
        %v1024 = vunpack.c.l.b16 %v828
        %v1025 = vunpack.c.h.b16 %v828
        %v1026 = vunpack.c.l.b16 %v829
        %v1027 = vunpack.c.h.b16 %v829
        %v1028 = vunpack.c.l.b16 %v830
        %v1029 = vunpack.c.h.b16 %v830
        %v1030 = vunpack.c.l.b16 %v831
        %v1031 = vunpack.c.h.b16 %v831
        %v1032 = vunpack.c.l.b16 %v832
        %v1033 = vunpack.c.h.b16 %v832
        %v1034 = vunpack.c.l.b16 %v833
        %v1035 = vunpack.c.h.b16 %v833
        %v1036 = vpack.c.b16 %v912, %v908
        %v1037 = vpack.c.b16 %v913, %v909
        %v1038 = vpack.c.b16 %v914, %v910
        %v1039 = vpack.c.b16 %v915, %v911
        %v1040 = vpack.c.b16 %v920, %v916
        %v1041 = vpack.c.b16 %v921, %v917
        %v1042 = vpack.c.b16 %v922, %v918
        %v1043 = vpack.c.b16 %v923, %v919
        %v1044 = vpack.c.b16 %v928, %v924
        %v1045 = vpack.c.b16 %v929, %v925
        %v1046 = vpack.c.b16 %v930, %v926
        %v1047 = vpack.c.b16 %v931, %v927
        %v1048 = vpack.c.b16 %v936, %v932
        %v1049 = vpack.c.b16 %v937, %v933
        %v1050 = vpack.c.b16 %v938, %v934
        %v1051 = vpack.c.b16 %v939, %v935
        %v1052 = vpack.c.b16 %v944, %v940
        %v1053 = vpack.c.b16 %v945, %v941
        %v1054 = vpack.c.b16 %v946, %v942
        %v1055 = vpack.c.b16 %v947, %v943
        %v1056 = vpack.c.b16 %v952, %v948
        %v1057 = vpack.c.b16 %v953, %v949
        %v1058 = vpack.c.b16 %v954, %v950
        %v1059 = vpack.c.b16 %v955, %v951
        %v1060 = vpack.c.b16 %v960, %v956
        %v1061 = vpack.c.b16 %v961, %v957
        %v1062 = vpack.c.b16 %v962, %v958
        %v1063 = vpack.c.b16 %v963, %v959
        %v1064 = vpack.c.b16 %v968, %v964
        %v1065 = vpack.c.b16 %v969, %v965
        %v1066 = vpack.c.b16 %v970, %v966
        %v1067 = vpack.c.b16 %v971, %v967
        %v1068 = vpack.c.b16 %v976, %v972
        %v1069 = vpack.c.b16 %v977, %v973
        %v1070 = vpack.c.b16 %v978, %v974
        %v1071 = vpack.c.b16 %v979, %v975
        %v1072 = vpack.c.b16 %v984, %v980
        %v1073 = vpack.c.b16 %v985, %v981
        %v1074 = vpack.c.b16 %v986, %v982
        %v1075 = vpack.c.b16 %v987, %v983
        %v1076 = vpack.c.b16 %v992, %v988
        %v1077 = vpack.c.b16 %v993, %v989
        %v1078 = vpack.c.b16 %v994, %v990
        %v1079 = vpack.c.b16 %v995, %v991
        %v1080 = vpack.c.b16 %v1000, %v996
        %v1081 = vpack.c.b16 %v1001, %v997
        %v1082 = vpack.c.b16 %v1002, %v998
        %v1083 = vpack.c.b16 %v1003, %v999
        %v1084 = vpack.c.b16 %v1008, %v1004
        %v1085 = vpack.c.b16 %v1009, %v1005
        %v1086 = vpack.c.b16 %v1010, %v1006
        %v1087 = vpack.c.b16 %v1011, %v1007
        %v1088 = vpack.c.b16 %v1016, %v1012
        %v1089 = vpack.c.b16 %v1017, %v1013
        %v1090 = vpack.c.b16 %v1018, %v1014
        %v1091 = vpack.c.b16 %v1019, %v1015
        %v1092 = vpack.c.b16 %v1024, %v1020
        %v1093 = vpack.c.b16 %v1025, %v1021
        %v1094 = vpack.c.b16 %v1026, %v1022
        %v1095 = vpack.c.b16 %v1027, %v1023
        %v1096 = vpack.c.b16 %v1032, %v1028
        %v1097 = vpack.c.b16 %v1033, %v1029
        %v1098 = vpack.c.b16 %v1034, %v1030
        %v1099 = vpack.c.b16 %v1035, %v1031
        %1164 = vmatpush.bf16.msra.mxu0 %v1064
        %1165 = vmatpush.bf16.msra.mxu0 %v1060
        %1166 = vmatpush.bf16.msra.mxu0 %v1056
        %1167 = vmatpush.bf16.msra.mxu0 %v1052
        %1168 = vmatpush.bf16.msra.mxu0 %v1048
        %1169 = vmatpush.bf16.msra.mxu0 %v1044
        %1170 = vmatpush.bf16.msra.mxu0 %v1040
        %1171 = vmatpush.bf16.msra.mxu0 %v1036
        %1172 = vmatmul.bf16.gmra.mxu0 %v754
        %v1173 = vpop.f32.mrf.mxu0
        %v1174 = vadd.f32 %v836, %v1173
        %v1175 = vpop.f32.mrf.mxu0
        %v1176 = vadd.f32 %v836, %v1175
        %1177 = vmatmul.bf16.gmra.mxu0 %v756
        %v1178 = vpop.f32.mrf.mxu0
        %v1179 = vadd.f32 %v836, %v1178
        %v1180 = vpop.f32.mrf.mxu0
        %v1181 = vadd.f32 %v836, %v1180
        %1182 = vmatmul.bf16.gmra.mxu0 %v758
        %v1183 = vpop.f32.mrf.mxu0
        %v1184 = vadd.f32 %v836, %v1183
        %v1185 = vpop.f32.mrf.mxu0
        %v1186 = vadd.f32 %v836, %v1185
        %1187 = vmatmul.bf16.gmra.mxu0 %v760
        %v1188 = vpop.f32.mrf.mxu0
        %v1189 = vadd.f32 %v836, %v1188
        %v1190 = vpop.f32.mrf.mxu0
        %v1191 = vadd.f32 %v836, %v1190
        %1192 = vmatmul.bf16.gmra.mxu0 %v762
        %v1193 = vpop.f32.mrf.mxu0
        %v1194 = vadd.f32 %v836, %v1193
        %v1195 = vpop.f32.mrf.mxu0
        %v1196 = vadd.f32 %v836, %v1195
        %1197 = vmatmul.bf16.gmra.mxu0 %v764
        %v1198 = vpop.f32.mrf.mxu0
        %v1199 = vadd.f32 %v836, %v1198
        %v1200 = vpop.f32.mrf.mxu0
        %v1201 = vadd.f32 %v836, %v1200
        %1202 = vmatmul.bf16.gmra.mxu0 %v766
        %v1203 = vpop.f32.mrf.mxu0
        %v1204 = vadd.f32 %v836, %v1203
        %v1205 = vpop.f32.mrf.mxu0
        %v1206 = vadd.f32 %v836, %v1205
        %1207 = vmatmul.bf16.gmra.mxu0 %v768
        %v1208 = vpop.f32.mrf.mxu0
        %v1209 = vadd.f32 %v836, %v1208
        %v1210 = vpop.f32.mrf.mxu0
        %v1211 = vadd.f32 %v836, %v1210
        %1212 = vdwg.mxu0
        %1213 = vmatpush.bf16.msra.mxu0 %v1096
        %1214 = vmatpush.bf16.msra.mxu0 %v1092
        %1215 = vmatpush.bf16.msra.mxu0 %v1088
        %1216 = vmatpush.bf16.msra.mxu0 %v1084
        %1217 = vmatpush.bf16.msra.mxu0 %v1080
        %1218 = vmatpush.bf16.msra.mxu0 %v1076
        %1219 = vmatpush.bf16.msra.mxu0 %v1072
        %1220 = vmatpush.bf16.msra.mxu0 %v1068
        %1221 = vmatmul.bf16.gmra.mxu0 %v755
        %v1222 = vpop.f32.mrf.mxu0
        %v1223 = vadd.f32 %v1174, %v1222
        %v1224 = vpop.f32.mrf.mxu0
        %v1225 = vadd.f32 %v1176, %v1224
        %1226 = vmatmul.bf16.gmra.mxu0 %v757
        %v1227 = vpop.f32.mrf.mxu0
        %v1228 = vadd.f32 %v1179, %v1227
        %v1229 = vpop.f32.mrf.mxu0
        %v1230 = vadd.f32 %v1181, %v1229
        %1231 = vmatmul.bf16.gmra.mxu0 %v759
        %v1232 = vpop.f32.mrf.mxu0
        %v1233 = vadd.f32 %v1184, %v1232
        %v1234 = vpop.f32.mrf.mxu0
        %v1235 = vadd.f32 %v1186, %v1234
        %1236 = vmatmul.bf16.gmra.mxu0 %v761
        %v1237 = vpop.f32.mrf.mxu0
        %v1238 = vadd.f32 %v1189, %v1237
        %v1239 = vpop.f32.mrf.mxu0
        %v1240 = vadd.f32 %v1191, %v1239
        %1241 = vmatmul.bf16.gmra.mxu0 %v763
        %v1242 = vpop.f32.mrf.mxu0
        %v1243 = vadd.f32 %v1194, %v1242
        %v1244 = vpop.f32.mrf.mxu0
        %v1245 = vadd.f32 %v1196, %v1244
        %1246 = vmatmul.bf16.gmra.mxu0 %v765
        %v1247 = vpop.f32.mrf.mxu0
        %v1248 = vadd.f32 %v1199, %v1247
        %v1249 = vpop.f32.mrf.mxu0
        %v1250 = vadd.f32 %v1201, %v1249
        %1251 = vmatmul.bf16.gmra.mxu0 %v767
        %v1252 = vpop.f32.mrf.mxu0
        %v1253 = vadd.f32 %v1204, %v1252
        %v1254 = vpop.f32.mrf.mxu0
        %v1255 = vadd.f32 %v1206, %v1254
        %1256 = vmatmul.bf16.gmra.mxu0 %v769
        %v1257 = vpop.f32.mrf.mxu0
        %v1258 = vadd.f32 %v1209, %v1257
        %v1259 = vpop.f32.mrf.mxu0
        %v1260 = vadd.f32 %v1211, %v1259
        %1261 = vdwg.mxu0
        %1262 = vmatpush.bf16.msra.mxu0 %v1065
        %1263 = vmatpush.bf16.msra.mxu0 %v1061
        %1264 = vmatpush.bf16.msra.mxu0 %v1057
        %1265 = vmatpush.bf16.msra.mxu0 %v1053
        %1266 = vmatpush.bf16.msra.mxu0 %v1049
        %1267 = vmatpush.bf16.msra.mxu0 %v1045
        %1268 = vmatpush.bf16.msra.mxu0 %v1041
        %1269 = vmatpush.bf16.msra.mxu0 %v1037
        %1270 = vmatmul.bf16.gmra.mxu0 %v754
        %v1271 = vpop.f32.mrf.mxu0
        %v1272 = vadd.f32 %v837, %v1271
        %v1273 = vpop.f32.mrf.mxu0
        %v1274 = vadd.f32 %v837, %v1273
        %1275 = vmatmul.bf16.gmra.mxu0 %v756
        %v1276 = vpop.f32.mrf.mxu0
        %v1277 = vadd.f32 %v837, %v1276
        %v1278 = vpop.f32.mrf.mxu0
        %v1279 = vadd.f32 %v837, %v1278
        %1280 = vmatmul.bf16.gmra.mxu0 %v758
        %v1281 = vpop.f32.mrf.mxu0
        %v1282 = vadd.f32 %v837, %v1281
        %v1283 = vpop.f32.mrf.mxu0
        %v1284 = vadd.f32 %v837, %v1283
        %1285 = vmatmul.bf16.gmra.mxu0 %v760
        %v1286 = vpop.f32.mrf.mxu0
        %v1287 = vadd.f32 %v837, %v1286
        %v1288 = vpop.f32.mrf.mxu0
        %v1289 = vadd.f32 %v837, %v1288
        %1290 = vmatmul.bf16.gmra.mxu0 %v762
        %v1291 = vpop.f32.mrf.mxu0
        %v1292 = vadd.f32 %v837, %v1291
        %v1293 = vpop.f32.mrf.mxu0
        %v1294 = vadd.f32 %v837, %v1293
        %1295 = vmatmul.bf16.gmra.mxu0 %v764
        %v1296 = vpop.f32.mrf.mxu0
        %v1297 = vadd.f32 %v837, %v1296
        %v1298 = vpop.f32.mrf.mxu0
        %v1299 = vadd.f32 %v837, %v1298
        %1300 = vmatmul.bf16.gmra.mxu0 %v766
        %v1301 = vpop.f32.mrf.mxu0
        %v1302 = vadd.f32 %v837, %v1301
        %v1303 = vpop.f32.mrf.mxu0
        %v1304 = vadd.f32 %v837, %v1303
        %1305 = vmatmul.bf16.gmra.mxu0 %v768
        %v1306 = vpop.f32.mrf.mxu0
        %v1307 = vadd.f32 %v837, %v1306
        %v1308 = vpop.f32.mrf.mxu0
        %v1309 = vadd.f32 %v837, %v1308
        %1310 = vdwg.mxu0
        %1311 = vmatpush.bf16.msra.mxu0 %v1097
        %1312 = vmatpush.bf16.msra.mxu0 %v1093
        %1313 = vmatpush.bf16.msra.mxu0 %v1089
        %1314 = vmatpush.bf16.msra.mxu0 %v1085
        %1315 = vmatpush.bf16.msra.mxu0 %v1081
        %1316 = vmatpush.bf16.msra.mxu0 %v1077
        %1317 = vmatpush.bf16.msra.mxu0 %v1073
        %1318 = vmatpush.bf16.msra.mxu0 %v1069
        %1319 = vmatmul.bf16.gmra.mxu0 %v755
        %v1320 = vpop.f32.mrf.mxu0
        %v1321 = vadd.f32 %v1272, %v1320
        %v1322 = vpop.f32.mrf.mxu0
        %v1323 = vadd.f32 %v1274, %v1322
        %1324 = vmatmul.bf16.gmra.mxu0 %v757
        %v1325 = vpop.f32.mrf.mxu0
        %v1326 = vadd.f32 %v1277, %v1325
        %v1327 = vpop.f32.mrf.mxu0
        %v1328 = vadd.f32 %v1279, %v1327
        %1329 = vmatmul.bf16.gmra.mxu0 %v759
        %v1330 = vpop.f32.mrf.mxu0
        %v1331 = vadd.f32 %v1282, %v1330
        %v1332 = vpop.f32.mrf.mxu0
        %v1333 = vadd.f32 %v1284, %v1332
        %1334 = vmatmul.bf16.gmra.mxu0 %v761
        %v1335 = vpop.f32.mrf.mxu0
        %v1336 = vadd.f32 %v1287, %v1335
        %v1337 = vpop.f32.mrf.mxu0
        %v1338 = vadd.f32 %v1289, %v1337
        %1339 = vmatmul.bf16.gmra.mxu0 %v763
        %v1340 = vpop.f32.mrf.mxu0
        %v1341 = vadd.f32 %v1292, %v1340
        %v1342 = vpop.f32.mrf.mxu0
        %v1343 = vadd.f32 %v1294, %v1342
        %1344 = vmatmul.bf16.gmra.mxu0 %v765
        %v1345 = vpop.f32.mrf.mxu0
        %v1346 = vadd.f32 %v1297, %v1345
        %v1347 = vpop.f32.mrf.mxu0
        %v1348 = vadd.f32 %v1299, %v1347
        %1349 = vmatmul.bf16.gmra.mxu0 %v767
        %v1350 = vpop.f32.mrf.mxu0
        %v1351 = vadd.f32 %v1302, %v1350
        %v1352 = vpop.f32.mrf.mxu0
        %v1353 = vadd.f32 %v1304, %v1352
        %1354 = vmatmul.bf16.gmra.mxu0 %v769
        %v1355 = vpop.f32.mrf.mxu0
        %v1356 = vadd.f32 %v1307, %v1355
        %v1357 = vpop.f32.mrf.mxu0
        %v1358 = vadd.f32 %v1309, %v1357
        %1359 = vdwg.mxu0
        %1360 = vmatpush.bf16.msra.mxu0 %v1066
        %1361 = vmatpush.bf16.msra.mxu0 %v1062
        %1362 = vmatpush.bf16.msra.mxu0 %v1058
        %1363 = vmatpush.bf16.msra.mxu0 %v1054
        %1364 = vmatpush.bf16.msra.mxu0 %v1050
        %1365 = vmatpush.bf16.msra.mxu0 %v1046
        %1366 = vmatpush.bf16.msra.mxu0 %v1042
        %1367 = vmatpush.bf16.msra.mxu0 %v1038
        %1368 = vmatmul.bf16.gmra.mxu0 %v754
        %v1369 = vpop.f32.mrf.mxu0
        %v1370 = vadd.f32 %v838, %v1369
        %v1371 = vpop.f32.mrf.mxu0
        %v1372 = vadd.f32 %v838, %v1371
        %1373 = vmatmul.bf16.gmra.mxu0 %v756
        %v1374 = vpop.f32.mrf.mxu0
        %v1375 = vadd.f32 %v838, %v1374
        %v1376 = vpop.f32.mrf.mxu0
        %v1377 = vadd.f32 %v838, %v1376
        %1378 = vmatmul.bf16.gmra.mxu0 %v758
        %v1379 = vpop.f32.mrf.mxu0
        %v1380 = vadd.f32 %v838, %v1379
        %v1381 = vpop.f32.mrf.mxu0
        %v1382 = vadd.f32 %v838, %v1381
        %1383 = vmatmul.bf16.gmra.mxu0 %v760
        %v1384 = vpop.f32.mrf.mxu0
        %v1385 = vadd.f32 %v838, %v1384
        %v1386 = vpop.f32.mrf.mxu0
        %v1387 = vadd.f32 %v838, %v1386
        %1388 = vmatmul.bf16.gmra.mxu0 %v762
        %v1389 = vpop.f32.mrf.mxu0
        %v1390 = vadd.f32 %v838, %v1389
        %v1391 = vpop.f32.mrf.mxu0
        %v1392 = vadd.f32 %v838, %v1391
        %1393 = vmatmul.bf16.gmra.mxu0 %v764
        %v1394 = vpop.f32.mrf.mxu0
        %v1395 = vadd.f32 %v838, %v1394
        %v1396 = vpop.f32.mrf.mxu0
        %v1397 = vadd.f32 %v838, %v1396
        %1398 = vmatmul.bf16.gmra.mxu0 %v766
        %v1399 = vpop.f32.mrf.mxu0
        %v1400 = vadd.f32 %v838, %v1399
        %v1401 = vpop.f32.mrf.mxu0
        %v1402 = vadd.f32 %v838, %v1401
        %1403 = vmatmul.bf16.gmra.mxu0 %v768
        %v1404 = vpop.f32.mrf.mxu0
        %v1405 = vadd.f32 %v838, %v1404
        %v1406 = vpop.f32.mrf.mxu0
        %v1407 = vadd.f32 %v838, %v1406
        %1408 = vdwg.mxu0
        %1409 = vmatpush.bf16.msra.mxu0 %v1098
        %1410 = vmatpush.bf16.msra.mxu0 %v1094
        %1411 = vmatpush.bf16.msra.mxu0 %v1090
        %1412 = vmatpush.bf16.msra.mxu0 %v1086
        %1413 = vmatpush.bf16.msra.mxu0 %v1082
        %1414 = vmatpush.bf16.msra.mxu0 %v1078
        %1415 = vmatpush.bf16.msra.mxu0 %v1074
        %1416 = vmatpush.bf16.msra.mxu0 %v1070
        %1417 = vmatmul.bf16.gmra.mxu0 %v755
        %v1418 = vpop.f32.mrf.mxu0
        %v1419 = vadd.f32 %v1370, %v1418
        %v1420 = vpop.f32.mrf.mxu0
        %v1421 = vadd.f32 %v1372, %v1420
        %1422 = vmatmul.bf16.gmra.mxu0 %v757
        %v1423 = vpop.f32.mrf.mxu0
        %v1424 = vadd.f32 %v1375, %v1423
        %v1425 = vpop.f32.mrf.mxu0
        %v1426 = vadd.f32 %v1377, %v1425
        %1427 = vmatmul.bf16.gmra.mxu0 %v759
        %v1428 = vpop.f32.mrf.mxu0
        %v1429 = vadd.f32 %v1380, %v1428
        %v1430 = vpop.f32.mrf.mxu0
        %v1431 = vadd.f32 %v1382, %v1430
        %1432 = vmatmul.bf16.gmra.mxu0 %v761
        %v1433 = vpop.f32.mrf.mxu0
        %v1434 = vadd.f32 %v1385, %v1433
        %v1435 = vpop.f32.mrf.mxu0
        %v1436 = vadd.f32 %v1387, %v1435
        %1437 = vmatmul.bf16.gmra.mxu0 %v763
        %v1438 = vpop.f32.mrf.mxu0
        %v1439 = vadd.f32 %v1390, %v1438
        %v1440 = vpop.f32.mrf.mxu0
        %v1441 = vadd.f32 %v1392, %v1440
        %1442 = vmatmul.bf16.gmra.mxu0 %v765
        %v1443 = vpop.f32.mrf.mxu0
        %v1444 = vadd.f32 %v1395, %v1443
        %v1445 = vpop.f32.mrf.mxu0
        %v1446 = vadd.f32 %v1397, %v1445
        %1447 = vmatmul.bf16.gmra.mxu0 %v767
        %v1448 = vpop.f32.mrf.mxu0
        %v1449 = vadd.f32 %v1400, %v1448
        %v1450 = vpop.f32.mrf.mxu0
        %v1451 = vadd.f32 %v1402, %v1450
        %1452 = vmatmul.bf16.gmra.mxu0 %v769
        %v1453 = vpop.f32.mrf.mxu0
        %v1454 = vadd.f32 %v1405, %v1453
        %v1455 = vpop.f32.mrf.mxu0
        %v1456 = vadd.f32 %v1407, %v1455
        %1457 = vdwg.mxu0
        %1458 = vmatpush.bf16.msra.mxu0 %v1067
        %1459 = vmatpush.bf16.msra.mxu0 %v1063
        %1460 = vmatpush.bf16.msra.mxu0 %v1059
        %1461 = vmatpush.bf16.msra.mxu0 %v1055
        %1462 = vmatpush.bf16.msra.mxu0 %v1051
        %1463 = vmatpush.bf16.msra.mxu0 %v1047
        %1464 = vmatpush.bf16.msra.mxu0 %v1043
        %1465 = vmatpush.bf16.msra.mxu0 %v1039
        %1466 = vmatmul.bf16.gmra.mxu0 %v754
        %v1467 = vpop.f32.mrf.mxu0
        %v1468 = vadd.f32 %v839, %v1467
        %v1469 = vpop.f32.mrf.mxu0
        %v1470 = vadd.f32 %v839, %v1469
        %1471 = vmatmul.bf16.gmra.mxu0 %v756
        %v1472 = vpop.f32.mrf.mxu0
        %v1473 = vadd.f32 %v839, %v1472
        %v1474 = vpop.f32.mrf.mxu0
        %v1475 = vadd.f32 %v839, %v1474
        %1476 = vmatmul.bf16.gmra.mxu0 %v758
        %v1477 = vpop.f32.mrf.mxu0
        %v1478 = vadd.f32 %v839, %v1477
        %v1479 = vpop.f32.mrf.mxu0
        %v1480 = vadd.f32 %v839, %v1479
        %1481 = vmatmul.bf16.gmra.mxu0 %v760
        %v1482 = vpop.f32.mrf.mxu0
        %v1483 = vadd.f32 %v839, %v1482
        %v1484 = vpop.f32.mrf.mxu0
        %v1485 = vadd.f32 %v839, %v1484
        %1486 = vmatmul.bf16.gmra.mxu0 %v762
        %v1487 = vpop.f32.mrf.mxu0
        %v1488 = vadd.f32 %v839, %v1487
        %v1489 = vpop.f32.mrf.mxu0
        %v1490 = vadd.f32 %v839, %v1489
        %1491 = vmatmul.bf16.gmra.mxu0 %v764
        %v1492 = vpop.f32.mrf.mxu0
        %v1493 = vadd.f32 %v839, %v1492
        %v1494 = vpop.f32.mrf.mxu0
        %v1495 = vadd.f32 %v839, %v1494
        %1496 = vmatmul.bf16.gmra.mxu0 %v766
        %v1497 = vpop.f32.mrf.mxu0
        %v1498 = vadd.f32 %v839, %v1497
        %v1499 = vpop.f32.mrf.mxu0
        %v1500 = vadd.f32 %v839, %v1499
        %1501 = vmatmul.bf16.gmra.mxu0 %v768
        %v1502 = vpop.f32.mrf.mxu0
        %v1503 = vadd.f32 %v839, %v1502
        %v1504 = vpop.f32.mrf.mxu0
        %v1505 = vadd.f32 %v839, %v1504
        %1506 = vdwg.mxu0
        %1507 = vmatpush.bf16.msra.mxu0 %v1099
        %1508 = vmatpush.bf16.msra.mxu0 %v1095
        %1509 = vmatpush.bf16.msra.mxu0 %v1091
        %1510 = vmatpush.bf16.msra.mxu0 %v1087
        %1511 = vmatpush.bf16.msra.mxu0 %v1083
        %1512 = vmatpush.bf16.msra.mxu0 %v1079
        %1513 = vmatpush.bf16.msra.mxu0 %v1075
        %1514 = vmatpush.bf16.msra.mxu0 %v1071
        %1515 = vmatmul.bf16.gmra.mxu0 %v755
        %v1516 = vpop.f32.mrf.mxu0
        %v1517 = vadd.f32 %v1468, %v1516
        %v1518 = vpop.f32.mrf.mxu0
        %v1519 = vadd.f32 %v1470, %v1518
        %1520 = vmatmul.bf16.gmra.mxu0 %v757
        %v1521 = vpop.f32.mrf.mxu0
        %v1522 = vadd.f32 %v1473, %v1521
        %v1523 = vpop.f32.mrf.mxu0
        %v1524 = vadd.f32 %v1475, %v1523
        %1525 = vmatmul.bf16.gmra.mxu0 %v759
        %v1526 = vpop.f32.mrf.mxu0
        %v1527 = vadd.f32 %v1478, %v1526
        %v1528 = vpop.f32.mrf.mxu0
        %v1529 = vadd.f32 %v1480, %v1528
        %1530 = vmatmul.bf16.gmra.mxu0 %v761
        %v1531 = vpop.f32.mrf.mxu0
        %v1532 = vadd.f32 %v1483, %v1531
        %v1533 = vpop.f32.mrf.mxu0
        %v1534 = vadd.f32 %v1485, %v1533
        %1535 = vmatmul.bf16.gmra.mxu0 %v763
        %v1536 = vpop.f32.mrf.mxu0
        %v1537 = vadd.f32 %v1488, %v1536
        %v1538 = vpop.f32.mrf.mxu0
        %v1539 = vadd.f32 %v1490, %v1538
        %1540 = vmatmul.bf16.gmra.mxu0 %v765
        %v1541 = vpop.f32.mrf.mxu0
        %v1542 = vadd.f32 %v1493, %v1541
        %v1543 = vpop.f32.mrf.mxu0
        %v1544 = vadd.f32 %v1495, %v1543
        %1545 = vmatmul.bf16.gmra.mxu0 %v767
        %v1546 = vpop.f32.mrf.mxu0
        %v1547 = vadd.f32 %v1498, %v1546
        %v1548 = vpop.f32.mrf.mxu0
        %v1549 = vadd.f32 %v1500, %v1548
        %1550 = vmatmul.bf16.gmra.mxu0 %v769
        %v1551 = vpop.f32.mrf.mxu0
        %v1552 = vadd.f32 %v1503, %v1551
        %v1553 = vpop.f32.mrf.mxu0
        %v1554 = vadd.f32 %v1505, %v1553
        %1555 = vdwg.mxu0
        %vm1556 = vcmp.gt.f32.partialorder %v1223, 0.0
        %vm1557 = vcmp.gt.f32.partialorder %v1321, 0.0
        %vm1558 = vcmp.gt.f32.partialorder %v1419, 0.0
        %vm1559 = vcmp.gt.f32.partialorder %v1517, 0.0
        %vm1560 = vcmp.gt.f32.partialorder %v1225, 0.0
        %vm1561 = vcmp.gt.f32.partialorder %v1323, 0.0
        %vm1562 = vcmp.gt.f32.partialorder %v1421, 0.0
        %vm1563 = vcmp.gt.f32.partialorder %v1519, 0.0
        %vm1564 = vcmp.gt.f32.partialorder %v1228, 0.0
        %vm1565 = vcmp.gt.f32.partialorder %v1326, 0.0
        %vm1566 = vcmp.gt.f32.partialorder %v1424, 0.0
        %vm1567 = vcmp.gt.f32.partialorder %v1522, 0.0
        %vm1568 = vcmp.gt.f32.partialorder %v1230, 0.0
        %vm1569 = vcmp.gt.f32.partialorder %v1328, 0.0
        %vm1570 = vcmp.gt.f32.partialorder %v1426, 0.0
        %vm1571 = vcmp.gt.f32.partialorder %v1524, 0.0
        %vm1572 = vcmp.gt.f32.partialorder %v1233, 0.0
        %vm1573 = vcmp.gt.f32.partialorder %v1331, 0.0
        %vm1574 = vcmp.gt.f32.partialorder %v1429, 0.0
        %vm1575 = vcmp.gt.f32.partialorder %v1527, 0.0
        %vm1576 = vcmp.gt.f32.partialorder %v1235, 0.0
        %vm1577 = vcmp.gt.f32.partialorder %v1333, 0.0
        %vm1578 = vcmp.gt.f32.partialorder %v1431, 0.0
        %vm1579 = vcmp.gt.f32.partialorder %v1529, 0.0
        %vm1580 = vcmp.gt.f32.partialorder %v1238, 0.0
        %vm1581 = vcmp.gt.f32.partialorder %v1336, 0.0
        %vm1582 = vcmp.gt.f32.partialorder %v1434, 0.0
        %vm1583 = vcmp.gt.f32.partialorder %v1532, 0.0
        %vm1584 = vcmp.gt.f32.partialorder %v1240, 0.0
        %vm1585 = vcmp.gt.f32.partialorder %v1338, 0.0
        %vm1586 = vcmp.gt.f32.partialorder %v1436, 0.0
        %vm1587 = vcmp.gt.f32.partialorder %v1534, 0.0
        %vm1588 = vcmp.gt.f32.partialorder %v1243, 0.0
        %vm1589 = vcmp.gt.f32.partialorder %v1341, 0.0
        %vm1590 = vcmp.gt.f32.partialorder %v1439, 0.0
        %vm1591 = vcmp.gt.f32.partialorder %v1537, 0.0
        %vm1592 = vcmp.gt.f32.partialorder %v1245, 0.0
        %vm1593 = vcmp.gt.f32.partialorder %v1343, 0.0
        %vm1594 = vcmp.gt.f32.partialorder %v1441, 0.0
        %vm1595 = vcmp.gt.f32.partialorder %v1539, 0.0
        %vm1596 = vcmp.gt.f32.partialorder %v1248, 0.0
        %vm1597 = vcmp.gt.f32.partialorder %v1346, 0.0
        %vm1598 = vcmp.gt.f32.partialorder %v1444, 0.0
        %vm1599 = vcmp.gt.f32.partialorder %v1542, 0.0
        %vm1600 = vcmp.gt.f32.partialorder %v1250, 0.0
        %vm1601 = vcmp.gt.f32.partialorder %v1348, 0.0
        %vm1602 = vcmp.gt.f32.partialorder %v1446, 0.0
        %vm1603 = vcmp.gt.f32.partialorder %v1544, 0.0
        %vm1604 = vcmp.gt.f32.partialorder %v1253, 0.0
        %vm1605 = vcmp.gt.f32.partialorder %v1351, 0.0
        %vm1606 = vcmp.gt.f32.partialorder %v1449, 0.0
        %vm1607 = vcmp.gt.f32.partialorder %v1547, 0.0
        %vm1608 = vcmp.gt.f32.partialorder %v1255, 0.0
        %vm1609 = vcmp.gt.f32.partialorder %v1353, 0.0
        %vm1610 = vcmp.gt.f32.partialorder %v1451, 0.0
        %vm1611 = vcmp.gt.f32.partialorder %v1549, 0.0
        %vm1612 = vcmp.gt.f32.partialorder %v1258, 0.0
        %vm1613 = vcmp.gt.f32.partialorder %v1356, 0.0
        %vm1614 = vcmp.gt.f32.partialorder %v1454, 0.0
        %vm1615 = vcmp.gt.f32.partialorder %v1552, 0.0
        %vm1616 = vcmp.gt.f32.partialorder %v1260, 0.0
        %vm1617 = vcmp.gt.f32.partialorder %v1358, 0.0
        %vm1618 = vcmp.gt.f32.partialorder %v1456, 0.0
        %vm1619 = vcmp.gt.f32.partialorder %v1554, 0.0
        %v1620 = vmul.f32 %v1223, 0.2
        %v1621 = vmul.f32 %v1321, 0.2
        %v1622 = vmul.f32 %v1419, 0.2
        %v1623 = vmul.f32 %v1517, 0.2
        %v1624 = vmul.f32 %v1225, 0.2
        %v1625 = vmul.f32 %v1323, 0.2
        %v1626 = vmul.f32 %v1421, 0.2
        %v1627 = vmul.f32 %v1519, 0.2
        %v1628 = vmul.f32 %v1228, 0.2
        %v1629 = vmul.f32 %v1326, 0.2
        %v1630 = vmul.f32 %v1424, 0.2
        %v1631 = vmul.f32 %v1522, 0.2
        %v1632 = vmul.f32 %v1230, 0.2
        %v1633 = vmul.f32 %v1328, 0.2
        %v1634 = vmul.f32 %v1426, 0.2
        %v1635 = vmul.f32 %v1524, 0.2
        %v1636 = vmul.f32 %v1233, 0.2
        %v1637 = vmul.f32 %v1331, 0.2
        %v1638 = vmul.f32 %v1429, 0.2
        %v1639 = vmul.f32 %v1527, 0.2
        %v1640 = vmul.f32 %v1235, 0.2
        %v1641 = vmul.f32 %v1333, 0.2
        %v1642 = vmul.f32 %v1431, 0.2
        %v1643 = vmul.f32 %v1529, 0.2
        %v1644 = vmul.f32 %v1238, 0.2
        %v1645 = vmul.f32 %v1336, 0.2
        %v1646 = vmul.f32 %v1434, 0.2
        %v1647 = vmul.f32 %v1532, 0.2
        %v1648 = vmul.f32 %v1240, 0.2
        %v1649 = vmul.f32 %v1338, 0.2
        %v1650 = vmul.f32 %v1436, 0.2
        %v1651 = vmul.f32 %v1534, 0.2
        %v1652 = vmul.f32 %v1243, 0.2
        %v1653 = vmul.f32 %v1341, 0.2
        %v1654 = vmul.f32 %v1439, 0.2
        %v1655 = vmul.f32 %v1537, 0.2
        %v1656 = vmul.f32 %v1245, 0.2
        %v1657 = vmul.f32 %v1343, 0.2
        %v1658 = vmul.f32 %v1441, 0.2
        %v1659 = vmul.f32 %v1539, 0.2
        %v1660 = vmul.f32 %v1248, 0.2
        %v1661 = vmul.f32 %v1346, 0.2
        %v1662 = vmul.f32 %v1444, 0.2
        %v1663 = vmul.f32 %v1542, 0.2
        %v1664 = vmul.f32 %v1250, 0.2
        %v1665 = vmul.f32 %v1348, 0.2
        %v1666 = vmul.f32 %v1446, 0.2
        %v1667 = vmul.f32 %v1544, 0.2
        %v1668 = vmul.f32 %v1253, 0.2
        %v1669 = vmul.f32 %v1351, 0.2
        %v1670 = vmul.f32 %v1449, 0.2
        %v1671 = vmul.f32 %v1547, 0.2
        %v1672 = vmul.f32 %v1255, 0.2
        %v1673 = vmul.f32 %v1353, 0.2
        %v1674 = vmul.f32 %v1451, 0.2
        %v1675 = vmul.f32 %v1549, 0.2
        %v1676 = vmul.f32 %v1258, 0.2
        %v1677 = vmul.f32 %v1356, 0.2
        %v1678 = vmul.f32 %v1454, 0.2
        %v1679 = vmul.f32 %v1552, 0.2
        %v1680 = vmul.f32 %v1260, 0.2
        %v1681 = vmul.f32 %v1358, 0.2
        %v1682 = vmul.f32 %v1456, 0.2
        %v1683 = vmul.f32 %v1554, 0.2
        %v1684 = vsel %vm1556, %v1223, %v1620
        %v1685 = vsel %vm1557, %v1321, %v1621
        %v1686 = vsel %vm1558, %v1419, %v1622
        %v1687 = vsel %vm1559, %v1517, %v1623
        %v1688 = vsel %vm1560, %v1225, %v1624
        %v1689 = vsel %vm1561, %v1323, %v1625
        %v1690 = vsel %vm1562, %v1421, %v1626
        %v1691 = vsel %vm1563, %v1519, %v1627
        %v1692 = vsel %vm1564, %v1228, %v1628
        %v1693 = vsel %vm1565, %v1326, %v1629
        %v1694 = vsel %vm1566, %v1424, %v1630
        %v1695 = vsel %vm1567, %v1522, %v1631
        %v1696 = vsel %vm1568, %v1230, %v1632
        %v1697 = vsel %vm1569, %v1328, %v1633
        %v1698 = vsel %vm1570, %v1426, %v1634
        %v1699 = vsel %vm1571, %v1524, %v1635
        %v1700 = vsel %vm1572, %v1233, %v1636
        %v1701 = vsel %vm1573, %v1331, %v1637
        %v1702 = vsel %vm1574, %v1429, %v1638
        %v1703 = vsel %vm1575, %v1527, %v1639
        %v1704 = vsel %vm1576, %v1235, %v1640
        %v1705 = vsel %vm1577, %v1333, %v1641
        %v1706 = vsel %vm1578, %v1431, %v1642
        %v1707 = vsel %vm1579, %v1529, %v1643
        %v1708 = vsel %vm1580, %v1238, %v1644
        %v1709 = vsel %vm1581, %v1336, %v1645
        %v1710 = vsel %vm1582, %v1434, %v1646
        %v1711 = vsel %vm1583, %v1532, %v1647
        %v1712 = vsel %vm1584, %v1240, %v1648
        %v1713 = vsel %vm1585, %v1338, %v1649
        %v1714 = vsel %vm1586, %v1436, %v1650
        %v1715 = vsel %vm1587, %v1534, %v1651
        %v1716 = vsel %vm1588, %v1243, %v1652
        %v1717 = vsel %vm1589, %v1341, %v1653
        %v1718 = vsel %vm1590, %v1439, %v1654
        %v1719 = vsel %vm1591, %v1537, %v1655
        %v1720 = vsel %vm1592, %v1245, %v1656
        %v1721 = vsel %vm1593, %v1343, %v1657
        %v1722 = vsel %vm1594, %v1441, %v1658
        %v1723 = vsel %vm1595, %v1539, %v1659
        %v1724 = vsel %vm1596, %v1248, %v1660
        %v1725 = vsel %vm1597, %v1346, %v1661
        %v1726 = vsel %vm1598, %v1444, %v1662
        %v1727 = vsel %vm1599, %v1542, %v1663
        %v1728 = vsel %vm1600, %v1250, %v1664
        %v1729 = vsel %vm1601, %v1348, %v1665
        %v1730 = vsel %vm1602, %v1446, %v1666
        %v1731 = vsel %vm1603, %v1544, %v1667
        %v1732 = vsel %vm1604, %v1253, %v1668
        %v1733 = vsel %vm1605, %v1351, %v1669
        %v1734 = vsel %vm1606, %v1449, %v1670
        %v1735 = vsel %vm1607, %v1547, %v1671
        %v1736 = vsel %vm1608, %v1255, %v1672
        %v1737 = vsel %vm1609, %v1353, %v1673
        %v1738 = vsel %vm1610, %v1451, %v1674
        %v1739 = vsel %vm1611, %v1549, %v1675
        %v1740 = vsel %vm1612, %v1258, %v1676
        %v1741 = vsel %vm1613, %v1356, %v1677
        %v1742 = vsel %vm1614, %v1454, %v1678
        %v1743 = vsel %vm1615, %v1552, %v1679
        %v1744 = vsel %vm1616, %v1260, %v1680
        %v1745 = vsel %vm1617, %v1358, %v1681
        %v1746 = vsel %vm1618, %v1456, %v1682
        %v1747 = vsel %vm1619, %v1554, %v1683
        %v1748 = vpack.c.bf16 %v1688, %v1684
        %v1749 = vpack.c.bf16 %v1689, %v1685
        %v1750 = vpack.c.bf16 %v1690, %v1686
        %v1751 = vpack.c.bf16 %v1691, %v1687
        %v1752 = vpack.c.bf16 %v1696, %v1692
        %v1753 = vpack.c.bf16 %v1697, %v1693
        %v1754 = vpack.c.bf16 %v1698, %v1694
        %v1755 = vpack.c.bf16 %v1699, %v1695
        %v1756 = vpack.c.bf16 %v1704, %v1700
        %v1757 = vpack.c.bf16 %v1705, %v1701
        %v1758 = vpack.c.bf16 %v1706, %v1702
        %v1759 = vpack.c.bf16 %v1707, %v1703
        %v1760 = vpack.c.bf16 %v1712, %v1708
        %v1761 = vpack.c.bf16 %v1713, %v1709
        %v1762 = vpack.c.bf16 %v1714, %v1710
        %v1763 = vpack.c.bf16 %v1715, %v1711
        %v1764 = vpack.c.bf16 %v1720, %v1716
        %v1765 = vpack.c.bf16 %v1721, %v1717
        %v1766 = vpack.c.bf16 %v1722, %v1718
        %v1767 = vpack.c.bf16 %v1723, %v1719
        %v1768 = vpack.c.bf16 %v1728, %v1724
        %v1769 = vpack.c.bf16 %v1729, %v1725
        %v1770 = vpack.c.bf16 %v1730, %v1726
        %v1771 = vpack.c.bf16 %v1731, %v1727
        %v1772 = vpack.c.bf16 %v1736, %v1732
        %v1773 = vpack.c.bf16 %v1737, %v1733
        %v1774 = vpack.c.bf16 %v1738, %v1734
        %v1775 = vpack.c.bf16 %v1739, %v1735
        %v1776 = vpack.c.bf16 %v1744, %v1740
        %v1777 = vpack.c.bf16 %v1745, %v1741
        %v1778 = vpack.c.bf16 %v1746, %v1742
        %v1779 = vpack.c.bf16 %v1747, %v1743
        %v1780 = vld [vmem:[#allocation11] sm:$0xff]
        %v1781 = vld [vmem:[#allocation11 + $0x8] sm:$0xff]
        %v1782 = vld [vmem:[#allocation11 + $0x10] sm:$0xff]
        %v1783 = vld [vmem:[#allocation11 + $0x18] sm:$0xf]
        %v1784 = vld [vmem:[#allocation11 + $0x1c] sm:$0xff]
        %v1785 = vld [vmem:[#allocation11 + $0x24] sm:$0xff]
        %v1786 = vld [vmem:[#allocation11 + $0x2c] sm:$0xff]
        %v1787 = vld [vmem:[#allocation11 + $0x34] sm:$0xf]
        %v1788 = vld [vmem:[#allocation11 + $0x38] sm:$0xff]
        %v1789 = vld [vmem:[#allocation11 + $0x40] sm:$0xff]
        %v1790 = vld [vmem:[#allocation11 + $0x48] sm:$0xff]
        %v1791 = vld [vmem:[#allocation11 + $0x50] sm:$0xf]
        %v1792 = vld [vmem:[#allocation11 + $0x54] sm:$0xff]
        %v1793 = vld [vmem:[#allocation11 + $0x5c] sm:$0xff]
        %v1794 = vld [vmem:[#allocation11 + $0x64] sm:$0xff]
        %v1795 = vld [vmem:[#allocation11 + $0x6c] sm:$0xf]
        %v1796 = vld [vmem:[#allocation11 + $0x70] sm:$0xff]
        %v1797 = vld [vmem:[#allocation11 + $0x78] sm:$0xff]
        %v1798 = vld [vmem:[#allocation11 + $0x80] sm:$0xff]
        %v1799 = vld [vmem:[#allocation11 + $0x88] sm:$0xf]
        %v1800 = vld [vmem:[#allocation11 + $0x8c] sm:$0xff]
        %v1801 = vld [vmem:[#allocation11 + $0x94] sm:$0xff]
        %v1802 = vld [vmem:[#allocation11 + $0x9c] sm:$0xff]
        %v1803 = vld [vmem:[#allocation11 + $0xa4] sm:$0xf]
        %v1804 = vld [vmem:[#allocation11 + $0xa8] sm:$0xff]
        %v1805 = vld [vmem:[#allocation11 + $0xb0] sm:$0xff]
        %v1806 = vld [vmem:[#allocation11 + $0xb8] sm:$0xff]
        %v1807 = vld [vmem:[#allocation11 + $0xc0] sm:$0xf]
        %v1808 = vld [vmem:[#allocation11 + $0xc4] sm:$0xff]
        %v1809 = vld [vmem:[#allocation11 + $0xcc] sm:$0xff]
        %v1810 = vld [vmem:[#allocation11 + $0xd4] sm:$0xff]
        %v1811 = vld [vmem:[#allocation11 + $0xdc] sm:$0xf]
        %v1812 = vld [vmem:[#allocation11 + $0xe0] sm:$0xff]
        %v1813 = vld [vmem:[#allocation11 + $0xe8] sm:$0xff]
        %v1814 = vld [vmem:[#allocation11 + $0xf0] sm:$0xff]
        %v1815 = vld [vmem:[#allocation11 + $0xf8] sm:$0xf]
        %v1816 = vld [vmem:[#allocation11 + $0xfc] sm:$0xff]
        %v1817 = vld [vmem:[#allocation11 + $0x104] sm:$0xff]
        %v1818 = vld [vmem:[#allocation11 + $0x10c] sm:$0xff]
        %v1819 = vld [vmem:[#allocation11 + $0x114] sm:$0xf]
        %v1820 = vld [vmem:[#allocation11 + $0x118] sm:$0xff]
        %v1821 = vld [vmem:[#allocation11 + $0x120] sm:$0xff]
        %v1822 = vld [vmem:[#allocation11 + $0x128] sm:$0xff]
        %v1823 = vld [vmem:[#allocation11 + $0x130] sm:$0xf]
        %v1824 = vld [vmem:[#allocation11 + $0x134] sm:$0xff]
        %v1825 = vld [vmem:[#allocation11 + $0x13c] sm:$0xff]
        %v1826 = vld [vmem:[#allocation11 + $0x144] sm:$0xff]
        %v1827 = vld [vmem:[#allocation11 + $0x14c] sm:$0xf]
        %v1828 = vld [vmem:[#allocation11 + $0x150] sm:$0xff]
        %v1829 = vld [vmem:[#allocation11 + $0x158] sm:$0xff]
        %v1830 = vld [vmem:[#allocation11 + $0x160] sm:$0xff]
        %v1831 = vld [vmem:[#allocation11 + $0x168] sm:$0xf]
        %v1832 = vld [vmem:[#allocation11 + $0x16c] sm:$0xff]
        %v1833 = vld [vmem:[#allocation11 + $0x174] sm:$0xff]
        %v1834 = vld [vmem:[#allocation11 + $0x17c] sm:$0xff]
        %v1835 = vld [vmem:[#allocation11 + $0x184] sm:$0xf]
        %v1836 = vld [vmem:[#allocation11 + $0x188] sm:$0xff]
        %v1837 = vld [vmem:[#allocation11 + $0x190] sm:$0xff]
        %v1838 = vld [vmem:[#allocation11 + $0x198] sm:$0xff]
        %v1839 = vld [vmem:[#allocation11 + $0x1a0] sm:$0xf]
        %v1840 = vld [vmem:[#allocation11 + $0x1a4] sm:$0xff]
        %v1841 = vld [vmem:[#allocation11 + $0x1ac] sm:$0xff]
        %v1842 = vld [vmem:[#allocation11 + $0x1b4] sm:$0xff]
        %v1843 = vld [vmem:[#allocation11 + $0x1bc] sm:$0xf]
        %v1844 = vld [vmem:[#allocation11 + $0x1c0] sm:$0xff]
        %v1845 = vld [vmem:[#allocation11 + $0x1c8] sm:$0xff]
        %v1846 = vld [vmem:[#allocation11 + $0x1d0] sm:$0xff]
        %v1847 = vld [vmem:[#allocation11 + $0x1d8] sm:$0xf]
        %v1848 = vld [vmem:[#allocation11 + $0x1dc] sm:$0xff]
        %v1849 = vld [vmem:[#allocation11 + $0x1e4] sm:$0xff]
        %v1850 = vld [vmem:[#allocation11 + $0x1ec] sm:$0xff]
        %v1851 = vld [vmem:[#allocation11 + $0x1f4] sm:$0xf]
        %v1852 = vld [vmem:[#allocation11 + $0x1f8] sm:$0xff]
        %v1853 = vld [vmem:[#allocation11 + $0x200] sm:$0xff]
        %v1854 = vld [vmem:[#allocation11 + $0x208] sm:$0xff]
        %v1855 = vld [vmem:[#allocation11 + $0x210] sm:$0xf]
        %v1856 = vld [vmem:[#allocation11 + $0x214] sm:$0xff]
        %v1857 = vld [vmem:[#allocation11 + $0x21c] sm:$0xff]
        %v1858 = vld [vmem:[#allocation11 + $0x224] sm:$0xff]
        %v1859 = vld [vmem:[#allocation11 + $0x22c] sm:$0xf]
        %v1860 = vld [vmem:[#allocation11 + $0x230] sm:$0xff]
        %v1861 = vld [vmem:[#allocation11 + $0x238] sm:$0xff]
        %v1862 = vld [vmem:[#allocation11 + $0x240] sm:$0xff]
        %v1863 = vld [vmem:[#allocation11 + $0x248] sm:$0xf]
        %v1864 = vld [vmem:[#allocation11 + $0x24c] sm:$0xff]
        %v1865 = vld [vmem:[#allocation11 + $0x254] sm:$0xff]
        %v1866 = vld [vmem:[#allocation11 + $0x25c] sm:$0xff]
        %v1867 = vld [vmem:[#allocation11 + $0x264] sm:$0xf]
        %v1868 = vld [vmem:[#allocation11 + $0x268] sm:$0xff]
        %v1869 = vld [vmem:[#allocation11 + $0x270] sm:$0xff]
        %v1870 = vld [vmem:[#allocation11 + $0x278] sm:$0xff]
        %v1871 = vld [vmem:[#allocation11 + $0x280] sm:$0xf]
        %v1872 = vld [vmem:[#allocation11 + $0x284] sm:$0xff]
        %v1873 = vld [vmem:[#allocation11 + $0x28c] sm:$0xff]
        %v1874 = vld [vmem:[#allocation11 + $0x294] sm:$0xff]
        %v1875 = vld [vmem:[#allocation11 + $0x29c] sm:$0xf]
        %v1876 = vld [vmem:[#allocation11 + $0x2a0] sm:$0xff]
        %v1877 = vld [vmem:[#allocation11 + $0x2a8] sm:$0xff]
        %v1878 = vld [vmem:[#allocation11 + $0x2b0] sm:$0xff]
        %v1879 = vld [vmem:[#allocation11 + $0x2b8] sm:$0xf]
        %v1880 = vld [vmem:[#allocation11 + $0x2bc] sm:$0xff]
        %v1881 = vld [vmem:[#allocation11 + $0x2c4] sm:$0xff]
        %v1882 = vld [vmem:[#allocation11 + $0x2cc] sm:$0xff]
        %v1883 = vld [vmem:[#allocation11 + $0x2d4] sm:$0xf]
        %v1884 = vld [vmem:[#allocation11 + $0x2d8] sm:$0xff]
        %v1885 = vld [vmem:[#allocation11 + $0x2e0] sm:$0xff]
        %v1886 = vld [vmem:[#allocation11 + $0x2e8] sm:$0xff]
        %v1887 = vld [vmem:[#allocation11 + $0x2f0] sm:$0xf]
        %v1888 = vld [vmem:[#allocation11 + $0x2f4] sm:$0xff]
        %v1889 = vld [vmem:[#allocation11 + $0x2fc] sm:$0xff]
        %v1890 = vld [vmem:[#allocation11 + $0x304] sm:$0xff]
        %v1891 = vld [vmem:[#allocation11 + $0x30c] sm:$0xf]
        %v1892 = vld [vmem:[#allocation11 + $0x310] sm:$0xff]
        %v1893 = vld [vmem:[#allocation11 + $0x318] sm:$0xff]
        %v1894 = vld [vmem:[#allocation11 + $0x320] sm:$0xff]
        %v1895 = vld [vmem:[#allocation11 + $0x328] sm:$0xf]
        %v1896 = vld [vmem:[#allocation11 + $0x32c] sm:$0xff]
        %v1897 = vld [vmem:[#allocation11 + $0x334] sm:$0xff]
        %v1898 = vld [vmem:[#allocation11 + $0x33c] sm:$0xff]
        %v1899 = vld [vmem:[#allocation11 + $0x344] sm:$0xf]
        %v1900 = vld [vmem:[#allocation11 + $0x348] sm:$0xff]
        %v1901 = vld [vmem:[#allocation11 + $0x350] sm:$0xff]
        %v1902 = vld [vmem:[#allocation11 + $0x358] sm:$0xff]
        %v1903 = vld [vmem:[#allocation11 + $0x360] sm:$0xf]
        %v1904 = vld [vmem:[#allocation11 + $0x364] sm:$0xff]
        %v1905 = vld [vmem:[#allocation11 + $0x36c] sm:$0xff]
        %v1906 = vld [vmem:[#allocation11 + $0x374] sm:$0xff]
        %v1907 = vld [vmem:[#allocation11 + $0x37c] sm:$0xf]
        %v1908 = vld [vmem:[#allocation11 + $0x380] sm:$0xff]
        %v1909 = vld [vmem:[#allocation11 + $0x388] sm:$0xff]
        %v1910 = vld [vmem:[#allocation11 + $0x390] sm:$0xff]
        %v1911 = vld [vmem:[#allocation11 + $0x398] sm:$0xf]
        %v1912 = vld [vmem:[#allocation11 + $0x39c] sm:$0xff]
        %v1913 = vld [vmem:[#allocation11 + $0x3a4] sm:$0xff]
        %v1914 = vld [vmem:[#allocation11 + $0x3ac] sm:$0xff]
        %v1915 = vld [vmem:[#allocation11 + $0x3b4] sm:$0xf]
        %v1916 = vld [vmem:[#allocation11 + $0x3b8] sm:$0xff]
        %v1917 = vld [vmem:[#allocation11 + $0x3c0] sm:$0xff]
        %v1918 = vld [vmem:[#allocation11 + $0x3c8] sm:$0xff]
        %v1919 = vld [vmem:[#allocation11 + $0x3d0] sm:$0xf]
        %v1920 = vld [vmem:[#allocation11 + $0x3d4] sm:$0xff]
        %v1921 = vld [vmem:[#allocation11 + $0x3dc] sm:$0xff]
        %v1922 = vld [vmem:[#allocation11 + $0x3e4] sm:$0xff]
        %v1923 = vld [vmem:[#allocation11 + $0x3ec] sm:$0xf]
        %v1924 = vld [vmem:[#allocation11 + $0x3f0] sm:$0xff]
        %v1925 = vld [vmem:[#allocation11 + $0x3f8] sm:$0xff]
        %v1926 = vld [vmem:[#allocation11 + $0x400] sm:$0xff]
        %v1927 = vld [vmem:[#allocation11 + $0x408] sm:$0xf]
        %v1928 = vld [vmem:[#allocation11 + $0x40c] sm:$0xff]
        %v1929 = vld [vmem:[#allocation11 + $0x414] sm:$0xff]
        %v1930 = vld [vmem:[#allocation11 + $0x41c] sm:$0xff]
        %v1931 = vld [vmem:[#allocation11 + $0x424] sm:$0xf]
        %v1932 = vld [vmem:[#allocation11 + $0x428] sm:$0xff]
        %v1933 = vld [vmem:[#allocation11 + $0x430] sm:$0xff]
        %v1934 = vld [vmem:[#allocation11 + $0x438] sm:$0xff]
        %v1935 = vld [vmem:[#allocation11 + $0x440] sm:$0xf]
        %v1936 = vld [vmem:[#allocation11 + $0x444] sm:$0xff]
        %v1937 = vld [vmem:[#allocation11 + $0x44c] sm:$0xff]
        %v1938 = vld [vmem:[#allocation11 + $0x454] sm:$0xff]
        %v1939 = vld [vmem:[#allocation11 + $0x45c] sm:$0xf]
        %v1940 = vld [vmem:[#allocation11 + $0x460] sm:$0xff]
        %v1941 = vld [vmem:[#allocation11 + $0x468] sm:$0xff]
        %v1942 = vld [vmem:[#allocation11 + $0x470] sm:$0xff]
        %v1943 = vld [vmem:[#allocation11 + $0x478] sm:$0xf]
        %v1944 = vld [vmem:[#allocation11 + $0x47c] sm:$0xff]
        %v1945 = vld [vmem:[#allocation11 + $0x484] sm:$0xff]
        %v1946 = vld [vmem:[#allocation11 + $0x48c] sm:$0xff]
        %v1947 = vld [vmem:[#allocation11 + $0x494] sm:$0xf]
        %v1948 = vld [vmem:[#allocation11 + $0x498] sm:$0xff]
        %v1949 = vld [vmem:[#allocation11 + $0x4a0] sm:$0xff]
        %v1950 = vld [vmem:[#allocation11 + $0x4a8] sm:$0xff]
        %v1951 = vld [vmem:[#allocation11 + $0x4b0] sm:$0xf]
        %v1952 = vld [vmem:[#allocation11 + $0x4b4] sm:$0xff]
        %v1953 = vld [vmem:[#allocation11 + $0x4bc] sm:$0xff]
        %v1954 = vld [vmem:[#allocation11 + $0x4c4] sm:$0xff]
        %v1955 = vld [vmem:[#allocation11 + $0x4cc] sm:$0xf]
        %v1956 = vld [vmem:[#allocation11 + $0x4d0] sm:$0xff]
        %v1957 = vld [vmem:[#allocation11 + $0x4d8] sm:$0xff]
        %v1958 = vld [vmem:[#allocation11 + $0x4e0] sm:$0xff]
        %v1959 = vld [vmem:[#allocation11 + $0x4e8] sm:$0xf]
        %v1960 = vld [vmem:[#allocation11 + $0x4ec] sm:$0xff]
        %v1961 = vld [vmem:[#allocation11 + $0x4f4] sm:$0xff]
        %v1962 = vld [vmem:[#allocation11 + $0x4fc] sm:$0xff]
        %v1963 = vld [vmem:[#allocation11 + $0x504] sm:$0xf]
        %v1964 = vld [vmem:[#allocation11 + $0x508] sm:$0xff]
        %v1965 = vld [vmem:[#allocation11 + $0x510] sm:$0xff]
        %v1966 = vld [vmem:[#allocation11 + $0x518] sm:$0xff]
        %v1967 = vld [vmem:[#allocation11 + $0x520] sm:$0xf]
        %v1968 = vld [vmem:[#allocation11 + $0x524] sm:$0xff]
        %v1969 = vld [vmem:[#allocation11 + $0x52c] sm:$0xff]
        %v1970 = vld [vmem:[#allocation11 + $0x534] sm:$0xff]
        %v1971 = vld [vmem:[#allocation11 + $0x53c] sm:$0xf]
        %v1972 = vld [vmem:[#allocation11 + $0x540] sm:$0xff]
        %v1973 = vld [vmem:[#allocation11 + $0x548] sm:$0xff]
        %v1974 = vld [vmem:[#allocation11 + $0x550] sm:$0xff]
        %v1975 = vld [vmem:[#allocation11 + $0x558] sm:$0xf]
        %v1976 = vld [vmem:[#allocation11 + $0x55c] sm:$0xff]
        %v1977 = vld [vmem:[#allocation11 + $0x564] sm:$0xff]
        %v1978 = vld [vmem:[#allocation11 + $0x56c] sm:$0xff]
        %v1979 = vld [vmem:[#allocation11 + $0x574] sm:$0xf]
        %v1980 = vld [vmem:[#allocation11 + $0x578] sm:$0xff]
        %v1981 = vld [vmem:[#allocation11 + $0x580] sm:$0xff]
        %v1982 = vld [vmem:[#allocation11 + $0x588] sm:$0xff]
        %v1983 = vld [vmem:[#allocation11 + $0x590] sm:$0xf]
        %v1984 = vld [vmem:[#allocation11 + $0x594] sm:$0xff]
        %v1985 = vld [vmem:[#allocation11 + $0x59c] sm:$0xff]
        %v1986 = vld [vmem:[#allocation11 + $0x5a4] sm:$0xff]
        %v1987 = vld [vmem:[#allocation11 + $0x5ac] sm:$0xf]
        %v1988 = vld [vmem:[#allocation11 + $0x5b0] sm:$0xff]
        %v1989 = vld [vmem:[#allocation11 + $0x5b8] sm:$0xff]
        %v1990 = vld [vmem:[#allocation11 + $0x5c0] sm:$0xff]
        %v1991 = vld [vmem:[#allocation11 + $0x5c8] sm:$0xf]
        %v1992 = vld [vmem:[#allocation11 + $0x5cc] sm:$0xff]
        %v1993 = vld [vmem:[#allocation11 + $0x5d4] sm:$0xff]
        %v1994 = vld [vmem:[#allocation11 + $0x5dc] sm:$0xff]
        %v1995 = vld [vmem:[#allocation11 + $0x5e4] sm:$0xf]
        %v1996 = vld [vmem:[#allocation11 + $0x5e8] sm:$0xff]
        %v1997 = vld [vmem:[#allocation11 + $0x5f0] sm:$0xff]
        %v1998 = vld [vmem:[#allocation11 + $0x5f8] sm:$0xff]
        %v1999 = vld [vmem:[#allocation11 + $0x600] sm:$0xf]
        %v2000 = vld [vmem:[#allocation11 + $0x604] sm:$0xff]
        %v2001 = vld [vmem:[#allocation11 + $0x60c] sm:$0xff]
        %v2002 = vld [vmem:[#allocation11 + $0x614] sm:$0xff]
        %v2003 = vld [vmem:[#allocation11 + $0x61c] sm:$0xf]
        %v2004 = vld [vmem:[#allocation11 + $0x620] sm:$0xff]
        %v2005 = vld [vmem:[#allocation11 + $0x628] sm:$0xff]
        %v2006 = vld [vmem:[#allocation11 + $0x630] sm:$0xff]
        %v2007 = vld [vmem:[#allocation11 + $0x638] sm:$0xf]
        %v2008 = vld [vmem:[#allocation11 + $0x63c] sm:$0xff]
        %v2009 = vld [vmem:[#allocation11 + $0x644] sm:$0xff]
        %v2010 = vld [vmem:[#allocation11 + $0x64c] sm:$0xff]
        %v2011 = vld [vmem:[#allocation11 + $0x654] sm:$0xf]
        %v2012 = vld [vmem:[#allocation11 + $0x658] sm:$0xff]
        %v2013 = vld [vmem:[#allocation11 + $0x660] sm:$0xff]
        %v2014 = vld [vmem:[#allocation11 + $0x668] sm:$0xff]
        %v2015 = vld [vmem:[#allocation11 + $0x670] sm:$0xf]
        %v2016 = vld [vmem:[#allocation11 + $0x674] sm:$0xff]
        %v2017 = vld [vmem:[#allocation11 + $0x67c] sm:$0xff]
        %v2018 = vld [vmem:[#allocation11 + $0x684] sm:$0xff]
        %v2019 = vld [vmem:[#allocation11 + $0x68c] sm:$0xf]
        %v2020 = vld [vmem:[#allocation11 + $0x690] sm:$0xff]
        %v2021 = vld [vmem:[#allocation11 + $0x698] sm:$0xff]
        %v2022 = vld [vmem:[#allocation11 + $0x6a0] sm:$0xff]
        %v2023 = vld [vmem:[#allocation11 + $0x6a8] sm:$0xf]
        %v2024 = vld [vmem:[#allocation11 + $0x6ac] sm:$0xff]
        %v2025 = vld [vmem:[#allocation11 + $0x6b4] sm:$0xff]
        %v2026 = vld [vmem:[#allocation11 + $0x6bc] sm:$0xff]
        %v2027 = vld [vmem:[#allocation11 + $0x6c4] sm:$0xf]
        %v2028 = vld [vmem:[#allocation11 + $0x6c8] sm:$0xff]
        %v2029 = vld [vmem:[#allocation11 + $0x6d0] sm:$0xff]
        %v2030 = vld [vmem:[#allocation11 + $0x6d8] sm:$0xff]
        %v2031 = vld [vmem:[#allocation11 + $0x6e0] sm:$0xf]
        %v2032 = vld [vmem:[#allocation11 + $0x6e4] sm:$0xff]
        %v2033 = vld [vmem:[#allocation11 + $0x6ec] sm:$0xff]
        %v2034 = vld [vmem:[#allocation11 + $0x6f4] sm:$0xff]
        %v2035 = vld [vmem:[#allocation11 + $0x6fc] sm:$0xf]
        %v2036 = vld [vmem:[#allocation13] sm:$0xff]
        %v2038 = vperm.slane %v2036, 0
        %v2039 = vperm.slane %v2036, 1
        %v2040 = vperm.slane %v2036, 2
        %v2041 = vperm.slane %v2036, 3
        %v2042 = vperm.slane %v2036, 4
        %v2043 = vperm.slane %v2036, 5
        %v2044 = vperm.slane %v2036, 6
        %v2308 = vunpack.c.l.b16 %v1780
        %v2309 = vunpack.c.h.b16 %v1780
        %v2310 = vunpack.c.l.b16 %v1781
        %v2311 = vunpack.c.h.b16 %v1781
        %v2312 = vunpack.c.l.b16 %v1782
        %v2313 = vunpack.c.h.b16 %v1782
        %v2314 = vunpack.c.l.b16 %v1783
        %v2315 = vunpack.c.l.b16 %v1784
        %v2316 = vunpack.c.h.b16 %v1784
        %v2317 = vunpack.c.l.b16 %v1785
        %v2318 = vunpack.c.h.b16 %v1785
        %v2319 = vunpack.c.l.b16 %v1786
        %v2320 = vunpack.c.h.b16 %v1786
        %v2321 = vunpack.c.l.b16 %v1787
        %v2322 = vunpack.c.l.b16 %v1788
        %v2323 = vunpack.c.h.b16 %v1788
        %v2324 = vunpack.c.l.b16 %v1789
        %v2325 = vunpack.c.h.b16 %v1789
        %v2326 = vunpack.c.l.b16 %v1790
        %v2327 = vunpack.c.h.b16 %v1790
        %v2328 = vunpack.c.l.b16 %v1791
        %v2329 = vunpack.c.l.b16 %v1792
        %v2330 = vunpack.c.h.b16 %v1792
        %v2331 = vunpack.c.l.b16 %v1793
        %v2332 = vunpack.c.h.b16 %v1793
        %v2333 = vunpack.c.l.b16 %v1794
        %v2334 = vunpack.c.h.b16 %v1794
        %v2335 = vunpack.c.l.b16 %v1795
        %v2336 = vunpack.c.l.b16 %v1796
        %v2337 = vunpack.c.h.b16 %v1796
        %v2338 = vunpack.c.l.b16 %v1797
        %v2339 = vunpack.c.h.b16 %v1797
        %v2340 = vunpack.c.l.b16 %v1798
        %v2341 = vunpack.c.h.b16 %v1798
        %v2342 = vunpack.c.l.b16 %v1799
        %v2343 = vunpack.c.l.b16 %v1800
        %v2344 = vunpack.c.h.b16 %v1800
        %v2345 = vunpack.c.l.b16 %v1801
        %v2346 = vunpack.c.h.b16 %v1801
        %v2347 = vunpack.c.l.b16 %v1802
        %v2348 = vunpack.c.h.b16 %v1802
        %v2349 = vunpack.c.l.b16 %v1803
        %v2350 = vunpack.c.l.b16 %v1804
        %v2351 = vunpack.c.h.b16 %v1804
        %v2352 = vunpack.c.l.b16 %v1805
        %v2353 = vunpack.c.h.b16 %v1805
        %v2354 = vunpack.c.l.b16 %v1806
        %v2355 = vunpack.c.h.b16 %v1806
        %v2356 = vunpack.c.l.b16 %v1807
        %v2357 = vunpack.c.l.b16 %v1808
        %v2358 = vunpack.c.h.b16 %v1808
        %v2359 = vunpack.c.l.b16 %v1809
        %v2360 = vunpack.c.h.b16 %v1809
        %v2361 = vunpack.c.l.b16 %v1810
        %v2362 = vunpack.c.h.b16 %v1810
        %v2363 = vunpack.c.l.b16 %v1811
        %v2364 = vunpack.c.l.b16 %v1812
        %v2365 = vunpack.c.h.b16 %v1812
        %v2366 = vunpack.c.l.b16 %v1813
        %v2367 = vunpack.c.h.b16 %v1813
        %v2368 = vunpack.c.l.b16 %v1814
        %v2369 = vunpack.c.h.b16 %v1814
        %v2370 = vunpack.c.l.b16 %v1815
        %v2371 = vunpack.c.l.b16 %v1816
        %v2372 = vunpack.c.h.b16 %v1816
        %v2373 = vunpack.c.l.b16 %v1817
        %v2374 = vunpack.c.h.b16 %v1817
        %v2375 = vunpack.c.l.b16 %v1818
        %v2376 = vunpack.c.h.b16 %v1818
        %v2377 = vunpack.c.l.b16 %v1819
        %v2378 = vunpack.c.l.b16 %v1820
        %v2379 = vunpack.c.h.b16 %v1820
        %v2380 = vunpack.c.l.b16 %v1821
        %v2381 = vunpack.c.h.b16 %v1821
        %v2382 = vunpack.c.l.b16 %v1822
        %v2383 = vunpack.c.h.b16 %v1822
        %v2384 = vunpack.c.l.b16 %v1823
        %v2385 = vunpack.c.l.b16 %v1824
        %v2386 = vunpack.c.h.b16 %v1824
        %v2387 = vunpack.c.l.b16 %v1825
        %v2388 = vunpack.c.h.b16 %v1825
        %v2389 = vunpack.c.l.b16 %v1826
        %v2390 = vunpack.c.h.b16 %v1826
        %v2391 = vunpack.c.l.b16 %v1827
        %v2392 = vunpack.c.l.b16 %v1828
        %v2393 = vunpack.c.h.b16 %v1828
        %v2394 = vunpack.c.l.b16 %v1829
        %v2395 = vunpack.c.h.b16 %v1829
        %v2396 = vunpack.c.l.b16 %v1830
        %v2397 = vunpack.c.h.b16 %v1830
        %v2398 = vunpack.c.l.b16 %v1831
        %v2399 = vunpack.c.l.b16 %v1832
        %v2400 = vunpack.c.h.b16 %v1832
        %v2401 = vunpack.c.l.b16 %v1833
        %v2402 = vunpack.c.h.b16 %v1833
        %v2403 = vunpack.c.l.b16 %v1834
        %v2404 = vunpack.c.h.b16 %v1834
        %v2405 = vunpack.c.l.b16 %v1835
        %v2406 = vunpack.c.l.b16 %v1836
        %v2407 = vunpack.c.h.b16 %v1836
        %v2408 = vunpack.c.l.b16 %v1837
        %v2409 = vunpack.c.h.b16 %v1837
        %v2410 = vunpack.c.l.b16 %v1838
        %v2411 = vunpack.c.h.b16 %v1838
        %v2412 = vunpack.c.l.b16 %v1839
        %v2413 = vunpack.c.l.b16 %v1840
        %v2414 = vunpack.c.h.b16 %v1840
        %v2415 = vunpack.c.l.b16 %v1841
        %v2416 = vunpack.c.h.b16 %v1841
        %v2417 = vunpack.c.l.b16 %v1842
        %v2418 = vunpack.c.h.b16 %v1842
        %v2419 = vunpack.c.l.b16 %v1843
        %v2420 = vunpack.c.l.b16 %v1844
        %v2421 = vunpack.c.h.b16 %v1844
        %v2422 = vunpack.c.l.b16 %v1845
        %v2423 = vunpack.c.h.b16 %v1845
        %v2424 = vunpack.c.l.b16 %v1846
        %v2425 = vunpack.c.h.b16 %v1846
        %v2426 = vunpack.c.l.b16 %v1847
        %v2427 = vunpack.c.l.b16 %v1848
        %v2428 = vunpack.c.h.b16 %v1848
        %v2429 = vunpack.c.l.b16 %v1849
        %v2430 = vunpack.c.h.b16 %v1849
        %v2431 = vunpack.c.l.b16 %v1850
        %v2432 = vunpack.c.h.b16 %v1850
        %v2433 = vunpack.c.l.b16 %v1851
        %v2434 = vunpack.c.l.b16 %v1852
        %v2435 = vunpack.c.h.b16 %v1852
        %v2436 = vunpack.c.l.b16 %v1853
        %v2437 = vunpack.c.h.b16 %v1853
        %v2438 = vunpack.c.l.b16 %v1854
        %v2439 = vunpack.c.h.b16 %v1854
        %v2440 = vunpack.c.l.b16 %v1855
        %v2441 = vunpack.c.l.b16 %v1856
        %v2442 = vunpack.c.h.b16 %v1856
        %v2443 = vunpack.c.l.b16 %v1857
        %v2444 = vunpack.c.h.b16 %v1857
        %v2445 = vunpack.c.l.b16 %v1858
        %v2446 = vunpack.c.h.b16 %v1858
        %v2447 = vunpack.c.l.b16 %v1859
        %v2448 = vunpack.c.l.b16 %v1860
        %v2449 = vunpack.c.h.b16 %v1860
        %v2450 = vunpack.c.l.b16 %v1861
        %v2451 = vunpack.c.h.b16 %v1861
        %v2452 = vunpack.c.l.b16 %v1862
        %v2453 = vunpack.c.h.b16 %v1862
        %v2454 = vunpack.c.l.b16 %v1863
        %v2455 = vunpack.c.l.b16 %v1864
        %v2456 = vunpack.c.h.b16 %v1864
        %v2457 = vunpack.c.l.b16 %v1865
        %v2458 = vunpack.c.h.b16 %v1865
        %v2459 = vunpack.c.l.b16 %v1866
        %v2460 = vunpack.c.h.b16 %v1866
        %v2461 = vunpack.c.l.b16 %v1867
        %v2462 = vunpack.c.l.b16 %v1868
        %v2463 = vunpack.c.h.b16 %v1868
        %v2464 = vunpack.c.l.b16 %v1869
        %v2465 = vunpack.c.h.b16 %v1869
        %v2466 = vunpack.c.l.b16 %v1870
        %v2467 = vunpack.c.h.b16 %v1870
        %v2468 = vunpack.c.l.b16 %v1871
        %v2469 = vunpack.c.l.b16 %v1872
        %v2470 = vunpack.c.h.b16 %v1872
        %v2471 = vunpack.c.l.b16 %v1873
        %v2472 = vunpack.c.h.b16 %v1873
        %v2473 = vunpack.c.l.b16 %v1874
        %v2474 = vunpack.c.h.b16 %v1874
        %v2475 = vunpack.c.l.b16 %v1875
        %v2476 = vunpack.c.l.b16 %v1876
        %v2477 = vunpack.c.h.b16 %v1876
        %v2478 = vunpack.c.l.b16 %v1877
        %v2479 = vunpack.c.h.b16 %v1877
        %v2480 = vunpack.c.l.b16 %v1878
        %v2481 = vunpack.c.h.b16 %v1878
        %v2482 = vunpack.c.l.b16 %v1879
        %v2483 = vunpack.c.l.b16 %v1880
        %v2484 = vunpack.c.h.b16 %v1880
        %v2485 = vunpack.c.l.b16 %v1881
        %v2486 = vunpack.c.h.b16 %v1881
        %v2487 = vunpack.c.l.b16 %v1882
        %v2488 = vunpack.c.h.b16 %v1882
        %v2489 = vunpack.c.l.b16 %v1883
        %v2490 = vunpack.c.l.b16 %v1884
        %v2491 = vunpack.c.h.b16 %v1884
        %v2492 = vunpack.c.l.b16 %v1885
        %v2493 = vunpack.c.h.b16 %v1885
        %v2494 = vunpack.c.l.b16 %v1886
        %v2495 = vunpack.c.h.b16 %v1886
        %v2496 = vunpack.c.l.b16 %v1887
        %v2497 = vunpack.c.l.b16 %v1888
        %v2498 = vunpack.c.h.b16 %v1888
        %v2499 = vunpack.c.l.b16 %v1889
        %v2500 = vunpack.c.h.b16 %v1889
        %v2501 = vunpack.c.l.b16 %v1890
        %v2502 = vunpack.c.h.b16 %v1890
        %v2503 = vunpack.c.l.b16 %v1891
        %v2504 = vunpack.c.l.b16 %v1892
        %v2505 = vunpack.c.h.b16 %v1892
        %v2506 = vunpack.c.l.b16 %v1893
        %v2507 = vunpack.c.h.b16 %v1893
        %v2508 = vunpack.c.l.b16 %v1894
        %v2509 = vunpack.c.h.b16 %v1894
        %v2510 = vunpack.c.l.b16 %v1895
        %v2511 = vunpack.c.l.b16 %v1896
        %v2512 = vunpack.c.h.b16 %v1896
        %v2513 = vunpack.c.l.b16 %v1897
        %v2514 = vunpack.c.h.b16 %v1897
        %v2515 = vunpack.c.l.b16 %v1898
        %v2516 = vunpack.c.h.b16 %v1898
        %v2517 = vunpack.c.l.b16 %v1899
        %v2518 = vunpack.c.l.b16 %v1900
        %v2519 = vunpack.c.h.b16 %v1900
        %v2520 = vunpack.c.l.b16 %v1901
        %v2521 = vunpack.c.h.b16 %v1901
        %v2522 = vunpack.c.l.b16 %v1902
        %v2523 = vunpack.c.h.b16 %v1902
        %v2524 = vunpack.c.l.b16 %v1903
        %v2525 = vunpack.c.l.b16 %v1904
        %v2526 = vunpack.c.h.b16 %v1904
        %v2527 = vunpack.c.l.b16 %v1905
        %v2528 = vunpack.c.h.b16 %v1905
        %v2529 = vunpack.c.l.b16 %v1906
        %v2530 = vunpack.c.h.b16 %v1906
        %v2531 = vunpack.c.l.b16 %v1907
        %v2532 = vunpack.c.l.b16 %v1908
        %v2533 = vunpack.c.h.b16 %v1908
        %v2534 = vunpack.c.l.b16 %v1909
        %v2535 = vunpack.c.h.b16 %v1909
        %v2536 = vunpack.c.l.b16 %v1910
        %v2537 = vunpack.c.h.b16 %v1910
        %v2538 = vunpack.c.l.b16 %v1911
        %v2539 = vunpack.c.l.b16 %v1912
        %v2540 = vunpack.c.h.b16 %v1912
        %v2541 = vunpack.c.l.b16 %v1913
        %v2542 = vunpack.c.h.b16 %v1913
        %v2543 = vunpack.c.l.b16 %v1914
        %v2544 = vunpack.c.h.b16 %v1914
        %v2545 = vunpack.c.l.b16 %v1915
        %v2546 = vunpack.c.l.b16 %v1916
        %v2547 = vunpack.c.h.b16 %v1916
        %v2548 = vunpack.c.l.b16 %v1917
        %v2549 = vunpack.c.h.b16 %v1917
        %v2550 = vunpack.c.l.b16 %v1918
        %v2551 = vunpack.c.h.b16 %v1918
        %v2552 = vunpack.c.l.b16 %v1919
        %v2553 = vunpack.c.l.b16 %v1920
        %v2554 = vunpack.c.h.b16 %v1920
        %v2555 = vunpack.c.l.b16 %v1921
        %v2556 = vunpack.c.h.b16 %v1921
        %v2557 = vunpack.c.l.b16 %v1922
        %v2558 = vunpack.c.h.b16 %v1922
        %v2559 = vunpack.c.l.b16 %v1923
        %v2560 = vunpack.c.l.b16 %v1924
        %v2561 = vunpack.c.h.b16 %v1924
        %v2562 = vunpack.c.l.b16 %v1925
        %v2563 = vunpack.c.h.b16 %v1925
        %v2564 = vunpack.c.l.b16 %v1926
        %v2565 = vunpack.c.h.b16 %v1926
        %v2566 = vunpack.c.l.b16 %v1927
        %v2567 = vunpack.c.l.b16 %v1928
        %v2568 = vunpack.c.h.b16 %v1928
        %v2569 = vunpack.c.l.b16 %v1929
        %v2570 = vunpack.c.h.b16 %v1929
        %v2571 = vunpack.c.l.b16 %v1930
        %v2572 = vunpack.c.h.b16 %v1930
        %v2573 = vunpack.c.l.b16 %v1931
        %v2574 = vunpack.c.l.b16 %v1932
        %v2575 = vunpack.c.h.b16 %v1932
        %v2576 = vunpack.c.l.b16 %v1933
        %v2577 = vunpack.c.h.b16 %v1933
        %v2578 = vunpack.c.l.b16 %v1934
        %v2579 = vunpack.c.h.b16 %v1934
        %v2580 = vunpack.c.l.b16 %v1935
        %v2581 = vunpack.c.l.b16 %v1936
        %v2582 = vunpack.c.h.b16 %v1936
        %v2583 = vunpack.c.l.b16 %v1937
        %v2584 = vunpack.c.h.b16 %v1937
        %v2585 = vunpack.c.l.b16 %v1938
        %v2586 = vunpack.c.h.b16 %v1938
        %v2587 = vunpack.c.l.b16 %v1939
        %v2588 = vunpack.c.l.b16 %v1940
        %v2589 = vunpack.c.h.b16 %v1940
        %v2590 = vunpack.c.l.b16 %v1941
        %v2591 = vunpack.c.h.b16 %v1941
        %v2592 = vunpack.c.l.b16 %v1942
        %v2593 = vunpack.c.h.b16 %v1942
        %v2594 = vunpack.c.l.b16 %v1943
        %v2595 = vunpack.c.l.b16 %v1944
        %v2596 = vunpack.c.h.b16 %v1944
        %v2597 = vunpack.c.l.b16 %v1945
        %v2598 = vunpack.c.h.b16 %v1945
        %v2599 = vunpack.c.l.b16 %v1946
        %v2600 = vunpack.c.h.b16 %v1946
        %v2601 = vunpack.c.l.b16 %v1947
        %v2602 = vunpack.c.l.b16 %v1948
        %v2603 = vunpack.c.h.b16 %v1948
        %v2604 = vunpack.c.l.b16 %v1949
        %v2605 = vunpack.c.h.b16 %v1949
        %v2606 = vunpack.c.l.b16 %v1950
        %v2607 = vunpack.c.h.b16 %v1950
        %v2608 = vunpack.c.l.b16 %v1951
        %v2609 = vunpack.c.l.b16 %v1952
        %v2610 = vunpack.c.h.b16 %v1952
        %v2611 = vunpack.c.l.b16 %v1953
        %v2612 = vunpack.c.h.b16 %v1953
        %v2613 = vunpack.c.l.b16 %v1954
        %v2614 = vunpack.c.h.b16 %v1954
        %v2615 = vunpack.c.l.b16 %v1955
        %v2616 = vunpack.c.l.b16 %v1956
        %v2617 = vunpack.c.h.b16 %v1956
        %v2618 = vunpack.c.l.b16 %v1957
        %v2619 = vunpack.c.h.b16 %v1957
        %v2620 = vunpack.c.l.b16 %v1958
        %v2621 = vunpack.c.h.b16 %v1958
        %v2622 = vunpack.c.l.b16 %v1959
        %v2623 = vunpack.c.l.b16 %v1960
        %v2624 = vunpack.c.h.b16 %v1960
        %v2625 = vunpack.c.l.b16 %v1961
        %v2626 = vunpack.c.h.b16 %v1961
        %v2627 = vunpack.c.l.b16 %v1962
        %v2628 = vunpack.c.h.b16 %v1962
        %v2629 = vunpack.c.l.b16 %v1963
        %v2630 = vunpack.c.l.b16 %v1964
        %v2631 = vunpack.c.h.b16 %v1964
        %v2632 = vunpack.c.l.b16 %v1965
        %v2633 = vunpack.c.h.b16 %v1965
        %v2634 = vunpack.c.l.b16 %v1966
        %v2635 = vunpack.c.h.b16 %v1966
        %v2636 = vunpack.c.l.b16 %v1967
        %v2637 = vunpack.c.l.b16 %v1968
        %v2638 = vunpack.c.h.b16 %v1968
        %v2639 = vunpack.c.l.b16 %v1969
        %v2640 = vunpack.c.h.b16 %v1969
        %v2641 = vunpack.c.l.b16 %v1970
        %v2642 = vunpack.c.h.b16 %v1970
        %v2643 = vunpack.c.l.b16 %v1971
        %v2644 = vunpack.c.l.b16 %v1972
        %v2645 = vunpack.c.h.b16 %v1972
        %v2646 = vunpack.c.l.b16 %v1973
        %v2647 = vunpack.c.h.b16 %v1973
        %v2648 = vunpack.c.l.b16 %v1974
        %v2649 = vunpack.c.h.b16 %v1974
        %v2650 = vunpack.c.l.b16 %v1975
        %v2651 = vunpack.c.l.b16 %v1976
        %v2652 = vunpack.c.h.b16 %v1976
        %v2653 = vunpack.c.l.b16 %v1977
        %v2654 = vunpack.c.h.b16 %v1977
        %v2655 = vunpack.c.l.b16 %v1978
        %v2656 = vunpack.c.h.b16 %v1978
        %v2657 = vunpack.c.l.b16 %v1979
        %v2658 = vunpack.c.l.b16 %v1980
        %v2659 = vunpack.c.h.b16 %v1980
        %v2660 = vunpack.c.l.b16 %v1981
        %v2661 = vunpack.c.h.b16 %v1981
        %v2662 = vunpack.c.l.b16 %v1982
        %v2663 = vunpack.c.h.b16 %v1982
        %v2664 = vunpack.c.l.b16 %v1983
        %v2665 = vunpack.c.l.b16 %v1984
        %v2666 = vunpack.c.h.b16 %v1984
        %v2667 = vunpack.c.l.b16 %v1985
        %v2668 = vunpack.c.h.b16 %v1985
        %v2669 = vunpack.c.l.b16 %v1986
        %v2670 = vunpack.c.h.b16 %v1986
        %v2671 = vunpack.c.l.b16 %v1987
        %v2672 = vunpack.c.l.b16 %v1988
        %v2673 = vunpack.c.h.b16 %v1988
        %v2674 = vunpack.c.l.b16 %v1989
        %v2675 = vunpack.c.h.b16 %v1989
        %v2676 = vunpack.c.l.b16 %v1990
        %v2677 = vunpack.c.h.b16 %v1990
        %v2678 = vunpack.c.l.b16 %v1991
        %v2679 = vunpack.c.l.b16 %v1992
        %v2680 = vunpack.c.h.b16 %v1992
        %v2681 = vunpack.c.l.b16 %v1993
        %v2682 = vunpack.c.h.b16 %v1993
        %v2683 = vunpack.c.l.b16 %v1994
        %v2684 = vunpack.c.h.b16 %v1994
        %v2685 = vunpack.c.l.b16 %v1995
        %v2686 = vunpack.c.l.b16 %v1996
        %v2687 = vunpack.c.h.b16 %v1996
        %v2688 = vunpack.c.l.b16 %v1997
        %v2689 = vunpack.c.h.b16 %v1997
        %v2690 = vunpack.c.l.b16 %v1998
        %v2691 = vunpack.c.h.b16 %v1998
        %v2692 = vunpack.c.l.b16 %v1999
        %v2693 = vunpack.c.l.b16 %v2000
        %v2694 = vunpack.c.h.b16 %v2000
        %v2695 = vunpack.c.l.b16 %v2001
        %v2696 = vunpack.c.h.b16 %v2001
        %v2697 = vunpack.c.l.b16 %v2002
        %v2698 = vunpack.c.h.b16 %v2002
        %v2699 = vunpack.c.l.b16 %v2003
        %v2700 = vunpack.c.l.b16 %v2004
        %v2701 = vunpack.c.h.b16 %v2004
        %v2702 = vunpack.c.l.b16 %v2005
        %v2703 = vunpack.c.h.b16 %v2005
        %v2704 = vunpack.c.l.b16 %v2006
        %v2705 = vunpack.c.h.b16 %v2006
        %v2706 = vunpack.c.l.b16 %v2007
        %v2707 = vunpack.c.l.b16 %v2008
        %v2708 = vunpack.c.h.b16 %v2008
        %v2709 = vunpack.c.l.b16 %v2009
        %v2710 = vunpack.c.h.b16 %v2009
        %v2711 = vunpack.c.l.b16 %v2010
        %v2712 = vunpack.c.h.b16 %v2010
        %v2713 = vunpack.c.l.b16 %v2011
        %v2714 = vunpack.c.l.b16 %v2012
        %v2715 = vunpack.c.h.b16 %v2012
        %v2716 = vunpack.c.l.b16 %v2013
        %v2717 = vunpack.c.h.b16 %v2013
        %v2718 = vunpack.c.l.b16 %v2014
        %v2719 = vunpack.c.h.b16 %v2014
        %v2720 = vunpack.c.l.b16 %v2015
        %v2721 = vunpack.c.l.b16 %v2016
        %v2722 = vunpack.c.h.b16 %v2016
        %v2723 = vunpack.c.l.b16 %v2017
        %v2724 = vunpack.c.h.b16 %v2017
        %v2725 = vunpack.c.l.b16 %v2018
        %v2726 = vunpack.c.h.b16 %v2018
        %v2727 = vunpack.c.l.b16 %v2019
        %v2728 = vunpack.c.l.b16 %v2020
        %v2729 = vunpack.c.h.b16 %v2020
        %v2730 = vunpack.c.l.b16 %v2021
        %v2731 = vunpack.c.h.b16 %v2021
        %v2732 = vunpack.c.l.b16 %v2022
        %v2733 = vunpack.c.h.b16 %v2022
        %v2734 = vunpack.c.l.b16 %v2023
        %v2735 = vunpack.c.l.b16 %v2024
        %v2736 = vunpack.c.h.b16 %v2024
        %v2737 = vunpack.c.l.b16 %v2025
        %v2738 = vunpack.c.h.b16 %v2025
        %v2739 = vunpack.c.l.b16 %v2026
        %v2740 = vunpack.c.h.b16 %v2026
        %v2741 = vunpack.c.l.b16 %v2027
        %v2742 = vunpack.c.l.b16 %v2028
        %v2743 = vunpack.c.h.b16 %v2028
        %v2744 = vunpack.c.l.b16 %v2029
        %v2745 = vunpack.c.h.b16 %v2029
        %v2746 = vunpack.c.l.b16 %v2030
        %v2747 = vunpack.c.h.b16 %v2030
        %v2748 = vunpack.c.l.b16 %v2031
        %v2749 = vunpack.c.l.b16 %v2032
        %v2750 = vunpack.c.h.b16 %v2032
        %v2751 = vunpack.c.l.b16 %v2033
        %v2752 = vunpack.c.h.b16 %v2033
        %v2753 = vunpack.c.l.b16 %v2034
        %v2754 = vunpack.c.h.b16 %v2034
        %v2755 = vunpack.c.l.b16 %v2035
        %v2756 = vpack.c.b16 %v2315, %v2308
        %v2757 = vpack.c.b16 %v2316, %v2309
        %v2758 = vpack.c.b16 %v2317, %v2310
        %v2759 = vpack.c.b16 %v2318, %v2311
        %v2760 = vpack.c.b16 %v2319, %v2312
        %v2761 = vpack.c.b16 %v2320, %v2313
        %v2762 = vpack.c.b16 %v2321, %v2314
        %v2763 = vpack.c.b16 %v2329, %v2322
        %v2764 = vpack.c.b16 %v2330, %v2323
        %v2765 = vpack.c.b16 %v2331, %v2324
        %v2766 = vpack.c.b16 %v2332, %v2325
        %v2767 = vpack.c.b16 %v2333, %v2326
        %v2768 = vpack.c.b16 %v2334, %v2327
        %v2769 = vpack.c.b16 %v2335, %v2328
        %v2770 = vpack.c.b16 %v2343, %v2336
        %v2771 = vpack.c.b16 %v2344, %v2337
        %v2772 = vpack.c.b16 %v2345, %v2338
        %v2773 = vpack.c.b16 %v2346, %v2339
        %v2774 = vpack.c.b16 %v2347, %v2340
        %v2775 = vpack.c.b16 %v2348, %v2341
        %v2776 = vpack.c.b16 %v2349, %v2342
        %v2777 = vpack.c.b16 %v2357, %v2350
        %v2778 = vpack.c.b16 %v2358, %v2351
        %v2779 = vpack.c.b16 %v2359, %v2352
        %v2780 = vpack.c.b16 %v2360, %v2353
        %v2781 = vpack.c.b16 %v2361, %v2354
        %v2782 = vpack.c.b16 %v2362, %v2355
        %v2783 = vpack.c.b16 %v2363, %v2356
        %v2784 = vpack.c.b16 %v2371, %v2364
        %v2785 = vpack.c.b16 %v2372, %v2365
        %v2786 = vpack.c.b16 %v2373, %v2366
        %v2787 = vpack.c.b16 %v2374, %v2367
        %v2788 = vpack.c.b16 %v2375, %v2368
        %v2789 = vpack.c.b16 %v2376, %v2369
        %v2790 = vpack.c.b16 %v2377, %v2370
        %v2791 = vpack.c.b16 %v2385, %v2378
        %v2792 = vpack.c.b16 %v2386, %v2379
        %v2793 = vpack.c.b16 %v2387, %v2380
        %v2794 = vpack.c.b16 %v2388, %v2381
        %v2795 = vpack.c.b16 %v2389, %v2382
        %v2796 = vpack.c.b16 %v2390, %v2383
        %v2797 = vpack.c.b16 %v2391, %v2384
        %v2798 = vpack.c.b16 %v2399, %v2392
        %v2799 = vpack.c.b16 %v2400, %v2393
        %v2800 = vpack.c.b16 %v2401, %v2394
        %v2801 = vpack.c.b16 %v2402, %v2395
        %v2802 = vpack.c.b16 %v2403, %v2396
        %v2803 = vpack.c.b16 %v2404, %v2397
        %v2804 = vpack.c.b16 %v2405, %v2398
        %v2805 = vpack.c.b16 %v2413, %v2406
        %v2806 = vpack.c.b16 %v2414, %v2407
        %v2807 = vpack.c.b16 %v2415, %v2408
        %v2808 = vpack.c.b16 %v2416, %v2409
        %v2809 = vpack.c.b16 %v2417, %v2410
        %v2810 = vpack.c.b16 %v2418, %v2411
        %v2811 = vpack.c.b16 %v2419, %v2412
        %v2812 = vpack.c.b16 %v2427, %v2420
        %v2813 = vpack.c.b16 %v2428, %v2421
        %v2814 = vpack.c.b16 %v2429, %v2422
        %v2815 = vpack.c.b16 %v2430, %v2423
        %v2816 = vpack.c.b16 %v2431, %v2424
        %v2817 = vpack.c.b16 %v2432, %v2425
        %v2818 = vpack.c.b16 %v2433, %v2426
        %v2819 = vpack.c.b16 %v2441, %v2434
        %v2820 = vpack.c.b16 %v2442, %v2435
        %v2821 = vpack.c.b16 %v2443, %v2436
        %v2822 = vpack.c.b16 %v2444, %v2437
        %v2823 = vpack.c.b16 %v2445, %v2438
        %v2824 = vpack.c.b16 %v2446, %v2439
        %v2825 = vpack.c.b16 %v2447, %v2440
        %v2826 = vpack.c.b16 %v2455, %v2448
        %v2827 = vpack.c.b16 %v2456, %v2449
        %v2828 = vpack.c.b16 %v2457, %v2450
        %v2829 = vpack.c.b16 %v2458, %v2451
        %v2830 = vpack.c.b16 %v2459, %v2452
        %v2831 = vpack.c.b16 %v2460, %v2453
        %v2832 = vpack.c.b16 %v2461, %v2454
        %v2833 = vpack.c.b16 %v2469, %v2462
        %v2834 = vpack.c.b16 %v2470, %v2463
        %v2835 = vpack.c.b16 %v2471, %v2464
        %v2836 = vpack.c.b16 %v2472, %v2465
        %v2837 = vpack.c.b16 %v2473, %v2466
        %v2838 = vpack.c.b16 %v2474, %v2467
        %v2839 = vpack.c.b16 %v2475, %v2468
        %v2840 = vpack.c.b16 %v2483, %v2476
        %v2841 = vpack.c.b16 %v2484, %v2477
        %v2842 = vpack.c.b16 %v2485, %v2478
        %v2843 = vpack.c.b16 %v2486, %v2479
        %v2844 = vpack.c.b16 %v2487, %v2480
        %v2845 = vpack.c.b16 %v2488, %v2481
        %v2846 = vpack.c.b16 %v2489, %v2482
        %v2847 = vpack.c.b16 %v2497, %v2490
        %v2848 = vpack.c.b16 %v2498, %v2491
        %v2849 = vpack.c.b16 %v2499, %v2492
        %v2850 = vpack.c.b16 %v2500, %v2493
        %v2851 = vpack.c.b16 %v2501, %v2494
        %v2852 = vpack.c.b16 %v2502, %v2495
        %v2853 = vpack.c.b16 %v2503, %v2496
        %v2854 = vpack.c.b16 %v2511, %v2504
        %v2855 = vpack.c.b16 %v2512, %v2505
        %v2856 = vpack.c.b16 %v2513, %v2506
        %v2857 = vpack.c.b16 %v2514, %v2507
        %v2858 = vpack.c.b16 %v2515, %v2508
        %v2859 = vpack.c.b16 %v2516, %v2509
        %v2860 = vpack.c.b16 %v2517, %v2510
        %v2861 = vpack.c.b16 %v2525, %v2518
        %v2862 = vpack.c.b16 %v2526, %v2519
        %v2863 = vpack.c.b16 %v2527, %v2520
        %v2864 = vpack.c.b16 %v2528, %v2521
        %v2865 = vpack.c.b16 %v2529, %v2522
        %v2866 = vpack.c.b16 %v2530, %v2523
        %v2867 = vpack.c.b16 %v2531, %v2524
        %v2868 = vpack.c.b16 %v2539, %v2532
        %v2869 = vpack.c.b16 %v2540, %v2533
        %v2870 = vpack.c.b16 %v2541, %v2534
        %v2871 = vpack.c.b16 %v2542, %v2535
        %v2872 = vpack.c.b16 %v2543, %v2536
        %v2873 = vpack.c.b16 %v2544, %v2537
        %v2874 = vpack.c.b16 %v2545, %v2538
        %v2875 = vpack.c.b16 %v2553, %v2546
        %v2876 = vpack.c.b16 %v2554, %v2547
        %v2877 = vpack.c.b16 %v2555, %v2548
        %v2878 = vpack.c.b16 %v2556, %v2549
        %v2879 = vpack.c.b16 %v2557, %v2550
        %v2880 = vpack.c.b16 %v2558, %v2551
        %v2881 = vpack.c.b16 %v2559, %v2552
        %v2882 = vpack.c.b16 %v2567, %v2560
        %v2883 = vpack.c.b16 %v2568, %v2561
        %v2884 = vpack.c.b16 %v2569, %v2562
        %v2885 = vpack.c.b16 %v2570, %v2563
        %v2886 = vpack.c.b16 %v2571, %v2564
        %v2887 = vpack.c.b16 %v2572, %v2565
        %v2888 = vpack.c.b16 %v2573, %v2566
        %v2889 = vpack.c.b16 %v2581, %v2574
        %v2890 = vpack.c.b16 %v2582, %v2575
        %v2891 = vpack.c.b16 %v2583, %v2576
        %v2892 = vpack.c.b16 %v2584, %v2577
        %v2893 = vpack.c.b16 %v2585, %v2578
        %v2894 = vpack.c.b16 %v2586, %v2579
        %v2895 = vpack.c.b16 %v2587, %v2580
        %v2896 = vpack.c.b16 %v2595, %v2588
        %v2897 = vpack.c.b16 %v2596, %v2589
        %v2898 = vpack.c.b16 %v2597, %v2590
        %v2899 = vpack.c.b16 %v2598, %v2591
        %v2900 = vpack.c.b16 %v2599, %v2592
        %v2901 = vpack.c.b16 %v2600, %v2593
        %v2902 = vpack.c.b16 %v2601, %v2594
        %v2903 = vpack.c.b16 %v2609, %v2602
        %v2904 = vpack.c.b16 %v2610, %v2603
        %v2905 = vpack.c.b16 %v2611, %v2604
        %v2906 = vpack.c.b16 %v2612, %v2605
        %v2907 = vpack.c.b16 %v2613, %v2606
        %v2908 = vpack.c.b16 %v2614, %v2607
        %v2909 = vpack.c.b16 %v2615, %v2608
        %v2910 = vpack.c.b16 %v2623, %v2616
        %v2911 = vpack.c.b16 %v2624, %v2617
        %v2912 = vpack.c.b16 %v2625, %v2618
        %v2913 = vpack.c.b16 %v2626, %v2619
        %v2914 = vpack.c.b16 %v2627, %v2620
        %v2915 = vpack.c.b16 %v2628, %v2621
        %v2916 = vpack.c.b16 %v2629, %v2622
        %v2917 = vpack.c.b16 %v2637, %v2630
        %v2918 = vpack.c.b16 %v2638, %v2631
        %v2919 = vpack.c.b16 %v2639, %v2632
        %v2920 = vpack.c.b16 %v2640, %v2633
        %v2921 = vpack.c.b16 %v2641, %v2634
        %v2922 = vpack.c.b16 %v2642, %v2635
        %v2923 = vpack.c.b16 %v2643, %v2636
        %v2924 = vpack.c.b16 %v2651, %v2644
        %v2925 = vpack.c.b16 %v2652, %v2645
        %v2926 = vpack.c.b16 %v2653, %v2646
        %v2927 = vpack.c.b16 %v2654, %v2647
        %v2928 = vpack.c.b16 %v2655, %v2648
        %v2929 = vpack.c.b16 %v2656, %v2649
        %v2930 = vpack.c.b16 %v2657, %v2650
        %v2931 = vpack.c.b16 %v2665, %v2658
        %v2932 = vpack.c.b16 %v2666, %v2659
        %v2933 = vpack.c.b16 %v2667, %v2660
        %v2934 = vpack.c.b16 %v2668, %v2661
        %v2935 = vpack.c.b16 %v2669, %v2662
        %v2936 = vpack.c.b16 %v2670, %v2663
        %v2937 = vpack.c.b16 %v2671, %v2664
        %v2938 = vpack.c.b16 %v2679, %v2672
        %v2939 = vpack.c.b16 %v2680, %v2673
        %v2940 = vpack.c.b16 %v2681, %v2674
        %v2941 = vpack.c.b16 %v2682, %v2675
        %v2942 = vpack.c.b16 %v2683, %v2676
        %v2943 = vpack.c.b16 %v2684, %v2677
        %v2944 = vpack.c.b16 %v2685, %v2678
        %v2945 = vpack.c.b16 %v2693, %v2686
        %v2946 = vpack.c.b16 %v2694, %v2687
        %v2947 = vpack.c.b16 %v2695, %v2688
        %v2948 = vpack.c.b16 %v2696, %v2689
        %v2949 = vpack.c.b16 %v2697, %v2690
        %v2950 = vpack.c.b16 %v2698, %v2691
        %v2951 = vpack.c.b16 %v2699, %v2692
        %v2952 = vpack.c.b16 %v2707, %v2700
        %v2953 = vpack.c.b16 %v2708, %v2701
        %v2954 = vpack.c.b16 %v2709, %v2702
        %v2955 = vpack.c.b16 %v2710, %v2703
        %v2956 = vpack.c.b16 %v2711, %v2704
        %v2957 = vpack.c.b16 %v2712, %v2705
        %v2958 = vpack.c.b16 %v2713, %v2706
        %v2959 = vpack.c.b16 %v2721, %v2714
        %v2960 = vpack.c.b16 %v2722, %v2715
        %v2961 = vpack.c.b16 %v2723, %v2716
        %v2962 = vpack.c.b16 %v2724, %v2717
        %v2963 = vpack.c.b16 %v2725, %v2718
        %v2964 = vpack.c.b16 %v2726, %v2719
        %v2965 = vpack.c.b16 %v2727, %v2720
        %v2966 = vpack.c.b16 %v2735, %v2728
        %v2967 = vpack.c.b16 %v2736, %v2729
        %v2968 = vpack.c.b16 %v2737, %v2730
        %v2969 = vpack.c.b16 %v2738, %v2731
        %v2970 = vpack.c.b16 %v2739, %v2732
        %v2971 = vpack.c.b16 %v2740, %v2733
        %v2972 = vpack.c.b16 %v2741, %v2734
        %v2973 = vpack.c.b16 %v2749, %v2742
        %v2974 = vpack.c.b16 %v2750, %v2743
        %v2975 = vpack.c.b16 %v2751, %v2744
        %v2976 = vpack.c.b16 %v2752, %v2745
        %v2977 = vpack.c.b16 %v2753, %v2746
        %v2978 = vpack.c.b16 %v2754, %v2747
        %v2979 = vpack.c.b16 %v2755, %v2748
        %3204 = vmatpush.bf16.msra.mxu0 %v2805
        %3205 = vmatpush.bf16.msra.mxu0 %v2798
        %3206 = vmatpush.bf16.msra.mxu0 %v2791
        %3207 = vmatpush.bf16.msra.mxu0 %v2784
        %3208 = vmatpush.bf16.msra.mxu0 %v2777
        %3209 = vmatpush.bf16.msra.mxu0 %v2770
        %3210 = vmatpush.bf16.msra.mxu0 %v2763
        %3211 = vmatpush.bf16.msra.mxu0 %v2756
        %3212 = vmatmul.bf16.gmra.mxu0 %v1748
        %v3213 = vpop.f32.mrf.mxu0
        %v3214 = vadd.f32 %v2038, %v3213
        %v3215 = vpop.f32.mrf.mxu0
        %v3216 = vadd.f32 %v2038, %v3215
        %3217 = vmatmul.bf16.gmra.mxu0 %v1752
        %v3218 = vpop.f32.mrf.mxu0
        %v3219 = vadd.f32 %v2038, %v3218
        %v3220 = vpop.f32.mrf.mxu0
        %v3221 = vadd.f32 %v2038, %v3220
        %3222 = vmatmul.bf16.gmra.mxu0 %v1756
        %v3223 = vpop.f32.mrf.mxu0
        %v3224 = vadd.f32 %v2038, %v3223
        %v3225 = vpop.f32.mrf.mxu0
        %v3226 = vadd.f32 %v2038, %v3225
        %3227 = vmatmul.bf16.gmra.mxu0 %v1760
        %v3228 = vpop.f32.mrf.mxu0
        %v3229 = vadd.f32 %v2038, %v3228
        %v3230 = vpop.f32.mrf.mxu0
        %v3231 = vadd.f32 %v2038, %v3230
        %3232 = vmatmul.bf16.gmra.mxu0 %v1764
        %v3233 = vpop.f32.mrf.mxu0
        %v3234 = vadd.f32 %v2038, %v3233
        %v3235 = vpop.f32.mrf.mxu0
        %v3236 = vadd.f32 %v2038, %v3235
        %3237 = vmatmul.bf16.gmra.mxu0 %v1768
        %v3238 = vpop.f32.mrf.mxu0
        %v3239 = vadd.f32 %v2038, %v3238
        %v3240 = vpop.f32.mrf.mxu0
        %v3241 = vadd.f32 %v2038, %v3240
        %3242 = vmatmul.bf16.gmra.mxu0 %v1772
        %v3243 = vpop.f32.mrf.mxu0
        %v3244 = vadd.f32 %v2038, %v3243
        %v3245 = vpop.f32.mrf.mxu0
        %v3246 = vadd.f32 %v2038, %v3245
        %3247 = vmatmul.bf16.gmra.mxu0 %v1776
        %v3248 = vpop.f32.mrf.mxu0
        %v3249 = vadd.f32 %v2038, %v3248
        %v3250 = vpop.f32.mrf.mxu0
        %v3251 = vadd.f32 %v2038, %v3250
        %3252 = vdwg.mxu0
        %3253 = vmatpush.bf16.msra.mxu0 %v2861
        %3254 = vmatpush.bf16.msra.mxu0 %v2854
        %3255 = vmatpush.bf16.msra.mxu0 %v2847
        %3256 = vmatpush.bf16.msra.mxu0 %v2840
        %3257 = vmatpush.bf16.msra.mxu0 %v2833
        %3258 = vmatpush.bf16.msra.mxu0 %v2826
        %3259 = vmatpush.bf16.msra.mxu0 %v2819
        %3260 = vmatpush.bf16.msra.mxu0 %v2812
        %3261 = vmatmul.bf16.gmra.mxu0 %v1749
        %v3262 = vpop.f32.mrf.mxu0
        %v3263 = vadd.f32 %v3214, %v3262
        %v3264 = vpop.f32.mrf.mxu0
        %v3265 = vadd.f32 %v3216, %v3264
        %3266 = vmatmul.bf16.gmra.mxu0 %v1753
        %v3267 = vpop.f32.mrf.mxu0
        %v3268 = vadd.f32 %v3219, %v3267
        %v3269 = vpop.f32.mrf.mxu0
        %v3270 = vadd.f32 %v3221, %v3269
        %3271 = vmatmul.bf16.gmra.mxu0 %v1757
        %v3272 = vpop.f32.mrf.mxu0
        %v3273 = vadd.f32 %v3224, %v3272
        %v3274 = vpop.f32.mrf.mxu0
        %v3275 = vadd.f32 %v3226, %v3274
        %3276 = vmatmul.bf16.gmra.mxu0 %v1761
        %v3277 = vpop.f32.mrf.mxu0
        %v3278 = vadd.f32 %v3229, %v3277
        %v3279 = vpop.f32.mrf.mxu0
        %v3280 = vadd.f32 %v3231, %v3279
        %3281 = vmatmul.bf16.gmra.mxu0 %v1765
        %v3282 = vpop.f32.mrf.mxu0
        %v3283 = vadd.f32 %v3234, %v3282
        %v3284 = vpop.f32.mrf.mxu0
        %v3285 = vadd.f32 %v3236, %v3284
        %3286 = vmatmul.bf16.gmra.mxu0 %v1769
        %v3287 = vpop.f32.mrf.mxu0
        %v3288 = vadd.f32 %v3239, %v3287
        %v3289 = vpop.f32.mrf.mxu0
        %v3290 = vadd.f32 %v3241, %v3289
        %3291 = vmatmul.bf16.gmra.mxu0 %v1773
        %v3292 = vpop.f32.mrf.mxu0
        %v3293 = vadd.f32 %v3244, %v3292
        %v3294 = vpop.f32.mrf.mxu0
        %v3295 = vadd.f32 %v3246, %v3294
        %3296 = vmatmul.bf16.gmra.mxu0 %v1777
        %v3297 = vpop.f32.mrf.mxu0
        %v3298 = vadd.f32 %v3249, %v3297
        %v3299 = vpop.f32.mrf.mxu0
        %v3300 = vadd.f32 %v3251, %v3299
        %3301 = vdwg.mxu0
        %3302 = vmatpush.bf16.msra.mxu0 %v2917
        %3303 = vmatpush.bf16.msra.mxu0 %v2910
        %3304 = vmatpush.bf16.msra.mxu0 %v2903
        %3305 = vmatpush.bf16.msra.mxu0 %v2896
        %3306 = vmatpush.bf16.msra.mxu0 %v2889
        %3307 = vmatpush.bf16.msra.mxu0 %v2882
        %3308 = vmatpush.bf16.msra.mxu0 %v2875
        %3309 = vmatpush.bf16.msra.mxu0 %v2868
        %3310 = vmatmul.bf16.gmra.mxu0 %v1750
        %v3311 = vpop.f32.mrf.mxu0
        %v3312 = vadd.f32 %v3263, %v3311
        %v3313 = vpop.f32.mrf.mxu0
        %v3314 = vadd.f32 %v3265, %v3313
        %3315 = vmatmul.bf16.gmra.mxu0 %v1754
        %v3316 = vpop.f32.mrf.mxu0
        %v3317 = vadd.f32 %v3268, %v3316
        %v3318 = vpop.f32.mrf.mxu0
        %v3319 = vadd.f32 %v3270, %v3318
        %3320 = vmatmul.bf16.gmra.mxu0 %v1758
        %v3321 = vpop.f32.mrf.mxu0
        %v3322 = vadd.f32 %v3273, %v3321
        %v3323 = vpop.f32.mrf.mxu0
        %v3324 = vadd.f32 %v3275, %v3323
        %3325 = vmatmul.bf16.gmra.mxu0 %v1762
        %v3326 = vpop.f32.mrf.mxu0
        %v3327 = vadd.f32 %v3278, %v3326
        %v3328 = vpop.f32.mrf.mxu0
        %v3329 = vadd.f32 %v3280, %v3328
        %3330 = vmatmul.bf16.gmra.mxu0 %v1766
        %v3331 = vpop.f32.mrf.mxu0
        %v3332 = vadd.f32 %v3283, %v3331
        %v3333 = vpop.f32.mrf.mxu0
        %v3334 = vadd.f32 %v3285, %v3333
        %3335 = vmatmul.bf16.gmra.mxu0 %v1770
        %v3336 = vpop.f32.mrf.mxu0
        %v3337 = vadd.f32 %v3288, %v3336
        %v3338 = vpop.f32.mrf.mxu0
        %v3339 = vadd.f32 %v3290, %v3338
        %3340 = vmatmul.bf16.gmra.mxu0 %v1774
        %v3341 = vpop.f32.mrf.mxu0
        %v3342 = vadd.f32 %v3293, %v3341
        %v3343 = vpop.f32.mrf.mxu0
        %v3344 = vadd.f32 %v3295, %v3343
        %3345 = vmatmul.bf16.gmra.mxu0 %v1778
        %v3346 = vpop.f32.mrf.mxu0
        %v3347 = vadd.f32 %v3298, %v3346
        %v3348 = vpop.f32.mrf.mxu0
        %v3349 = vadd.f32 %v3300, %v3348
        %3350 = vdwg.mxu0
        %3351 = vmatpush.bf16.msra.mxu0 %v2973
        %3352 = vmatpush.bf16.msra.mxu0 %v2966
        %3353 = vmatpush.bf16.msra.mxu0 %v2959
        %3354 = vmatpush.bf16.msra.mxu0 %v2952
        %3355 = vmatpush.bf16.msra.mxu0 %v2945
        %3356 = vmatpush.bf16.msra.mxu0 %v2938
        %3357 = vmatpush.bf16.msra.mxu0 %v2931
        %3358 = vmatpush.bf16.msra.mxu0 %v2924
        %3359 = vmatmul.bf16.gmra.mxu0 %v1751
        %v3360 = vpop.f32.mrf.mxu0
        %v3361 = vadd.f32 %v3312, %v3360
        %v3362 = vpop.f32.mrf.mxu0
        %v3363 = vadd.f32 %v3314, %v3362
        %3364 = vmatmul.bf16.gmra.mxu0 %v1755
        %v3365 = vpop.f32.mrf.mxu0
        %v3366 = vadd.f32 %v3317, %v3365
        %v3367 = vpop.f32.mrf.mxu0
        %v3368 = vadd.f32 %v3319, %v3367
        %3369 = vmatmul.bf16.gmra.mxu0 %v1759
        %v3370 = vpop.f32.mrf.mxu0
        %v3371 = vadd.f32 %v3322, %v3370
        %v3372 = vpop.f32.mrf.mxu0
        %v3373 = vadd.f32 %v3324, %v3372
        %3374 = vmatmul.bf16.gmra.mxu0 %v1763
        %v3375 = vpop.f32.mrf.mxu0
        %v3376 = vadd.f32 %v3327, %v3375
        %v3377 = vpop.f32.mrf.mxu0
        %v3378 = vadd.f32 %v3329, %v3377
        %3379 = vmatmul.bf16.gmra.mxu0 %v1767
        %v3380 = vpop.f32.mrf.mxu0
        %v3381 = vadd.f32 %v3332, %v3380
        %v3382 = vpop.f32.mrf.mxu0
        %v3383 = vadd.f32 %v3334, %v3382
        %3384 = vmatmul.bf16.gmra.mxu0 %v1771
        %v3385 = vpop.f32.mrf.mxu0
        %v3386 = vadd.f32 %v3337, %v3385
        %v3387 = vpop.f32.mrf.mxu0
        %v3388 = vadd.f32 %v3339, %v3387
        %3389 = vmatmul.bf16.gmra.mxu0 %v1775
        %v3390 = vpop.f32.mrf.mxu0
        %v3391 = vadd.f32 %v3342, %v3390
        %v3392 = vpop.f32.mrf.mxu0
        %v3393 = vadd.f32 %v3344, %v3392
        %3394 = vmatmul.bf16.gmra.mxu0 %v1779
        %v3395 = vpop.f32.mrf.mxu0
        %v3396 = vadd.f32 %v3347, %v3395
        %v3397 = vpop.f32.mrf.mxu0
        %v3398 = vadd.f32 %v3349, %v3397
        %3399 = vdwg.mxu0
        %3400 = vmatpush.bf16.msra.mxu0 %v2806
        %3401 = vmatpush.bf16.msra.mxu0 %v2799
        %3402 = vmatpush.bf16.msra.mxu0 %v2792
        %3403 = vmatpush.bf16.msra.mxu0 %v2785
        %3404 = vmatpush.bf16.msra.mxu0 %v2778
        %3405 = vmatpush.bf16.msra.mxu0 %v2771
        %3406 = vmatpush.bf16.msra.mxu0 %v2764
        %3407 = vmatpush.bf16.msra.mxu0 %v2757
        %3408 = vmatmul.bf16.gmra.mxu0 %v1748
        %v3409 = vpop.f32.mrf.mxu0
        %v3410 = vadd.f32 %v2039, %v3409
        %v3411 = vpop.f32.mrf.mxu0
        %v3412 = vadd.f32 %v2039, %v3411
        %3413 = vmatmul.bf16.gmra.mxu0 %v1752
        %v3414 = vpop.f32.mrf.mxu0
        %v3415 = vadd.f32 %v2039, %v3414
        %v3416 = vpop.f32.mrf.mxu0
        %v3417 = vadd.f32 %v2039, %v3416
        %3418 = vmatmul.bf16.gmra.mxu0 %v1756
        %v3419 = vpop.f32.mrf.mxu0
        %v3420 = vadd.f32 %v2039, %v3419
        %v3421 = vpop.f32.mrf.mxu0
        %v3422 = vadd.f32 %v2039, %v3421
        %3423 = vmatmul.bf16.gmra.mxu0 %v1760
        %v3424 = vpop.f32.mrf.mxu0
        %v3425 = vadd.f32 %v2039, %v3424
        %v3426 = vpop.f32.mrf.mxu0
        %v3427 = vadd.f32 %v2039, %v3426
        %3428 = vmatmul.bf16.gmra.mxu0 %v1764
        %v3429 = vpop.f32.mrf.mxu0
        %v3430 = vadd.f32 %v2039, %v3429
        %v3431 = vpop.f32.mrf.mxu0
        %v3432 = vadd.f32 %v2039, %v3431
        %3433 = vmatmul.bf16.gmra.mxu0 %v1768
        %v3434 = vpop.f32.mrf.mxu0
        %v3435 = vadd.f32 %v2039, %v3434
        %v3436 = vpop.f32.mrf.mxu0
        %v3437 = vadd.f32 %v2039, %v3436
        %3438 = vmatmul.bf16.gmra.mxu0 %v1772
        %v3439 = vpop.f32.mrf.mxu0
        %v3440 = vadd.f32 %v2039, %v3439
        %v3441 = vpop.f32.mrf.mxu0
        %v3442 = vadd.f32 %v2039, %v3441
        %3443 = vmatmul.bf16.gmra.mxu0 %v1776
        %v3444 = vpop.f32.mrf.mxu0
        %v3445 = vadd.f32 %v2039, %v3444
        %v3446 = vpop.f32.mrf.mxu0
        %v3447 = vadd.f32 %v2039, %v3446
        %3448 = vdwg.mxu0
        %3449 = vmatpush.bf16.msra.mxu0 %v2862
        %3450 = vmatpush.bf16.msra.mxu0 %v2855
        %3451 = vmatpush.bf16.msra.mxu0 %v2848
        %3452 = vmatpush.bf16.msra.mxu0 %v2841
        %3453 = vmatpush.bf16.msra.mxu0 %v2834
        %3454 = vmatpush.bf16.msra.mxu0 %v2827
        %3455 = vmatpush.bf16.msra.mxu0 %v2820
        %3456 = vmatpush.bf16.msra.mxu0 %v2813
        %3457 = vmatmul.bf16.gmra.mxu0 %v1749
        %v3458 = vpop.f32.mrf.mxu0
        %v3459 = vadd.f32 %v3410, %v3458
        %v3460 = vpop.f32.mrf.mxu0
        %v3461 = vadd.f32 %v3412, %v3460
        %3462 = vmatmul.bf16.gmra.mxu0 %v1753
        %v3463 = vpop.f32.mrf.mxu0
        %v3464 = vadd.f32 %v3415, %v3463
        %v3465 = vpop.f32.mrf.mxu0
        %v3466 = vadd.f32 %v3417, %v3465
        %3467 = vmatmul.bf16.gmra.mxu0 %v1757
        %v3468 = vpop.f32.mrf.mxu0
        %v3469 = vadd.f32 %v3420, %v3468
        %v3470 = vpop.f32.mrf.mxu0
        %v3471 = vadd.f32 %v3422, %v3470
        %3472 = vmatmul.bf16.gmra.mxu0 %v1761
        %v3473 = vpop.f32.mrf.mxu0
        %v3474 = vadd.f32 %v3425, %v3473
        %v3475 = vpop.f32.mrf.mxu0
        %v3476 = vadd.f32 %v3427, %v3475
        %3477 = vmatmul.bf16.gmra.mxu0 %v1765
        %v3478 = vpop.f32.mrf.mxu0
        %v3479 = vadd.f32 %v3430, %v3478
        %v3480 = vpop.f32.mrf.mxu0
        %v3481 = vadd.f32 %v3432, %v3480
        %3482 = vmatmul.bf16.gmra.mxu0 %v1769
        %v3483 = vpop.f32.mrf.mxu0
        %v3484 = vadd.f32 %v3435, %v3483
        %v3485 = vpop.f32.mrf.mxu0
        %v3486 = vadd.f32 %v3437, %v3485
        %3487 = vmatmul.bf16.gmra.mxu0 %v1773
        %v3488 = vpop.f32.mrf.mxu0
        %v3489 = vadd.f32 %v3440, %v3488
        %v3490 = vpop.f32.mrf.mxu0
        %v3491 = vadd.f32 %v3442, %v3490
        %3492 = vmatmul.bf16.gmra.mxu0 %v1777
        %v3493 = vpop.f32.mrf.mxu0
        %v3494 = vadd.f32 %v3445, %v3493
        %v3495 = vpop.f32.mrf.mxu0
        %v3496 = vadd.f32 %v3447, %v3495
        %3497 = vdwg.mxu0
        %3498 = vmatpush.bf16.msra.mxu0 %v2918
        %3499 = vmatpush.bf16.msra.mxu0 %v2911
        %3500 = vmatpush.bf16.msra.mxu0 %v2904
        %3501 = vmatpush.bf16.msra.mxu0 %v2897
        %3502 = vmatpush.bf16.msra.mxu0 %v2890
        %3503 = vmatpush.bf16.msra.mxu0 %v2883
        %3504 = vmatpush.bf16.msra.mxu0 %v2876
        %3505 = vmatpush.bf16.msra.mxu0 %v2869
        %3506 = vmatmul.bf16.gmra.mxu0 %v1750
        %v3507 = vpop.f32.mrf.mxu0
        %v3508 = vadd.f32 %v3459, %v3507
        %v3509 = vpop.f32.mrf.mxu0
        %v3510 = vadd.f32 %v3461, %v3509
        %3511 = vmatmul.bf16.gmra.mxu0 %v1754
        %v3512 = vpop.f32.mrf.mxu0
        %v3513 = vadd.f32 %v3464, %v3512
        %v3514 = vpop.f32.mrf.mxu0
        %v3515 = vadd.f32 %v3466, %v3514
        %3516 = vmatmul.bf16.gmra.mxu0 %v1758
        %v3517 = vpop.f32.mrf.mxu0
        %v3518 = vadd.f32 %v3469, %v3517
        %v3519 = vpop.f32.mrf.mxu0
        %v3520 = vadd.f32 %v3471, %v3519
        %3521 = vmatmul.bf16.gmra.mxu0 %v1762
        %v3522 = vpop.f32.mrf.mxu0
        %v3523 = vadd.f32 %v3474, %v3522
        %v3524 = vpop.f32.mrf.mxu0
        %v3525 = vadd.f32 %v3476, %v3524
        %3526 = vmatmul.bf16.gmra.mxu0 %v1766
        %v3527 = vpop.f32.mrf.mxu0
        %v3528 = vadd.f32 %v3479, %v3527
        %v3529 = vpop.f32.mrf.mxu0
        %v3530 = vadd.f32 %v3481, %v3529
        %3531 = vmatmul.bf16.gmra.mxu0 %v1770
        %v3532 = vpop.f32.mrf.mxu0
        %v3533 = vadd.f32 %v3484, %v3532
        %v3534 = vpop.f32.mrf.mxu0
        %v3535 = vadd.f32 %v3486, %v3534
        %3536 = vmatmul.bf16.gmra.mxu0 %v1774
        %v3537 = vpop.f32.mrf.mxu0
        %v3538 = vadd.f32 %v3489, %v3537
        %v3539 = vpop.f32.mrf.mxu0
        %v3540 = vadd.f32 %v3491, %v3539
        %3541 = vmatmul.bf16.gmra.mxu0 %v1778
        %v3542 = vpop.f32.mrf.mxu0
        %v3543 = vadd.f32 %v3494, %v3542
        %v3544 = vpop.f32.mrf.mxu0
        %v3545 = vadd.f32 %v3496, %v3544
        %3546 = vdwg.mxu0
        %3547 = vmatpush.bf16.msra.mxu0 %v2974
        %3548 = vmatpush.bf16.msra.mxu0 %v2967
        %3549 = vmatpush.bf16.msra.mxu0 %v2960
        %3550 = vmatpush.bf16.msra.mxu0 %v2953
        %3551 = vmatpush.bf16.msra.mxu0 %v2946
        %3552 = vmatpush.bf16.msra.mxu0 %v2939
        %3553 = vmatpush.bf16.msra.mxu0 %v2932
        %3554 = vmatpush.bf16.msra.mxu0 %v2925
        %3555 = vmatmul.bf16.gmra.mxu0 %v1751
        %v3556 = vpop.f32.mrf.mxu0
        %v3557 = vadd.f32 %v3508, %v3556
        %v3558 = vpop.f32.mrf.mxu0
        %v3559 = vadd.f32 %v3510, %v3558
        %3560 = vmatmul.bf16.gmra.mxu0 %v1755
        %v3561 = vpop.f32.mrf.mxu0
        %v3562 = vadd.f32 %v3513, %v3561
        %v3563 = vpop.f32.mrf.mxu0
        %v3564 = vadd.f32 %v3515, %v3563
        %3565 = vmatmul.bf16.gmra.mxu0 %v1759
        %v3566 = vpop.f32.mrf.mxu0
        %v3567 = vadd.f32 %v3518, %v3566
        %v3568 = vpop.f32.mrf.mxu0
        %v3569 = vadd.f32 %v3520, %v3568
        %3570 = vmatmul.bf16.gmra.mxu0 %v1763
        %v3571 = vpop.f32.mrf.mxu0
        %v3572 = vadd.f32 %v3523, %v3571
        %v3573 = vpop.f32.mrf.mxu0
        %v3574 = vadd.f32 %v3525, %v3573
        %3575 = vmatmul.bf16.gmra.mxu0 %v1767
        %v3576 = vpop.f32.mrf.mxu0
        %v3577 = vadd.f32 %v3528, %v3576
        %v3578 = vpop.f32.mrf.mxu0
        %v3579 = vadd.f32 %v3530, %v3578
        %3580 = vmatmul.bf16.gmra.mxu0 %v1771
        %v3581 = vpop.f32.mrf.mxu0
        %v3582 = vadd.f32 %v3533, %v3581
        %v3583 = vpop.f32.mrf.mxu0
        %v3584 = vadd.f32 %v3535, %v3583
        %3585 = vmatmul.bf16.gmra.mxu0 %v1775
        %v3586 = vpop.f32.mrf.mxu0
        %v3587 = vadd.f32 %v3538, %v3586
        %v3588 = vpop.f32.mrf.mxu0
        %v3589 = vadd.f32 %v3540, %v3588
        %3590 = vmatmul.bf16.gmra.mxu0 %v1779
        %v3591 = vpop.f32.mrf.mxu0
        %v3592 = vadd.f32 %v3543, %v3591
        %v3593 = vpop.f32.mrf.mxu0
        %v3594 = vadd.f32 %v3545, %v3593
        %3595 = vdwg.mxu0
        %3596 = vmatpush.bf16.msra.mxu0 %v2807
        %3597 = vmatpush.bf16.msra.mxu0 %v2800
        %3598 = vmatpush.bf16.msra.mxu0 %v2793
        %3599 = vmatpush.bf16.msra.mxu0 %v2786
        %3600 = vmatpush.bf16.msra.mxu0 %v2779
        %3601 = vmatpush.bf16.msra.mxu0 %v2772
        %3602 = vmatpush.bf16.msra.mxu0 %v2765
        %3603 = vmatpush.bf16.msra.mxu0 %v2758
        %3604 = vmatmul.bf16.gmra.mxu0 %v1748
        %v3605 = vpop.f32.mrf.mxu0
        %v3606 = vadd.f32 %v2040, %v3605
        %v3607 = vpop.f32.mrf.mxu0
        %v3608 = vadd.f32 %v2040, %v3607
        %3609 = vmatmul.bf16.gmra.mxu0 %v1752
        %v3610 = vpop.f32.mrf.mxu0
        %v3611 = vadd.f32 %v2040, %v3610
        %v3612 = vpop.f32.mrf.mxu0
        %v3613 = vadd.f32 %v2040, %v3612
        %3614 = vmatmul.bf16.gmra.mxu0 %v1756
        %v3615 = vpop.f32.mrf.mxu0
        %v3616 = vadd.f32 %v2040, %v3615
        %v3617 = vpop.f32.mrf.mxu0
        %v3618 = vadd.f32 %v2040, %v3617
        %3619 = vmatmul.bf16.gmra.mxu0 %v1760
        %v3620 = vpop.f32.mrf.mxu0
        %v3621 = vadd.f32 %v2040, %v3620
        %v3622 = vpop.f32.mrf.mxu0
        %v3623 = vadd.f32 %v2040, %v3622
        %3624 = vmatmul.bf16.gmra.mxu0 %v1764
        %v3625 = vpop.f32.mrf.mxu0
        %v3626 = vadd.f32 %v2040, %v3625
        %v3627 = vpop.f32.mrf.mxu0
        %v3628 = vadd.f32 %v2040, %v3627
        %3629 = vmatmul.bf16.gmra.mxu0 %v1768
        %v3630 = vpop.f32.mrf.mxu0
        %v3631 = vadd.f32 %v2040, %v3630
        %v3632 = vpop.f32.mrf.mxu0
        %v3633 = vadd.f32 %v2040, %v3632
        %3634 = vmatmul.bf16.gmra.mxu0 %v1772
        %v3635 = vpop.f32.mrf.mxu0
        %v3636 = vadd.f32 %v2040, %v3635
        %v3637 = vpop.f32.mrf.mxu0
        %v3638 = vadd.f32 %v2040, %v3637
        %3639 = vmatmul.bf16.gmra.mxu0 %v1776
        %v3640 = vpop.f32.mrf.mxu0
        %v3641 = vadd.f32 %v2040, %v3640
        %v3642 = vpop.f32.mrf.mxu0
        %v3643 = vadd.f32 %v2040, %v3642
        %3644 = vdwg.mxu0
        %3645 = vmatpush.bf16.msra.mxu0 %v2863
        %3646 = vmatpush.bf16.msra.mxu0 %v2856
        %3647 = vmatpush.bf16.msra.mxu0 %v2849
        %3648 = vmatpush.bf16.msra.mxu0 %v2842
        %3649 = vmatpush.bf16.msra.mxu0 %v2835
        %3650 = vmatpush.bf16.msra.mxu0 %v2828
        %3651 = vmatpush.bf16.msra.mxu0 %v2821
        %3652 = vmatpush.bf16.msra.mxu0 %v2814
        %3653 = vmatmul.bf16.gmra.mxu0 %v1749
        %v3654 = vpop.f32.mrf.mxu0
        %v3655 = vadd.f32 %v3606, %v3654
        %v3656 = vpop.f32.mrf.mxu0
        %v3657 = vadd.f32 %v3608, %v3656
        %3658 = vmatmul.bf16.gmra.mxu0 %v1753
        %v3659 = vpop.f32.mrf.mxu0
        %v3660 = vadd.f32 %v3611, %v3659
        %v3661 = vpop.f32.mrf.mxu0
        %v3662 = vadd.f32 %v3613, %v3661
        %3663 = vmatmul.bf16.gmra.mxu0 %v1757
        %v3664 = vpop.f32.mrf.mxu0
        %v3665 = vadd.f32 %v3616, %v3664
        %v3666 = vpop.f32.mrf.mxu0
        %v3667 = vadd.f32 %v3618, %v3666
        %3668 = vmatmul.bf16.gmra.mxu0 %v1761
        %v3669 = vpop.f32.mrf.mxu0
        %v3670 = vadd.f32 %v3621, %v3669
        %v3671 = vpop.f32.mrf.mxu0
        %v3672 = vadd.f32 %v3623, %v3671
        %3673 = vmatmul.bf16.gmra.mxu0 %v1765
        %v3674 = vpop.f32.mrf.mxu0
        %v3675 = vadd.f32 %v3626, %v3674
        %v3676 = vpop.f32.mrf.mxu0
        %v3677 = vadd.f32 %v3628, %v3676
        %3678 = vmatmul.bf16.gmra.mxu0 %v1769
        %v3679 = vpop.f32.mrf.mxu0
        %v3680 = vadd.f32 %v3631, %v3679
        %v3681 = vpop.f32.mrf.mxu0
        %v3682 = vadd.f32 %v3633, %v3681
        %3683 = vmatmul.bf16.gmra.mxu0 %v1773
        %v3684 = vpop.f32.mrf.mxu0
        %v3685 = vadd.f32 %v3636, %v3684
        %v3686 = vpop.f32.mrf.mxu0
        %v3687 = vadd.f32 %v3638, %v3686
        %3688 = vmatmul.bf16.gmra.mxu0 %v1777
        %v3689 = vpop.f32.mrf.mxu0
        %v3690 = vadd.f32 %v3641, %v3689
        %v3691 = vpop.f32.mrf.mxu0
        %v3692 = vadd.f32 %v3643, %v3691
        %3693 = vdwg.mxu0
        %3694 = vmatpush.bf16.msra.mxu0 %v2919
        %3695 = vmatpush.bf16.msra.mxu0 %v2912
        %3696 = vmatpush.bf16.msra.mxu0 %v2905
        %3697 = vmatpush.bf16.msra.mxu0 %v2898
        %3698 = vmatpush.bf16.msra.mxu0 %v2891
        %3699 = vmatpush.bf16.msra.mxu0 %v2884
        %3700 = vmatpush.bf16.msra.mxu0 %v2877
        %3701 = vmatpush.bf16.msra.mxu0 %v2870
        %3702 = vmatmul.bf16.gmra.mxu0 %v1750
        %v3703 = vpop.f32.mrf.mxu0
        %v3704 = vadd.f32 %v3655, %v3703
        %v3705 = vpop.f32.mrf.mxu0
        %v3706 = vadd.f32 %v3657, %v3705
        %3707 = vmatmul.bf16.gmra.mxu0 %v1754
        %v3708 = vpop.f32.mrf.mxu0
        %v3709 = vadd.f32 %v3660, %v3708
        %v3710 = vpop.f32.mrf.mxu0
        %v3711 = vadd.f32 %v3662, %v3710
        %3712 = vmatmul.bf16.gmra.mxu0 %v1758
        %v3713 = vpop.f32.mrf.mxu0
        %v3714 = vadd.f32 %v3665, %v3713
        %v3715 = vpop.f32.mrf.mxu0
        %v3716 = vadd.f32 %v3667, %v3715
        %3717 = vmatmul.bf16.gmra.mxu0 %v1762
        %v3718 = vpop.f32.mrf.mxu0
        %v3719 = vadd.f32 %v3670, %v3718
        %v3720 = vpop.f32.mrf.mxu0
        %v3721 = vadd.f32 %v3672, %v3720
        %3722 = vmatmul.bf16.gmra.mxu0 %v1766
        %v3723 = vpop.f32.mrf.mxu0
        %v3724 = vadd.f32 %v3675, %v3723
        %v3725 = vpop.f32.mrf.mxu0
        %v3726 = vadd.f32 %v3677, %v3725
        %3727 = vmatmul.bf16.gmra.mxu0 %v1770
        %v3728 = vpop.f32.mrf.mxu0
        %v3729 = vadd.f32 %v3680, %v3728
        %v3730 = vpop.f32.mrf.mxu0
        %v3731 = vadd.f32 %v3682, %v3730
        %3732 = vmatmul.bf16.gmra.mxu0 %v1774
        %v3733 = vpop.f32.mrf.mxu0
        %v3734 = vadd.f32 %v3685, %v3733
        %v3735 = vpop.f32.mrf.mxu0
        %v3736 = vadd.f32 %v3687, %v3735
        %3737 = vmatmul.bf16.gmra.mxu0 %v1778
        %v3738 = vpop.f32.mrf.mxu0
        %v3739 = vadd.f32 %v3690, %v3738
        %v3740 = vpop.f32.mrf.mxu0
        %v3741 = vadd.f32 %v3692, %v3740
        %3742 = vdwg.mxu0
        %3743 = vmatpush.bf16.msra.mxu0 %v2975
        %3744 = vmatpush.bf16.msra.mxu0 %v2968
        %3745 = vmatpush.bf16.msra.mxu0 %v2961
        %3746 = vmatpush.bf16.msra.mxu0 %v2954
        %3747 = vmatpush.bf16.msra.mxu0 %v2947
        %3748 = vmatpush.bf16.msra.mxu0 %v2940
        %3749 = vmatpush.bf16.msra.mxu0 %v2933
        %3750 = vmatpush.bf16.msra.mxu0 %v2926
        %3751 = vmatmul.bf16.gmra.mxu0 %v1751
        %v3752 = vpop.f32.mrf.mxu0
        %v3753 = vadd.f32 %v3704, %v3752
        %v3754 = vpop.f32.mrf.mxu0
        %v3755 = vadd.f32 %v3706, %v3754
        %3756 = vmatmul.bf16.gmra.mxu0 %v1755
        %v3757 = vpop.f32.mrf.mxu0
        %v3758 = vadd.f32 %v3709, %v3757
        %v3759 = vpop.f32.mrf.mxu0
        %v3760 = vadd.f32 %v3711, %v3759
        %3761 = vmatmul.bf16.gmra.mxu0 %v1759
        %v3762 = vpop.f32.mrf.mxu0
        %v3763 = vadd.f32 %v3714, %v3762
        %v3764 = vpop.f32.mrf.mxu0
        %v3765 = vadd.f32 %v3716, %v3764
        %3766 = vmatmul.bf16.gmra.mxu0 %v1763
        %v3767 = vpop.f32.mrf.mxu0
        %v3768 = vadd.f32 %v3719, %v3767
        %v3769 = vpop.f32.mrf.mxu0
        %v3770 = vadd.f32 %v3721, %v3769
        %3771 = vmatmul.bf16.gmra.mxu0 %v1767
        %v3772 = vpop.f32.mrf.mxu0
        %v3773 = vadd.f32 %v3724, %v3772
        %v3774 = vpop.f32.mrf.mxu0
        %v3775 = vadd.f32 %v3726, %v3774
        %3776 = vmatmul.bf16.gmra.mxu0 %v1771
        %v3777 = vpop.f32.mrf.mxu0
        %v3778 = vadd.f32 %v3729, %v3777
        %v3779 = vpop.f32.mrf.mxu0
        %v3780 = vadd.f32 %v3731, %v3779
        %3781 = vmatmul.bf16.gmra.mxu0 %v1775
        %v3782 = vpop.f32.mrf.mxu0
        %v3783 = vadd.f32 %v3734, %v3782
        %v3784 = vpop.f32.mrf.mxu0
        %v3785 = vadd.f32 %v3736, %v3784
        %3786 = vmatmul.bf16.gmra.mxu0 %v1779
        %v3787 = vpop.f32.mrf.mxu0
        %v3788 = vadd.f32 %v3739, %v3787
        %v3789 = vpop.f32.mrf.mxu0
        %v3790 = vadd.f32 %v3741, %v3789
        %3791 = vdwg.mxu0
        %3792 = vmatpush.bf16.msra.mxu0 %v2808
        %3793 = vmatpush.bf16.msra.mxu0 %v2801
        %3794 = vmatpush.bf16.msra.mxu0 %v2794
        %3795 = vmatpush.bf16.msra.mxu0 %v2787
        %3796 = vmatpush.bf16.msra.mxu0 %v2780
        %3797 = vmatpush.bf16.msra.mxu0 %v2773
        %3798 = vmatpush.bf16.msra.mxu0 %v2766
        %3799 = vmatpush.bf16.msra.mxu0 %v2759
        %3800 = vmatmul.bf16.gmra.mxu0 %v1748
        %v3801 = vpop.f32.mrf.mxu0
        %v3802 = vadd.f32 %v2041, %v3801
        %v3803 = vpop.f32.mrf.mxu0
        %v3804 = vadd.f32 %v2041, %v3803
        %3805 = vmatmul.bf16.gmra.mxu0 %v1752
        %v3806 = vpop.f32.mrf.mxu0
        %v3807 = vadd.f32 %v2041, %v3806
        %v3808 = vpop.f32.mrf.mxu0
        %v3809 = vadd.f32 %v2041, %v3808
        %3810 = vmatmul.bf16.gmra.mxu0 %v1756
        %v3811 = vpop.f32.mrf.mxu0
        %v3812 = vadd.f32 %v2041, %v3811
        %v3813 = vpop.f32.mrf.mxu0
        %v3814 = vadd.f32 %v2041, %v3813
        %3815 = vmatmul.bf16.gmra.mxu0 %v1760
        %v3816 = vpop.f32.mrf.mxu0
        %v3817 = vadd.f32 %v2041, %v3816
        %v3818 = vpop.f32.mrf.mxu0
        %v3819 = vadd.f32 %v2041, %v3818
        %3820 = vmatmul.bf16.gmra.mxu0 %v1764
        %v3821 = vpop.f32.mrf.mxu0
        %v3822 = vadd.f32 %v2041, %v3821
        %v3823 = vpop.f32.mrf.mxu0
        %v3824 = vadd.f32 %v2041, %v3823
        %3825 = vmatmul.bf16.gmra.mxu0 %v1768
        %v3826 = vpop.f32.mrf.mxu0
        %v3827 = vadd.f32 %v2041, %v3826
        %v3828 = vpop.f32.mrf.mxu0
        %v3829 = vadd.f32 %v2041, %v3828
        %3830 = vmatmul.bf16.gmra.mxu0 %v1772
        %v3831 = vpop.f32.mrf.mxu0
        %v3832 = vadd.f32 %v2041, %v3831
        %v3833 = vpop.f32.mrf.mxu0
        %v3834 = vadd.f32 %v2041, %v3833
        %3835 = vmatmul.bf16.gmra.mxu0 %v1776
        %v3836 = vpop.f32.mrf.mxu0
        %v3837 = vadd.f32 %v2041, %v3836
        %v3838 = vpop.f32.mrf.mxu0
        %v3839 = vadd.f32 %v2041, %v3838
        %3840 = vdwg.mxu0
        %3841 = vmatpush.bf16.msra.mxu0 %v2864
        %3842 = vmatpush.bf16.msra.mxu0 %v2857
        %3843 = vmatpush.bf16.msra.mxu0 %v2850
        %3844 = vmatpush.bf16.msra.mxu0 %v2843
        %3845 = vmatpush.bf16.msra.mxu0 %v2836
        %3846 = vmatpush.bf16.msra.mxu0 %v2829
        %3847 = vmatpush.bf16.msra.mxu0 %v2822
        %3848 = vmatpush.bf16.msra.mxu0 %v2815
        %3849 = vmatmul.bf16.gmra.mxu0 %v1749
        %v3850 = vpop.f32.mrf.mxu0
        %v3851 = vadd.f32 %v3802, %v3850
        %v3852 = vpop.f32.mrf.mxu0
        %v3853 = vadd.f32 %v3804, %v3852
        %3854 = vmatmul.bf16.gmra.mxu0 %v1753
        %v3855 = vpop.f32.mrf.mxu0
        %v3856 = vadd.f32 %v3807, %v3855
        %v3857 = vpop.f32.mrf.mxu0
        %v3858 = vadd.f32 %v3809, %v3857
        %3859 = vmatmul.bf16.gmra.mxu0 %v1757
        %v3860 = vpop.f32.mrf.mxu0
        %v3861 = vadd.f32 %v3812, %v3860
        %v3862 = vpop.f32.mrf.mxu0
        %v3863 = vadd.f32 %v3814, %v3862
        %3864 = vmatmul.bf16.gmra.mxu0 %v1761
        %v3865 = vpop.f32.mrf.mxu0
        %v3866 = vadd.f32 %v3817, %v3865
        %v3867 = vpop.f32.mrf.mxu0
        %v3868 = vadd.f32 %v3819, %v3867
        %3869 = vmatmul.bf16.gmra.mxu0 %v1765
        %v3870 = vpop.f32.mrf.mxu0
        %v3871 = vadd.f32 %v3822, %v3870
        %v3872 = vpop.f32.mrf.mxu0
        %v3873 = vadd.f32 %v3824, %v3872
        %3874 = vmatmul.bf16.gmra.mxu0 %v1769
        %v3875 = vpop.f32.mrf.mxu0
        %v3876 = vadd.f32 %v3827, %v3875
        %v3877 = vpop.f32.mrf.mxu0
        %v3878 = vadd.f32 %v3829, %v3877
        %3879 = vmatmul.bf16.gmra.mxu0 %v1773
        %v3880 = vpop.f32.mrf.mxu0
        %v3881 = vadd.f32 %v3832, %v3880
        %v3882 = vpop.f32.mrf.mxu0
        %v3883 = vadd.f32 %v3834, %v3882
        %3884 = vmatmul.bf16.gmra.mxu0 %v1777
        %v3885 = vpop.f32.mrf.mxu0
        %v3886 = vadd.f32 %v3837, %v3885
        %v3887 = vpop.f32.mrf.mxu0
        %v3888 = vadd.f32 %v3839, %v3887
        %3889 = vdwg.mxu0
        %3890 = vmatpush.bf16.msra.mxu0 %v2920
        %3891 = vmatpush.bf16.msra.mxu0 %v2913
        %3892 = vmatpush.bf16.msra.mxu0 %v2906
        %3893 = vmatpush.bf16.msra.mxu0 %v2899
        %3894 = vmatpush.bf16.msra.mxu0 %v2892
        %3895 = vmatpush.bf16.msra.mxu0 %v2885
        %3896 = vmatpush.bf16.msra.mxu0 %v2878
        %3897 = vmatpush.bf16.msra.mxu0 %v2871
        %3898 = vmatmul.bf16.gmra.mxu0 %v1750
        %v3899 = vpop.f32.mrf.mxu0
        %v3900 = vadd.f32 %v3851, %v3899
        %v3901 = vpop.f32.mrf.mxu0
        %v3902 = vadd.f32 %v3853, %v3901
        %3903 = vmatmul.bf16.gmra.mxu0 %v1754
        %v3904 = vpop.f32.mrf.mxu0
        %v3905 = vadd.f32 %v3856, %v3904
        %v3906 = vpop.f32.mrf.mxu0
        %v3907 = vadd.f32 %v3858, %v3906
        %3908 = vmatmul.bf16.gmra.mxu0 %v1758
        %v3909 = vpop.f32.mrf.mxu0
        %v3910 = vadd.f32 %v3861, %v3909
        %v3911 = vpop.f32.mrf.mxu0
        %v3912 = vadd.f32 %v3863, %v3911
        %3913 = vmatmul.bf16.gmra.mxu0 %v1762
        %v3914 = vpop.f32.mrf.mxu0
        %v3915 = vadd.f32 %v3866, %v3914
        %v3916 = vpop.f32.mrf.mxu0
        %v3917 = vadd.f32 %v3868, %v3916
        %3918 = vmatmul.bf16.gmra.mxu0 %v1766
        %v3919 = vpop.f32.mrf.mxu0
        %v3920 = vadd.f32 %v3871, %v3919
        %v3921 = vpop.f32.mrf.mxu0
        %v3922 = vadd.f32 %v3873, %v3921
        %3923 = vmatmul.bf16.gmra.mxu0 %v1770
        %v3924 = vpop.f32.mrf.mxu0
        %v3925 = vadd.f32 %v3876, %v3924
        %v3926 = vpop.f32.mrf.mxu0
        %v3927 = vadd.f32 %v3878, %v3926
        %3928 = vmatmul.bf16.gmra.mxu0 %v1774
        %v3929 = vpop.f32.mrf.mxu0
        %v3930 = vadd.f32 %v3881, %v3929
        %v3931 = vpop.f32.mrf.mxu0
        %v3932 = vadd.f32 %v3883, %v3931
        %3933 = vmatmul.bf16.gmra.mxu0 %v1778
        %v3934 = vpop.f32.mrf.mxu0
        %v3935 = vadd.f32 %v3886, %v3934
        %v3936 = vpop.f32.mrf.mxu0
        %v3937 = vadd.f32 %v3888, %v3936
        %3938 = vdwg.mxu0
        %3939 = vmatpush.bf16.msra.mxu0 %v2976
        %3940 = vmatpush.bf16.msra.mxu0 %v2969
        %3941 = vmatpush.bf16.msra.mxu0 %v2962
        %3942 = vmatpush.bf16.msra.mxu0 %v2955
        %3943 = vmatpush.bf16.msra.mxu0 %v2948
        %3944 = vmatpush.bf16.msra.mxu0 %v2941
        %3945 = vmatpush.bf16.msra.mxu0 %v2934
        %3946 = vmatpush.bf16.msra.mxu0 %v2927
        %3947 = vmatmul.bf16.gmra.mxu0 %v1751
        %v3948 = vpop.f32.mrf.mxu0
        %v3949 = vadd.f32 %v3900, %v3948
        %v3950 = vpop.f32.mrf.mxu0
        %v3951 = vadd.f32 %v3902, %v3950
        %3952 = vmatmul.bf16.gmra.mxu0 %v1755
        %v3953 = vpop.f32.mrf.mxu0
        %v3954 = vadd.f32 %v3905, %v3953
        %v3955 = vpop.f32.mrf.mxu0
        %v3956 = vadd.f32 %v3907, %v3955
        %3957 = vmatmul.bf16.gmra.mxu0 %v1759
        %v3958 = vpop.f32.mrf.mxu0
        %v3959 = vadd.f32 %v3910, %v3958
        %v3960 = vpop.f32.mrf.mxu0
        %v3961 = vadd.f32 %v3912, %v3960
        %3962 = vmatmul.bf16.gmra.mxu0 %v1763
        %v3963 = vpop.f32.mrf.mxu0
        %v3964 = vadd.f32 %v3915, %v3963
        %v3965 = vpop.f32.mrf.mxu0
        %v3966 = vadd.f32 %v3917, %v3965
        %3967 = vmatmul.bf16.gmra.mxu0 %v1767
        %v3968 = vpop.f32.mrf.mxu0
        %v3969 = vadd.f32 %v3920, %v3968
        %v3970 = vpop.f32.mrf.mxu0
        %v3971 = vadd.f32 %v3922, %v3970
        %3972 = vmatmul.bf16.gmra.mxu0 %v1771
        %v3973 = vpop.f32.mrf.mxu0
        %v3974 = vadd.f32 %v3925, %v3973
        %v3975 = vpop.f32.mrf.mxu0
        %v3976 = vadd.f32 %v3927, %v3975
        %3977 = vmatmul.bf16.gmra.mxu0 %v1775
        %v3978 = vpop.f32.mrf.mxu0
        %v3979 = vadd.f32 %v3930, %v3978
        %v3980 = vpop.f32.mrf.mxu0
        %v3981 = vadd.f32 %v3932, %v3980
        %3982 = vmatmul.bf16.gmra.mxu0 %v1779
        %v3983 = vpop.f32.mrf.mxu0
        %v3984 = vadd.f32 %v3935, %v3983
        %v3985 = vpop.f32.mrf.mxu0
        %v3986 = vadd.f32 %v3937, %v3985
        %3987 = vdwg.mxu0
        %3988 = vmatpush.bf16.msra.mxu0 %v2809
        %3989 = vmatpush.bf16.msra.mxu0 %v2802
        %3990 = vmatpush.bf16.msra.mxu0 %v2795
        %3991 = vmatpush.bf16.msra.mxu0 %v2788
        %3992 = vmatpush.bf16.msra.mxu0 %v2781
        %3993 = vmatpush.bf16.msra.mxu0 %v2774
        %3994 = vmatpush.bf16.msra.mxu0 %v2767
        %3995 = vmatpush.bf16.msra.mxu0 %v2760
        %3996 = vmatmul.bf16.gmra.mxu0 %v1748
        %v3997 = vpop.f32.mrf.mxu0
        %v3998 = vadd.f32 %v2042, %v3997
        %v3999 = vpop.f32.mrf.mxu0
        %v4000 = vadd.f32 %v2042, %v3999
        %4001 = vmatmul.bf16.gmra.mxu0 %v1752
        %v4002 = vpop.f32.mrf.mxu0
        %v4003 = vadd.f32 %v2042, %v4002
        %v4004 = vpop.f32.mrf.mxu0
        %v4005 = vadd.f32 %v2042, %v4004
        %4006 = vmatmul.bf16.gmra.mxu0 %v1756
        %v4007 = vpop.f32.mrf.mxu0
        %v4008 = vadd.f32 %v2042, %v4007
        %v4009 = vpop.f32.mrf.mxu0
        %v4010 = vadd.f32 %v2042, %v4009
        %4011 = vmatmul.bf16.gmra.mxu0 %v1760
        %v4012 = vpop.f32.mrf.mxu0
        %v4013 = vadd.f32 %v2042, %v4012
        %v4014 = vpop.f32.mrf.mxu0
        %v4015 = vadd.f32 %v2042, %v4014
        %4016 = vmatmul.bf16.gmra.mxu0 %v1764
        %v4017 = vpop.f32.mrf.mxu0
        %v4018 = vadd.f32 %v2042, %v4017
        %v4019 = vpop.f32.mrf.mxu0
        %v4020 = vadd.f32 %v2042, %v4019
        %4021 = vmatmul.bf16.gmra.mxu0 %v1768
        %v4022 = vpop.f32.mrf.mxu0
        %v4023 = vadd.f32 %v2042, %v4022
        %v4024 = vpop.f32.mrf.mxu0
        %v4025 = vadd.f32 %v2042, %v4024
        %4026 = vmatmul.bf16.gmra.mxu0 %v1772
        %v4027 = vpop.f32.mrf.mxu0
        %v4028 = vadd.f32 %v2042, %v4027
        %v4029 = vpop.f32.mrf.mxu0
        %v4030 = vadd.f32 %v2042, %v4029
        %4031 = vmatmul.bf16.gmra.mxu0 %v1776
        %v4032 = vpop.f32.mrf.mxu0
        %v4033 = vadd.f32 %v2042, %v4032
        %v4034 = vpop.f32.mrf.mxu0
        %v4035 = vadd.f32 %v2042, %v4034
        %4036 = vdwg.mxu0
        %4037 = vmatpush.bf16.msra.mxu0 %v2865
        %4038 = vmatpush.bf16.msra.mxu0 %v2858
        %4039 = vmatpush.bf16.msra.mxu0 %v2851
        %4040 = vmatpush.bf16.msra.mxu0 %v2844
        %4041 = vmatpush.bf16.msra.mxu0 %v2837
        %4042 = vmatpush.bf16.msra.mxu0 %v2830
        %4043 = vmatpush.bf16.msra.mxu0 %v2823
        %4044 = vmatpush.bf16.msra.mxu0 %v2816
        %4045 = vmatmul.bf16.gmra.mxu0 %v1749
        %v4046 = vpop.f32.mrf.mxu0
        %v4047 = vadd.f32 %v3998, %v4046
        %v4048 = vpop.f32.mrf.mxu0
        %v4049 = vadd.f32 %v4000, %v4048
        %4050 = vmatmul.bf16.gmra.mxu0 %v1753
        %v4051 = vpop.f32.mrf.mxu0
        %v4052 = vadd.f32 %v4003, %v4051
        %v4053 = vpop.f32.mrf.mxu0
        %v4054 = vadd.f32 %v4005, %v4053
        %4055 = vmatmul.bf16.gmra.mxu0 %v1757
        %v4056 = vpop.f32.mrf.mxu0
        %v4057 = vadd.f32 %v4008, %v4056
        %v4058 = vpop.f32.mrf.mxu0
        %v4059 = vadd.f32 %v4010, %v4058
        %4060 = vmatmul.bf16.gmra.mxu0 %v1761
        %v4061 = vpop.f32.mrf.mxu0
        %v4062 = vadd.f32 %v4013, %v4061
        %v4063 = vpop.f32.mrf.mxu0
        %v4064 = vadd.f32 %v4015, %v4063
        %4065 = vmatmul.bf16.gmra.mxu0 %v1765
        %v4066 = vpop.f32.mrf.mxu0
        %v4067 = vadd.f32 %v4018, %v4066
        %v4068 = vpop.f32.mrf.mxu0
        %v4069 = vadd.f32 %v4020, %v4068
        %4070 = vmatmul.bf16.gmra.mxu0 %v1769
        %v4071 = vpop.f32.mrf.mxu0
        %v4072 = vadd.f32 %v4023, %v4071
        %v4073 = vpop.f32.mrf.mxu0
        %v4074 = vadd.f32 %v4025, %v4073
        %4075 = vmatmul.bf16.gmra.mxu0 %v1773
        %v4076 = vpop.f32.mrf.mxu0
        %v4077 = vadd.f32 %v4028, %v4076
        %v4078 = vpop.f32.mrf.mxu0
        %v4079 = vadd.f32 %v4030, %v4078
        %4080 = vmatmul.bf16.gmra.mxu0 %v1777
        %v4081 = vpop.f32.mrf.mxu0
        %v4082 = vadd.f32 %v4033, %v4081
        %v4083 = vpop.f32.mrf.mxu0
        %v4084 = vadd.f32 %v4035, %v4083
        %4085 = vdwg.mxu0
        %4086 = vmatpush.bf16.msra.mxu0 %v2921
        %4087 = vmatpush.bf16.msra.mxu0 %v2914
        %4088 = vmatpush.bf16.msra.mxu0 %v2907
        %4089 = vmatpush.bf16.msra.mxu0 %v2900
        %4090 = vmatpush.bf16.msra.mxu0 %v2893
        %4091 = vmatpush.bf16.msra.mxu0 %v2886
        %4092 = vmatpush.bf16.msra.mxu0 %v2879
        %4093 = vmatpush.bf16.msra.mxu0 %v2872
        %4094 = vmatmul.bf16.gmra.mxu0 %v1750
        %v4095 = vpop.f32.mrf.mxu0
        %v4096 = vadd.f32 %v4047, %v4095
        %v4097 = vpop.f32.mrf.mxu0
        %v4098 = vadd.f32 %v4049, %v4097
        %4099 = vmatmul.bf16.gmra.mxu0 %v1754
        %v4100 = vpop.f32.mrf.mxu0
        %v4101 = vadd.f32 %v4052, %v4100
        %v4102 = vpop.f32.mrf.mxu0
        %v4103 = vadd.f32 %v4054, %v4102
        %4104 = vmatmul.bf16.gmra.mxu0 %v1758
        %v4105 = vpop.f32.mrf.mxu0
        %v4106 = vadd.f32 %v4057, %v4105
        %v4107 = vpop.f32.mrf.mxu0
        %v4108 = vadd.f32 %v4059, %v4107
        %4109 = vmatmul.bf16.gmra.mxu0 %v1762
        %v4110 = vpop.f32.mrf.mxu0
        %v4111 = vadd.f32 %v4062, %v4110
        %v4112 = vpop.f32.mrf.mxu0
        %v4113 = vadd.f32 %v4064, %v4112
        %4114 = vmatmul.bf16.gmra.mxu0 %v1766
        %v4115 = vpop.f32.mrf.mxu0
        %v4116 = vadd.f32 %v4067, %v4115
        %v4117 = vpop.f32.mrf.mxu0
        %v4118 = vadd.f32 %v4069, %v4117
        %4119 = vmatmul.bf16.gmra.mxu0 %v1770
        %v4120 = vpop.f32.mrf.mxu0
        %v4121 = vadd.f32 %v4072, %v4120
        %v4122 = vpop.f32.mrf.mxu0
        %v4123 = vadd.f32 %v4074, %v4122
        %4124 = vmatmul.bf16.gmra.mxu0 %v1774
        %v4125 = vpop.f32.mrf.mxu0
        %v4126 = vadd.f32 %v4077, %v4125
        %v4127 = vpop.f32.mrf.mxu0
        %v4128 = vadd.f32 %v4079, %v4127
        %4129 = vmatmul.bf16.gmra.mxu0 %v1778
        %v4130 = vpop.f32.mrf.mxu0
        %v4131 = vadd.f32 %v4082, %v4130
        %v4132 = vpop.f32.mrf.mxu0
        %v4133 = vadd.f32 %v4084, %v4132
        %4134 = vdwg.mxu0
        %4135 = vmatpush.bf16.msra.mxu0 %v2977
        %4136 = vmatpush.bf16.msra.mxu0 %v2970
        %4137 = vmatpush.bf16.msra.mxu0 %v2963
        %4138 = vmatpush.bf16.msra.mxu0 %v2956
        %4139 = vmatpush.bf16.msra.mxu0 %v2949
        %4140 = vmatpush.bf16.msra.mxu0 %v2942
        %4141 = vmatpush.bf16.msra.mxu0 %v2935
        %4142 = vmatpush.bf16.msra.mxu0 %v2928
        %4143 = vmatmul.bf16.gmra.mxu0 %v1751
        %v4144 = vpop.f32.mrf.mxu0
        %v4145 = vadd.f32 %v4096, %v4144
        %v4146 = vpop.f32.mrf.mxu0
        %v4147 = vadd.f32 %v4098, %v4146
        %4148 = vmatmul.bf16.gmra.mxu0 %v1755
        %v4149 = vpop.f32.mrf.mxu0
        %v4150 = vadd.f32 %v4101, %v4149
        %v4151 = vpop.f32.mrf.mxu0
        %v4152 = vadd.f32 %v4103, %v4151
        %4153 = vmatmul.bf16.gmra.mxu0 %v1759
        %v4154 = vpop.f32.mrf.mxu0
        %v4155 = vadd.f32 %v4106, %v4154
        %v4156 = vpop.f32.mrf.mxu0
        %v4157 = vadd.f32 %v4108, %v4156
        %4158 = vmatmul.bf16.gmra.mxu0 %v1763
        %v4159 = vpop.f32.mrf.mxu0
        %v4160 = vadd.f32 %v4111, %v4159
        %v4161 = vpop.f32.mrf.mxu0
        %v4162 = vadd.f32 %v4113, %v4161
        %4163 = vmatmul.bf16.gmra.mxu0 %v1767
        %v4164 = vpop.f32.mrf.mxu0
        %v4165 = vadd.f32 %v4116, %v4164
        %v4166 = vpop.f32.mrf.mxu0
        %v4167 = vadd.f32 %v4118, %v4166
        %4168 = vmatmul.bf16.gmra.mxu0 %v1771
        %v4169 = vpop.f32.mrf.mxu0
        %v4170 = vadd.f32 %v4121, %v4169
        %v4171 = vpop.f32.mrf.mxu0
        %v4172 = vadd.f32 %v4123, %v4171
        %4173 = vmatmul.bf16.gmra.mxu0 %v1775
        %v4174 = vpop.f32.mrf.mxu0
        %v4175 = vadd.f32 %v4126, %v4174
        %v4176 = vpop.f32.mrf.mxu0
        %v4177 = vadd.f32 %v4128, %v4176
        %4178 = vmatmul.bf16.gmra.mxu0 %v1779
        %v4179 = vpop.f32.mrf.mxu0
        %v4180 = vadd.f32 %v4131, %v4179
        %v4181 = vpop.f32.mrf.mxu0
        %v4182 = vadd.f32 %v4133, %v4181
        %4183 = vdwg.mxu0
        %4184 = vmatpush.bf16.msra.mxu0 %v2810
        %4185 = vmatpush.bf16.msra.mxu0 %v2803
        %4186 = vmatpush.bf16.msra.mxu0 %v2796
        %4187 = vmatpush.bf16.msra.mxu0 %v2789
        %4188 = vmatpush.bf16.msra.mxu0 %v2782
        %4189 = vmatpush.bf16.msra.mxu0 %v2775
        %4190 = vmatpush.bf16.msra.mxu0 %v2768
        %4191 = vmatpush.bf16.msra.mxu0 %v2761
        %4192 = vmatmul.bf16.gmra.mxu0 %v1748
        %v4193 = vpop.f32.mrf.mxu0
        %v4194 = vadd.f32 %v2043, %v4193
        %v4195 = vpop.f32.mrf.mxu0
        %v4196 = vadd.f32 %v2043, %v4195
        %4197 = vmatmul.bf16.gmra.mxu0 %v1752
        %v4198 = vpop.f32.mrf.mxu0
        %v4199 = vadd.f32 %v2043, %v4198
        %v4200 = vpop.f32.mrf.mxu0
        %v4201 = vadd.f32 %v2043, %v4200
        %4202 = vmatmul.bf16.gmra.mxu0 %v1756
        %v4203 = vpop.f32.mrf.mxu0
        %v4204 = vadd.f32 %v2043, %v4203
        %v4205 = vpop.f32.mrf.mxu0
        %v4206 = vadd.f32 %v2043, %v4205
        %4207 = vmatmul.bf16.gmra.mxu0 %v1760
        %v4208 = vpop.f32.mrf.mxu0
        %v4209 = vadd.f32 %v2043, %v4208
        %v4210 = vpop.f32.mrf.mxu0
        %v4211 = vadd.f32 %v2043, %v4210
        %4212 = vmatmul.bf16.gmra.mxu0 %v1764
        %v4213 = vpop.f32.mrf.mxu0
        %v4214 = vadd.f32 %v2043, %v4213
        %v4215 = vpop.f32.mrf.mxu0
        %v4216 = vadd.f32 %v2043, %v4215
        %4217 = vmatmul.bf16.gmra.mxu0 %v1768
        %v4218 = vpop.f32.mrf.mxu0
        %v4219 = vadd.f32 %v2043, %v4218
        %v4220 = vpop.f32.mrf.mxu0
        %v4221 = vadd.f32 %v2043, %v4220
        %4222 = vmatmul.bf16.gmra.mxu0 %v1772
        %v4223 = vpop.f32.mrf.mxu0
        %v4224 = vadd.f32 %v2043, %v4223
        %v4225 = vpop.f32.mrf.mxu0
        %v4226 = vadd.f32 %v2043, %v4225
        %4227 = vmatmul.bf16.gmra.mxu0 %v1776
        %v4228 = vpop.f32.mrf.mxu0
        %v4229 = vadd.f32 %v2043, %v4228
        %v4230 = vpop.f32.mrf.mxu0
        %v4231 = vadd.f32 %v2043, %v4230
        %4232 = vdwg.mxu0
        %4233 = vmatpush.bf16.msra.mxu0 %v2866
        %4234 = vmatpush.bf16.msra.mxu0 %v2859
        %4235 = vmatpush.bf16.msra.mxu0 %v2852
        %4236 = vmatpush.bf16.msra.mxu0 %v2845
        %4237 = vmatpush.bf16.msra.mxu0 %v2838
        %4238 = vmatpush.bf16.msra.mxu0 %v2831
        %4239 = vmatpush.bf16.msra.mxu0 %v2824
        %4240 = vmatpush.bf16.msra.mxu0 %v2817
        %4241 = vmatmul.bf16.gmra.mxu0 %v1749
        %v4242 = vpop.f32.mrf.mxu0
        %v4243 = vadd.f32 %v4194, %v4242
        %v4244 = vpop.f32.mrf.mxu0
        %v4245 = vadd.f32 %v4196, %v4244
        %4246 = vmatmul.bf16.gmra.mxu0 %v1753
        %v4247 = vpop.f32.mrf.mxu0
        %v4248 = vadd.f32 %v4199, %v4247
        %v4249 = vpop.f32.mrf.mxu0
        %v4250 = vadd.f32 %v4201, %v4249
        %4251 = vmatmul.bf16.gmra.mxu0 %v1757
        %v4252 = vpop.f32.mrf.mxu0
        %v4253 = vadd.f32 %v4204, %v4252
        %v4254 = vpop.f32.mrf.mxu0
        %v4255 = vadd.f32 %v4206, %v4254
        %4256 = vmatmul.bf16.gmra.mxu0 %v1761
        %v4257 = vpop.f32.mrf.mxu0
        %v4258 = vadd.f32 %v4209, %v4257
        %v4259 = vpop.f32.mrf.mxu0
        %v4260 = vadd.f32 %v4211, %v4259
        %4261 = vmatmul.bf16.gmra.mxu0 %v1765
        %v4262 = vpop.f32.mrf.mxu0
        %v4263 = vadd.f32 %v4214, %v4262
        %v4264 = vpop.f32.mrf.mxu0
        %v4265 = vadd.f32 %v4216, %v4264
        %4266 = vmatmul.bf16.gmra.mxu0 %v1769
        %v4267 = vpop.f32.mrf.mxu0
        %v4268 = vadd.f32 %v4219, %v4267
        %v4269 = vpop.f32.mrf.mxu0
        %v4270 = vadd.f32 %v4221, %v4269
        %4271 = vmatmul.bf16.gmra.mxu0 %v1773
        %v4272 = vpop.f32.mrf.mxu0
        %v4273 = vadd.f32 %v4224, %v4272
        %v4274 = vpop.f32.mrf.mxu0
        %v4275 = vadd.f32 %v4226, %v4274
        %4276 = vmatmul.bf16.gmra.mxu0 %v1777
        %v4277 = vpop.f32.mrf.mxu0
        %v4278 = vadd.f32 %v4229, %v4277
        %v4279 = vpop.f32.mrf.mxu0
        %v4280 = vadd.f32 %v4231, %v4279
        %4281 = vdwg.mxu0
        %4282 = vmatpush.bf16.msra.mxu0 %v2922
        %4283 = vmatpush.bf16.msra.mxu0 %v2915
        %4284 = vmatpush.bf16.msra.mxu0 %v2908
        %4285 = vmatpush.bf16.msra.mxu0 %v2901
        %4286 = vmatpush.bf16.msra.mxu0 %v2894
        %4287 = vmatpush.bf16.msra.mxu0 %v2887
        %4288 = vmatpush.bf16.msra.mxu0 %v2880
        %4289 = vmatpush.bf16.msra.mxu0 %v2873
        %4290 = vmatmul.bf16.gmra.mxu0 %v1750
        %v4291 = vpop.f32.mrf.mxu0
        %v4292 = vadd.f32 %v4243, %v4291
        %v4293 = vpop.f32.mrf.mxu0
        %v4294 = vadd.f32 %v4245, %v4293
        %4295 = vmatmul.bf16.gmra.mxu0 %v1754
        %v4296 = vpop.f32.mrf.mxu0
        %v4297 = vadd.f32 %v4248, %v4296
        %v4298 = vpop.f32.mrf.mxu0
        %v4299 = vadd.f32 %v4250, %v4298
        %4300 = vmatmul.bf16.gmra.mxu0 %v1758
        %v4301 = vpop.f32.mrf.mxu0
        %v4302 = vadd.f32 %v4253, %v4301
        %v4303 = vpop.f32.mrf.mxu0
        %v4304 = vadd.f32 %v4255, %v4303
        %4305 = vmatmul.bf16.gmra.mxu0 %v1762
        %v4306 = vpop.f32.mrf.mxu0
        %v4307 = vadd.f32 %v4258, %v4306
        %v4308 = vpop.f32.mrf.mxu0
        %v4309 = vadd.f32 %v4260, %v4308
        %4310 = vmatmul.bf16.gmra.mxu0 %v1766
        %v4311 = vpop.f32.mrf.mxu0
        %v4312 = vadd.f32 %v4263, %v4311
        %v4313 = vpop.f32.mrf.mxu0
        %v4314 = vadd.f32 %v4265, %v4313
        %4315 = vmatmul.bf16.gmra.mxu0 %v1770
        %v4316 = vpop.f32.mrf.mxu0
        %v4317 = vadd.f32 %v4268, %v4316
        %v4318 = vpop.f32.mrf.mxu0
        %v4319 = vadd.f32 %v4270, %v4318
        %4320 = vmatmul.bf16.gmra.mxu0 %v1774
        %v4321 = vpop.f32.mrf.mxu0
        %v4322 = vadd.f32 %v4273, %v4321
        %v4323 = vpop.f32.mrf.mxu0
        %v4324 = vadd.f32 %v4275, %v4323
        %4325 = vmatmul.bf16.gmra.mxu0 %v1778
        %v4326 = vpop.f32.mrf.mxu0
        %v4327 = vadd.f32 %v4278, %v4326
        %v4328 = vpop.f32.mrf.mxu0
        %v4329 = vadd.f32 %v4280, %v4328
        %4330 = vdwg.mxu0
        %4331 = vmatpush.bf16.msra.mxu0 %v2978
        %4332 = vmatpush.bf16.msra.mxu0 %v2971
        %4333 = vmatpush.bf16.msra.mxu0 %v2964
        %4334 = vmatpush.bf16.msra.mxu0 %v2957
        %4335 = vmatpush.bf16.msra.mxu0 %v2950
        %4336 = vmatpush.bf16.msra.mxu0 %v2943
        %4337 = vmatpush.bf16.msra.mxu0 %v2936
        %4338 = vmatpush.bf16.msra.mxu0 %v2929
        %4339 = vmatmul.bf16.gmra.mxu0 %v1751
        %v4340 = vpop.f32.mrf.mxu0
        %v4341 = vadd.f32 %v4292, %v4340
        %v4342 = vpop.f32.mrf.mxu0
        %v4343 = vadd.f32 %v4294, %v4342
        %4344 = vmatmul.bf16.gmra.mxu0 %v1755
        %v4345 = vpop.f32.mrf.mxu0
        %v4346 = vadd.f32 %v4297, %v4345
        %v4347 = vpop.f32.mrf.mxu0
        %v4348 = vadd.f32 %v4299, %v4347
        %4349 = vmatmul.bf16.gmra.mxu0 %v1759
        %v4350 = vpop.f32.mrf.mxu0
        %v4351 = vadd.f32 %v4302, %v4350
        %v4352 = vpop.f32.mrf.mxu0
        %v4353 = vadd.f32 %v4304, %v4352
        %4354 = vmatmul.bf16.gmra.mxu0 %v1763
        %v4355 = vpop.f32.mrf.mxu0
        %v4356 = vadd.f32 %v4307, %v4355
        %v4357 = vpop.f32.mrf.mxu0
        %v4358 = vadd.f32 %v4309, %v4357
        %4359 = vmatmul.bf16.gmra.mxu0 %v1767
        %v4360 = vpop.f32.mrf.mxu0
        %v4361 = vadd.f32 %v4312, %v4360
        %v4362 = vpop.f32.mrf.mxu0
        %v4363 = vadd.f32 %v4314, %v4362
        %4364 = vmatmul.bf16.gmra.mxu0 %v1771
        %v4365 = vpop.f32.mrf.mxu0
        %v4366 = vadd.f32 %v4317, %v4365
        %v4367 = vpop.f32.mrf.mxu0
        %v4368 = vadd.f32 %v4319, %v4367
        %4369 = vmatmul.bf16.gmra.mxu0 %v1775
        %v4370 = vpop.f32.mrf.mxu0
        %v4371 = vadd.f32 %v4322, %v4370
        %v4372 = vpop.f32.mrf.mxu0
        %v4373 = vadd.f32 %v4324, %v4372
        %4374 = vmatmul.bf16.gmra.mxu0 %v1779
        %v4375 = vpop.f32.mrf.mxu0
        %v4376 = vadd.f32 %v4327, %v4375
        %v4377 = vpop.f32.mrf.mxu0
        %v4378 = vadd.f32 %v4329, %v4377
        %4379 = vdwg.mxu0
        %4380 = vmatpush.bf16.msra.mxu0 %v2811
        %4381 = vmatpush.bf16.msra.mxu0 %v2804
        %4382 = vmatpush.bf16.msra.mxu0 %v2797
        %4383 = vmatpush.bf16.msra.mxu0 %v2790
        %4384 = vmatpush.bf16.msra.mxu0 %v2783
        %4385 = vmatpush.bf16.msra.mxu0 %v2776
        %4386 = vmatpush.bf16.msra.mxu0 %v2769
        %4387 = vmatpush.bf16.msra.mxu0 %v2762
        %4388 = vmatmul.bf16.gmra.mxu0 %v1748
        %v4389 = vpop.f32.mrf.mxu0
        %v4390 = vadd.f32 %v2044, %v4389
        %v4391 = vpop.f32.mrf.mxu0
        %v4392 = vadd.f32 %v2044, %v4391
        %4393 = vmatmul.bf16.gmra.mxu0 %v1752
        %v4394 = vpop.f32.mrf.mxu0
        %v4395 = vadd.f32 %v2044, %v4394
        %v4396 = vpop.f32.mrf.mxu0
        %v4397 = vadd.f32 %v2044, %v4396
        %4398 = vmatmul.bf16.gmra.mxu0 %v1756
        %v4399 = vpop.f32.mrf.mxu0
        %v4400 = vadd.f32 %v2044, %v4399
        %v4401 = vpop.f32.mrf.mxu0
        %v4402 = vadd.f32 %v2044, %v4401
        %4403 = vmatmul.bf16.gmra.mxu0 %v1760
        %v4404 = vpop.f32.mrf.mxu0
        %v4405 = vadd.f32 %v2044, %v4404
        %v4406 = vpop.f32.mrf.mxu0
        %v4407 = vadd.f32 %v2044, %v4406
        %4408 = vmatmul.bf16.gmra.mxu0 %v1764
        %v4409 = vpop.f32.mrf.mxu0
        %v4410 = vadd.f32 %v2044, %v4409
        %v4411 = vpop.f32.mrf.mxu0
        %v4412 = vadd.f32 %v2044, %v4411
        %4413 = vmatmul.bf16.gmra.mxu0 %v1768
        %v4414 = vpop.f32.mrf.mxu0
        %v4415 = vadd.f32 %v2044, %v4414
        %v4416 = vpop.f32.mrf.mxu0
        %v4417 = vadd.f32 %v2044, %v4416
        %4418 = vmatmul.bf16.gmra.mxu0 %v1772
        %v4419 = vpop.f32.mrf.mxu0
        %v4420 = vadd.f32 %v2044, %v4419
        %v4421 = vpop.f32.mrf.mxu0
        %v4422 = vadd.f32 %v2044, %v4421
        %4423 = vmatmul.bf16.gmra.mxu0 %v1776
        %v4424 = vpop.f32.mrf.mxu0
        %v4425 = vadd.f32 %v2044, %v4424
        %v4426 = vpop.f32.mrf.mxu0
        %v4427 = vadd.f32 %v2044, %v4426
        %4428 = vdwg.mxu0
        %4429 = vmatpush.bf16.msra.mxu0 %v2867
        %4430 = vmatpush.bf16.msra.mxu0 %v2860
        %4431 = vmatpush.bf16.msra.mxu0 %v2853
        %4432 = vmatpush.bf16.msra.mxu0 %v2846
        %4433 = vmatpush.bf16.msra.mxu0 %v2839
        %4434 = vmatpush.bf16.msra.mxu0 %v2832
        %4435 = vmatpush.bf16.msra.mxu0 %v2825
        %4436 = vmatpush.bf16.msra.mxu0 %v2818
        %4437 = vmatmul.bf16.gmra.mxu0 %v1749
        %v4438 = vpop.f32.mrf.mxu0
        %v4439 = vadd.f32 %v4390, %v4438
        %v4440 = vpop.f32.mrf.mxu0
        %v4441 = vadd.f32 %v4392, %v4440
        %4442 = vmatmul.bf16.gmra.mxu0 %v1753
        %v4443 = vpop.f32.mrf.mxu0
        %v4444 = vadd.f32 %v4395, %v4443
        %v4445 = vpop.f32.mrf.mxu0
        %v4446 = vadd.f32 %v4397, %v4445
        %4447 = vmatmul.bf16.gmra.mxu0 %v1757
        %v4448 = vpop.f32.mrf.mxu0
        %v4449 = vadd.f32 %v4400, %v4448
        %v4450 = vpop.f32.mrf.mxu0
        %v4451 = vadd.f32 %v4402, %v4450
        %4452 = vmatmul.bf16.gmra.mxu0 %v1761
        %v4453 = vpop.f32.mrf.mxu0
        %v4454 = vadd.f32 %v4405, %v4453
        %v4455 = vpop.f32.mrf.mxu0
        %v4456 = vadd.f32 %v4407, %v4455
        %4457 = vmatmul.bf16.gmra.mxu0 %v1765
        %v4458 = vpop.f32.mrf.mxu0
        %v4459 = vadd.f32 %v4410, %v4458
        %v4460 = vpop.f32.mrf.mxu0
        %v4461 = vadd.f32 %v4412, %v4460
        %4462 = vmatmul.bf16.gmra.mxu0 %v1769
        %v4463 = vpop.f32.mrf.mxu0
        %v4464 = vadd.f32 %v4415, %v4463
        %v4465 = vpop.f32.mrf.mxu0
        %v4466 = vadd.f32 %v4417, %v4465
        %4467 = vmatmul.bf16.gmra.mxu0 %v1773
        %v4468 = vpop.f32.mrf.mxu0
        %v4469 = vadd.f32 %v4420, %v4468
        %v4470 = vpop.f32.mrf.mxu0
        %v4471 = vadd.f32 %v4422, %v4470
        %4472 = vmatmul.bf16.gmra.mxu0 %v1777
        %v4473 = vpop.f32.mrf.mxu0
        %v4474 = vadd.f32 %v4425, %v4473
        %v4475 = vpop.f32.mrf.mxu0
        %v4476 = vadd.f32 %v4427, %v4475
        %4477 = vdwg.mxu0
        %4478 = vmatpush.bf16.msra.mxu0 %v2923
        %4479 = vmatpush.bf16.msra.mxu0 %v2916
        %4480 = vmatpush.bf16.msra.mxu0 %v2909
        %4481 = vmatpush.bf16.msra.mxu0 %v2902
        %4482 = vmatpush.bf16.msra.mxu0 %v2895
        %4483 = vmatpush.bf16.msra.mxu0 %v2888
        %4484 = vmatpush.bf16.msra.mxu0 %v2881
        %4485 = vmatpush.bf16.msra.mxu0 %v2874
        %4486 = vmatmul.bf16.gmra.mxu0 %v1750
        %v4487 = vpop.f32.mrf.mxu0
        %v4488 = vadd.f32 %v4439, %v4487
        %v4489 = vpop.f32.mrf.mxu0
        %v4490 = vadd.f32 %v4441, %v4489
        %4491 = vmatmul.bf16.gmra.mxu0 %v1754
        %v4492 = vpop.f32.mrf.mxu0
        %v4493 = vadd.f32 %v4444, %v4492
        %v4494 = vpop.f32.mrf.mxu0
        %v4495 = vadd.f32 %v4446, %v4494
        %4496 = vmatmul.bf16.gmra.mxu0 %v1758
        %v4497 = vpop.f32.mrf.mxu0
        %v4498 = vadd.f32 %v4449, %v4497
        %v4499 = vpop.f32.mrf.mxu0
        %v4500 = vadd.f32 %v4451, %v4499
        %4501 = vmatmul.bf16.gmra.mxu0 %v1762
        %v4502 = vpop.f32.mrf.mxu0
        %v4503 = vadd.f32 %v4454, %v4502
        %v4504 = vpop.f32.mrf.mxu0
        %v4505 = vadd.f32 %v4456, %v4504
        %4506 = vmatmul.bf16.gmra.mxu0 %v1766
        %v4507 = vpop.f32.mrf.mxu0
        %v4508 = vadd.f32 %v4459, %v4507
        %v4509 = vpop.f32.mrf.mxu0
        %v4510 = vadd.f32 %v4461, %v4509
        %4511 = vmatmul.bf16.gmra.mxu0 %v1770
        %v4512 = vpop.f32.mrf.mxu0
        %v4513 = vadd.f32 %v4464, %v4512
        %v4514 = vpop.f32.mrf.mxu0
        %v4515 = vadd.f32 %v4466, %v4514
        %4516 = vmatmul.bf16.gmra.mxu0 %v1774
        %v4517 = vpop.f32.mrf.mxu0
        %v4518 = vadd.f32 %v4469, %v4517
        %v4519 = vpop.f32.mrf.mxu0
        %v4520 = vadd.f32 %v4471, %v4519
        %4521 = vmatmul.bf16.gmra.mxu0 %v1778
        %v4522 = vpop.f32.mrf.mxu0
        %v4523 = vadd.f32 %v4474, %v4522
        %v4524 = vpop.f32.mrf.mxu0
        %v4525 = vadd.f32 %v4476, %v4524
        %4526 = vdwg.mxu0
        %4527 = vmatpush.bf16.msra.mxu0 %v2979
        %4528 = vmatpush.bf16.msra.mxu0 %v2972
        %4529 = vmatpush.bf16.msra.mxu0 %v2965
        %4530 = vmatpush.bf16.msra.mxu0 %v2958
        %4531 = vmatpush.bf16.msra.mxu0 %v2951
        %4532 = vmatpush.bf16.msra.mxu0 %v2944
        %4533 = vmatpush.bf16.msra.mxu0 %v2937
        %4534 = vmatpush.bf16.msra.mxu0 %v2930
        %4535 = vmatmul.bf16.gmra.mxu0 %v1751
        %v4536 = vpop.f32.mrf.mxu0
        %v4537 = vadd.f32 %v4488, %v4536
        %v4538 = vpop.f32.mrf.mxu0
        %v4539 = vadd.f32 %v4490, %v4538
        %4540 = vmatmul.bf16.gmra.mxu0 %v1755
        %v4541 = vpop.f32.mrf.mxu0
        %v4542 = vadd.f32 %v4493, %v4541
        %v4543 = vpop.f32.mrf.mxu0
        %v4544 = vadd.f32 %v4495, %v4543
        %4545 = vmatmul.bf16.gmra.mxu0 %v1759
        %v4546 = vpop.f32.mrf.mxu0
        %v4547 = vadd.f32 %v4498, %v4546
        %v4548 = vpop.f32.mrf.mxu0
        %v4549 = vadd.f32 %v4500, %v4548
        %4550 = vmatmul.bf16.gmra.mxu0 %v1763
        %v4551 = vpop.f32.mrf.mxu0
        %v4552 = vadd.f32 %v4503, %v4551
        %v4553 = vpop.f32.mrf.mxu0
        %v4554 = vadd.f32 %v4505, %v4553
        %4555 = vmatmul.bf16.gmra.mxu0 %v1767
        %v4556 = vpop.f32.mrf.mxu0
        %v4557 = vadd.f32 %v4508, %v4556
        %v4558 = vpop.f32.mrf.mxu0
        %v4559 = vadd.f32 %v4510, %v4558
        %4560 = vmatmul.bf16.gmra.mxu0 %v1771
        %v4561 = vpop.f32.mrf.mxu0
        %v4562 = vadd.f32 %v4513, %v4561
        %v4563 = vpop.f32.mrf.mxu0
        %v4564 = vadd.f32 %v4515, %v4563
        %4565 = vmatmul.bf16.gmra.mxu0 %v1775
        %v4566 = vpop.f32.mrf.mxu0
        %v4567 = vadd.f32 %v4518, %v4566
        %v4568 = vpop.f32.mrf.mxu0
        %v4569 = vadd.f32 %v4520, %v4568
        %4570 = vmatmul.bf16.gmra.mxu0 %v1779
        %v4571 = vpop.f32.mrf.mxu0
        %v4572 = vadd.f32 %v4523, %v4571
        %v4573 = vpop.f32.mrf.mxu0
        %v4574 = vadd.f32 %v4525, %v4573
        %4575 = vdwg.mxu0
        %v4576 = vtanh.pop %v3361
        %v4577 = vtanh.pop %v3557
        %v4578 = vtanh.pop %v3753
        %v4579 = vtanh.pop %v3949
        %v4580 = vtanh.pop %v4145
        %v4581 = vtanh.pop %v4341
        %v4582 = vtanh.pop %v4537
        %v4583 = vtanh.pop %v3363
        %v4584 = vtanh.pop %v3559
        %v4585 = vtanh.pop %v3755
        %v4586 = vtanh.pop %v3951
        %v4587 = vtanh.pop %v4147
        %v4588 = vtanh.pop %v4343
        %v4589 = vtanh.pop %v4539
        %v4590 = vtanh.pop %v3366
        %v4591 = vtanh.pop %v3562
        %v4592 = vtanh.pop %v3758
        %v4593 = vtanh.pop %v3954
        %v4594 = vtanh.pop %v4150
        %v4595 = vtanh.pop %v4346
        %v4596 = vtanh.pop %v4542
        %v4597 = vtanh.pop %v3368
        %v4598 = vtanh.pop %v3564
        %v4599 = vtanh.pop %v3760
        %v4600 = vtanh.pop %v3956
        %v4601 = vtanh.pop %v4152
        %v4602 = vtanh.pop %v4348
        %v4603 = vtanh.pop %v4544
        %v4604 = vtanh.pop %v3371
        %v4605 = vtanh.pop %v3567
        %v4606 = vtanh.pop %v3763
        %v4607 = vtanh.pop %v3959
        %v4608 = vtanh.pop %v4155
        %v4609 = vtanh.pop %v4351
        %v4610 = vtanh.pop %v4547
        %v4611 = vtanh.pop %v3373
        %v4612 = vtanh.pop %v3569
        %v4613 = vtanh.pop %v3765
        %v4614 = vtanh.pop %v3961
        %v4615 = vtanh.pop %v4157
        %v4616 = vtanh.pop %v4353
        %v4617 = vtanh.pop %v4549
        %v4618 = vtanh.pop %v3376
        %v4619 = vtanh.pop %v3572
        %v4620 = vtanh.pop %v3768
        %v4621 = vtanh.pop %v3964
        %v4622 = vtanh.pop %v4160
        %v4623 = vtanh.pop %v4356
        %v4624 = vtanh.pop %v4552
        %v4625 = vtanh.pop %v3378
        %v4626 = vtanh.pop %v3574
        %v4627 = vtanh.pop %v3770
        %v4628 = vtanh.pop %v3966
        %v4629 = vtanh.pop %v4162
        %v4630 = vtanh.pop %v4358
        %v4631 = vtanh.pop %v4554
        %v4632 = vtanh.pop %v3381
        %v4633 = vtanh.pop %v3577
        %v4634 = vtanh.pop %v3773
        %v4635 = vtanh.pop %v3969
        %v4636 = vtanh.pop %v4165
        %v4637 = vtanh.pop %v4361
        %v4638 = vtanh.pop %v4557
        %v4639 = vtanh.pop %v3383
        %v4640 = vtanh.pop %v3579
        %v4641 = vtanh.pop %v3775
        %v4642 = vtanh.pop %v3971
        %v4643 = vtanh.pop %v4167
        %v4644 = vtanh.pop %v4363
        %v4645 = vtanh.pop %v4559
        %v4646 = vtanh.pop %v3386
        %v4647 = vtanh.pop %v3582
        %v4648 = vtanh.pop %v3778
        %v4649 = vtanh.pop %v3974
        %v4650 = vtanh.pop %v4170
        %v4651 = vtanh.pop %v4366
        %v4652 = vtanh.pop %v4562
        %v4653 = vtanh.pop %v3388
        %v4654 = vtanh.pop %v3584
        %v4655 = vtanh.pop %v3780
        %v4656 = vtanh.pop %v3976
        %v4657 = vtanh.pop %v4172
        %v4658 = vtanh.pop %v4368
        %v4659 = vtanh.pop %v4564
        %v4660 = vtanh.pop %v3391
        %v4661 = vtanh.pop %v3587
        %v4662 = vtanh.pop %v3783
        %v4663 = vtanh.pop %v3979
        %v4664 = vtanh.pop %v4175
        %v4665 = vtanh.pop %v4371
        %v4666 = vtanh.pop %v4567
        %v4667 = vtanh.pop %v3393
        %v4668 = vtanh.pop %v3589
        %v4669 = vtanh.pop %v3785
        %v4670 = vtanh.pop %v3981
        %v4671 = vtanh.pop %v4177
        %v4672 = vtanh.pop %v4373
        %v4673 = vtanh.pop %v4569
        %v4674 = vtanh.pop %v3396
        %v4675 = vtanh.pop %v3592
        %v4676 = vtanh.pop %v3788
        %v4677 = vtanh.pop %v3984
        %v4678 = vtanh.pop %v4180
        %v4679 = vtanh.pop %v4376
        %v4680 = vtanh.pop %v4572
        %v4681 = vtanh.pop %v3398
        %v4682 = vtanh.pop %v3594
        %v4683 = vtanh.pop %v3790
        %v4684 = vtanh.pop %v3986
        %v4685 = vtanh.pop %v4182
        %v4686 = vtanh.pop %v4378
        %v4687 = vtanh.pop %v4574
        %4688 = vst [vmem:[%s391] sm:$0xff] %v4576
        %4689 = vst [vmem:[%s391 + $0x8] sm:$0xff] %v4577
        %4690 = vst [vmem:[%s391 + $0x10] sm:$0xff] %v4578
        %4691 = vst [vmem:[%s391 + $0x18] sm:$0xff] %v4579
        %4692 = vst [vmem:[%s391 + $0x20] sm:$0xff] %v4580
        %4693 = vst [vmem:[%s391 + $0x28] sm:$0xff] %v4581
        %4694 = vst [vmem:[%s391 + $0x30] sm:$0xff] %v4582
        %4695 = vst [vmem:[%s391 + $0x38] sm:$0xff] %v4583
        %4696 = vst [vmem:[%s391 + $0x40] sm:$0xff] %v4584
        %4697 = vst [vmem:[%s391 + $0x48] sm:$0xff] %v4585
        %4698 = vst [vmem:[%s391 + $0x50] sm:$0xff] %v4586
        %4699 = vst [vmem:[%s391 + $0x58] sm:$0xff] %v4587
        %4700 = vst [vmem:[%s391 + $0x60] sm:$0xff] %v4588
        %4701 = vst [vmem:[%s391 + $0x68] sm:$0xff] %v4589
        %4702 = vst [vmem:[%s391 + $0x70] sm:$0xff] %v4590
        %4703 = vst [vmem:[%s391 + $0x78] sm:$0xff] %v4591
        %4704 = vst [vmem:[%s391 + $0x80] sm:$0xff] %v4592
        %4705 = vst [vmem:[%s391 + $0x88] sm:$0xff] %v4593
        %4706 = vst [vmem:[%s391 + $0x90] sm:$0xff] %v4594
        %4707 = vst [vmem:[%s391 + $0x98] sm:$0xff] %v4595
        %4708 = vst [vmem:[%s391 + $0xa0] sm:$0xff] %v4596
        %4709 = vst [vmem:[%s391 + $0xa8] sm:$0xff] %v4597
        %4710 = vst [vmem:[%s391 + $0xb0] sm:$0xff] %v4598
        %4711 = vst [vmem:[%s391 + $0xb8] sm:$0xff] %v4599
        %4712 = vst [vmem:[%s391 + $0xc0] sm:$0xff] %v4600
        %4713 = vst [vmem:[%s391 + $0xc8] sm:$0xff] %v4601
        %4714 = vst [vmem:[%s391 + $0xd0] sm:$0xff] %v4602
        %4715 = vst [vmem:[%s391 + $0xd8] sm:$0xff] %v4603
        %4716 = vst [vmem:[%s391 + $0xe0] sm:$0xff] %v4604
        %4717 = vst [vmem:[%s391 + $0xe8] sm:$0xff] %v4605
        %4718 = vst [vmem:[%s391 + $0xf0] sm:$0xff] %v4606
        %4719 = vst [vmem:[%s391 + $0xf8] sm:$0xff] %v4607
        %4720 = vst [vmem:[%s391 + $0x100] sm:$0xff] %v4608
        %4721 = vst [vmem:[%s391 + $0x108] sm:$0xff] %v4609
        %4722 = vst [vmem:[%s391 + $0x110] sm:$0xff] %v4610
        %4723 = vst [vmem:[%s391 + $0x118] sm:$0xff] %v4611
        %4724 = vst [vmem:[%s391 + $0x120] sm:$0xff] %v4612
        %4725 = vst [vmem:[%s391 + $0x128] sm:$0xff] %v4613
        %4726 = vst [vmem:[%s391 + $0x130] sm:$0xff] %v4614
        %4727 = vst [vmem:[%s391 + $0x138] sm:$0xff] %v4615
        %4728 = vst [vmem:[%s391 + $0x140] sm:$0xff] %v4616
        %4729 = vst [vmem:[%s391 + $0x148] sm:$0xff] %v4617
        %4730 = vst [vmem:[%s391 + $0x150] sm:$0xff] %v4618
        %4731 = vst [vmem:[%s391 + $0x158] sm:$0xff] %v4619
        %4732 = vst [vmem:[%s391 + $0x160] sm:$0xff] %v4620
        %4733 = vst [vmem:[%s391 + $0x168] sm:$0xff] %v4621
        %4734 = vst [vmem:[%s391 + $0x170] sm:$0xff] %v4622
        %4735 = vst [vmem:[%s391 + $0x178] sm:$0xff] %v4623
        %4736 = vst [vmem:[%s391 + $0x180] sm:$0xff] %v4624
        %4737 = vst [vmem:[%s391 + $0x188] sm:$0xff] %v4625
        %4738 = vst [vmem:[%s391 + $0x190] sm:$0xff] %v4626
        %4739 = vst [vmem:[%s391 + $0x198] sm:$0xff] %v4627
        %4740 = vst [vmem:[%s391 + $0x1a0] sm:$0xff] %v4628
        %4741 = vst [vmem:[%s391 + $0x1a8] sm:$0xff] %v4629
        %4742 = vst [vmem:[%s391 + $0x1b0] sm:$0xff] %v4630
        %4743 = vst [vmem:[%s391 + $0x1b8] sm:$0xff] %v4631
        %4744 = vst [vmem:[%s391 + $0x1c0] sm:$0xff] %v4632
        %4745 = vst [vmem:[%s391 + $0x1c8] sm:$0xff] %v4633
        %4746 = vst [vmem:[%s391 + $0x1d0] sm:$0xff] %v4634
        %4747 = vst [vmem:[%s391 + $0x1d8] sm:$0xff] %v4635
        %4748 = vst [vmem:[%s391 + $0x1e0] sm:$0xff] %v4636
        %4749 = vst [vmem:[%s391 + $0x1e8] sm:$0xff] %v4637
        %4750 = vst [vmem:[%s391 + $0x1f0] sm:$0xff] %v4638
        %4751 = vst [vmem:[%s391 + $0x1f8] sm:$0xff] %v4639
        %4752 = vst [vmem:[%s391 + $0x200] sm:$0xff] %v4640
        %4753 = vst [vmem:[%s391 + $0x208] sm:$0xff] %v4641
        %4754 = vst [vmem:[%s391 + $0x210] sm:$0xff] %v4642
        %4755 = vst [vmem:[%s391 + $0x218] sm:$0xff] %v4643
        %4756 = vst [vmem:[%s391 + $0x220] sm:$0xff] %v4644
        %4757 = vst [vmem:[%s391 + $0x228] sm:$0xff] %v4645
        %4758 = vst [vmem:[%s391 + $0x230] sm:$0xff] %v4646
        %4759 = vst [vmem:[%s391 + $0x238] sm:$0xff] %v4647
        %4760 = vst [vmem:[%s391 + $0x240] sm:$0xff] %v4648
        %4761 = vst [vmem:[%s391 + $0x248] sm:$0xff] %v4649
        %4762 = vst [vmem:[%s391 + $0x250] sm:$0xff] %v4650
        %4763 = vst [vmem:[%s391 + $0x258] sm:$0xff] %v4651
        %4764 = vst [vmem:[%s391 + $0x260] sm:$0xff] %v4652
        %4765 = vst [vmem:[%s391 + $0x268] sm:$0xff] %v4653
        %4766 = vst [vmem:[%s391 + $0x270] sm:$0xff] %v4654
        %4767 = vst [vmem:[%s391 + $0x278] sm:$0xff] %v4655
        %4768 = vst [vmem:[%s391 + $0x280] sm:$0xff] %v4656
        %4769 = vst [vmem:[%s391 + $0x288] sm:$0xff] %v4657
        %4770 = vst [vmem:[%s391 + $0x290] sm:$0xff] %v4658
        %4771 = vst [vmem:[%s391 + $0x298] sm:$0xff] %v4659
        %4772 = vst [vmem:[%s391 + $0x2a0] sm:$0xff] %v4660
        %4773 = vst [vmem:[%s391 + $0x2a8] sm:$0xff] %v4661
        %4774 = vst [vmem:[%s391 + $0x2b0] sm:$0xff] %v4662
        %4775 = vst [vmem:[%s391 + $0x2b8] sm:$0xff] %v4663
        %4776 = vst [vmem:[%s391 + $0x2c0] sm:$0xff] %v4664
        %4777 = vst [vmem:[%s391 + $0x2c8] sm:$0xff] %v4665
        %4778 = vst [vmem:[%s391 + $0x2d0] sm:$0xff] %v4666
        %4779 = vst [vmem:[%s391 + $0x2d8] sm:$0xff] %v4667
        %4780 = vst [vmem:[%s391 + $0x2e0] sm:$0xff] %v4668
        %4781 = vst [vmem:[%s391 + $0x2e8] sm:$0xff] %v4669
        %4782 = vst [vmem:[%s391 + $0x2f0] sm:$0xff] %v4670
        %4783 = vst [vmem:[%s391 + $0x2f8] sm:$0xff] %v4671
        %4784 = vst [vmem:[%s391 + $0x300] sm:$0xff] %v4672
        %4785 = vst [vmem:[%s391 + $0x308] sm:$0xff] %v4673
        %4786 = vst [vmem:[%s391 + $0x310] sm:$0xff] %v4674
        %4787 = vst [vmem:[%s391 + $0x318] sm:$0xff] %v4675
        %4788 = vst [vmem:[%s391 + $0x320] sm:$0xff] %v4676
        %4789 = vst [vmem:[%s391 + $0x328] sm:$0xff] %v4677
        %4790 = vst [vmem:[%s391 + $0x330] sm:$0xff] %v4678
        %4791 = vst [vmem:[%s391 + $0x338] sm:$0xff] %v4679
        %4792 = vst [vmem:[%s391 + $0x340] sm:$0xff] %v4680
        %4793 = vst [vmem:[%s391 + $0x348] sm:$0xff] %v4681
        %4794 = vst [vmem:[%s391 + $0x350] sm:$0xff] %v4682
        %4795 = vst [vmem:[%s391 + $0x358] sm:$0xff] %v4683
        %4796 = vst [vmem:[%s391 + $0x360] sm:$0xff] %v4684
        %4797 = vst [vmem:[%s391 + $0x368] sm:$0xff] %v4685
        %4798 = vst [vmem:[%s391 + $0x370] sm:$0xff] %v4686
        %4799 = vst [vmem:[%s391 + $0x378] sm:$0xff] %v4687
        %s4800 = sand.u32 %s187, 1
        %s4801 = scalar_lea.sflag [#allocation4], %s4800
        %s4802 = sand.u32 %s187, 1
        %s4803 = smul.addr %s4802, 896
        %s4804 = scalar_lea.vmem [#allocation14], %s4803
        // Predicated region
        $region77: #{tpu_custom_call.1} parent=47 // pred_check
          %p4805 = pneg %p197
        $region78: #{tpu_custom_call.1} parent=47 // pred_check_branch
          %4807 = sbr.rel (%p4805) target = $region80
        $region79: #{tpu_custom_call.1} parent=47 // pred_region
          %s4808 = smul.u32 16, %s27
          %4810 = vsyncadd %s4801, 0
          %s4811 = smul.addr %s4808, 7
          %s4812 = smul.addr %s4811, 8
          %s4813 = scalar_lea.hbm %s7, %s4812
          %s4814 = sshll.u32 %s4804, 4
          %s4815 = int_to_ptr.vmem [resolvable:$true] %s4814
          %s4816 = sshll.u32 %s4813, 4
          %s4817 = int_to_ptr.hbm [resolvable:$true] %s4816
          %4822 = dma.vmem_to_hbm [thread:$0]  %s4815, 14336, %s4817, %s4801, 896, 896, 56
        $region80: #{tpu_custom_call.1} parent=47 // pred_fallthru
          _
      $region48: #{tpu_custom_call.1} parent=5 // pred_fallthru
        _
      %p4823 = scmp.le.s32.totalorder 2, %s22
      // Predicated region
      $region81: #{tpu_custom_call.1} parent=5 // pred_check
        %p4824 = pneg %p4823
      $region82: #{tpu_custom_call.1} parent=5 // pred_check_branch
        %4826 = sbr.rel (%p4824) target = $region84
      $region83: #{tpu_custom_call.1} parent=5 // pred_region
        %s4827 = ssub.s32 %s22, 2
        // Predicated region
        $region85: #{tpu_custom_call.1} parent=83 // pred_check
          %p4828 = pneg %p203
        $region86: #{tpu_custom_call.1} parent=83 // pred_check_branch
          %4830 = sbr.rel (%p4828) target = $region88
        $region87: #{tpu_custom_call.1} parent=83 // pred_region
          %s4831 = sand.u32 %s188, 1
          %s4832 = scalar_lea.sflag [#allocation4], %s4831
          %s4833 = sand.u32 %s188, 1
          %s4834 = smul.addr %s4833, 896
          %s4835 = scalar_lea.vmem [#allocation14], %s4834
          %4837 = dma.done %s4832, 14336
        $region88: #{tpu_custom_call.1} parent=83 // pred_fallthru
          _
      $region84: #{tpu_custom_call.1} parent=5 // pred_fallthru
        _
    $region6: #{tpu_custom_call.1} parent=1 // loop_footer
      %s26 = sadd.s32 1, %s22
    $region7: #{tpu_custom_call.1} parent=1 // loop_footer_branch
      %21 = sbr.rel target = $region3
    $region8: #{tpu_custom_call.1} parent=1 // loop_exit
      _
    %4838 = vsyncpa [#allocation3], 1
    %s4839 = scalar_lea.sflag [#allocation3], 1
    %4840 = vsyncpa %s4839, 1
    %4841 = vsyncpa [#allocation6], 1
    %4842 = vsyncpa [#allocation9], 1
    %4843 = vsyncpa [#allocation12], 1
    %4844 = vsyncpa [#allocation4], 1
    %s4845 = scalar_lea.sflag [#allocation4], 1
    %4846 = vsyncpa %s4845, 1

</llo_original>
